<compile_context>
chip_gen: v7x
topology: tpu7x:2x2x1
jax: 0.10.0
libtpu: 0.0.40
codegen_flags: <defaults>
</compile_context>

<pallas_src>
import functools
import math

import jax
import jax.numpy as jnp
from jax import lax
from jax.experimental import pallas as pl
from jax.experimental.pallas import tpu as pltpu

_LANE = 128
_PREFERRED_CHUNK = 512


def _round_up(x, m):
    return ((x + m - 1) // m) * m


def _metric_regression_kernel(a_ref, b_ref, w2_ref, x_ref, o_ref, *,
                              n_classes, n_metrics, n_hidden, chunk,
                              mac_dtype):
    """Fused pointwise conv1+BN+ReLU -> conv2 -> log_softmax over classes.

    a_ref  : SMEM (M*H,) f32   folded conv1*BN scale, a[m*H + j]
    b_ref  : SMEM (H,)   f32   folded BN shift
    w2_ref : SMEM (H,)   f32   conv2 weight
    x_ref  : VMEM (1, M, C, TILE)  input metrics (native dtype), pixels on lanes
    o_ref  : VMEM (1, C, TILE)     per-class log-probabilities (native dtype)
    """
    C, M, H = n_classes, n_metrics, n_hidden
    tile = o_ref.shape[-1]
    n_chunks = tile // chunk

    def body(ci, carry):
        off = pl.multiple_of(ci * chunk, chunk)
        sl = pl.ds(off, chunk)
        # Contiguous (C, chunk) load per metric plane (no sublane relayout).
        xs = [x_ref[0, m, :, sl].astype(mac_dtype) for m in range(M)]

        logits = None
        for j in range(H):
            acc = a_ref[j].astype(mac_dtype) * xs[0]          # m = 0 term
            for m in range(1, M):
                acc = acc + a_ref[m * H + j].astype(mac_dtype) * xs[m]
            hid = jnp.maximum(acc + b_ref[j].astype(mac_dtype), 0.0)
            term = w2_ref[j] * hid               # f32 scalar -> f32 logits
            logits = term if logits is None else logits + term

        # Numerically stable log-softmax over the class (sublane) axis, in f32.
        mx = jnp.max(logits, axis=0, keepdims=True)
        z = logits - mx
        lse = jnp.log(jnp.sum(jnp.exp(z), axis=0, keepdims=True))
        o_ref[0, :, sl] = (z - lse).astype(o_ref.dtype)
        return carry

    lax.fori_loop(0, n_chunks, body, 0, unroll=min(n_chunks, 8))


def metric_regression_forward(x, w1, gamma, beta, run_mean, run_var, w2, *,
                              eps=1e-5):
    """x: [N, C, M, *spatial]; returns per-class log-probs [N, C, *spatial]."""
    N, C, M = int(x.shape[0]), int(x.shape[1]), int(x.shape[2])
    spatial = tuple(int(d) for d in x.shape[3:])
    S = math.prod(spatial) if spatial else 1
    H = int(w1.shape[0])                            # 2 * nbr_metrics

    # Fold conv1 (1x1, no bias) + inference-mode BatchNorm into one affine:
    #   pre[j] = sum_m (s[j] * w1[j, m]) * x[m] + (beta[j] - s[j] * mean[j])
    s = gamma / jnp.sqrt(run_var + eps)
    a_flat = (w1 * s[:, None]).T.reshape(-1).astype(jnp.float32)  # a[m*H + j]
    b = (beta - s * run_mean).astype(jnp.float32)
    w2f = jnp.reshape(w2, (-1,)).astype(jnp.float32)

    # Single wrapper pass (native dtype): (N,C,M,S) -> (N,M,C,S) so every
    # metric plane is a contiguous (C, tile) slab inside the kernel block.
    x_t = jnp.transpose(jnp.reshape(x, (N, C, M, S)), (0, 2, 1, 3))

    # Lane tile: target ~2 MiB of real input bytes per block, 128-aligned,
    # capped to the (rounded) pixel count; keep >=2 grid blocks when N == 1.
    elt = jnp.dtype(x.dtype).itemsize
    tile = (2 * 1024 * 1024 // (C * M * elt)) // _LANE * _LANE
    tile = max(_LANE, min(tile, 32768, _round_up(S, _LANE)))
    if N == 1 and S > _LANE:
        tile = min(tile, _round_up(-(-S // 2), _LANE))
    chunk = next(c for c in (_PREFERRED_CHUNK, 256, 128) if tile % c == 0)
    num_tiles = -(-S // tile)            # ragged tail: Pallas masks the stores
    grid = (N, num_tiles)

    # bf16 MAC on bf16 inputs (v6e/v7x packed-bf16 VALU); softmax stays f32.
    # TODO(synk): force float32 MAC on v5e (no bf16 VALU) if bf16 is used there.
    mac_dtype = jnp.bfloat16 if x.dtype == jnp.bfloat16 else jnp.float32

    kernel = functools.partial(
        _metric_regression_kernel, n_classes=C, n_metrics=M, n_hidden=H,
        chunk=chunk, mac_dtype=mac_dtype)

    flops = N * C * S * (H * (2 * M + 3) + 6)
    transcendentals = N * S * (C + 1)               # exp per class + log
    bytes_accessed = (x_t.size + N * C * S) * elt + (a_flat.size + 2 * H) * 4

    out = pl.pallas_call(
        kernel,
        grid=grid,
        in_specs=[
            pl.BlockSpec(memory_space=pltpu.MemorySpace.SMEM),    # a_flat
            pl.BlockSpec(memory_space=pltpu.MemorySpace.SMEM),    # b
            pl.BlockSpec(memory_space=pltpu.MemorySpace.SMEM),    # w2
            pl.BlockSpec((1, M, C, tile), lambda n, i: (n, 0, 0, i)),
        ],
        out_specs=pl.BlockSpec((1, C, tile), lambda n, i: (n, 0, i)),
        out_shape=jax.ShapeDtypeStruct((N, C, S), x.dtype),
        compiler_params=pltpu.CompilerParams(
            dimension_semantics=("parallel", "parallel"),
            vmem_limit_bytes=48 * 1024 * 1024),
        cost_estimate=pl.CostEstimate(flops=flops,
                                      transcendentals=transcendentals,
                                      bytes_accessed=bytes_accessed),
    )(a_flat, b, w2f, x_t)

    return jnp.reshape(out, (N, C) + spatial)


class MetricRegressionPallas:
    """Pallas equivalent of the PyTorch MetricRegression module (forward only)."""

    def __init__(self, nbr_metrics, dim=3, *, key):
        # TODO(synk): ConvBlock is not defined in the provided source; assumed
        # Conv{dim}d(kernel=1, bias=False) -> BatchNorm{dim}d -> ReLU.
        self.nbr_metrics = nbr_metrics
        self.dim = dim
        self.eps = 1e-5
        h = 2 * nbr_metrics
        k1, k2, k3, k4, k5, k6 = jax.random.split(key, 6)
        self.params = {
            # conv1: (out=2M, in=M), 1x1x1 kernel, no bias.
            "w1": jax.random.normal(k1, (h, nbr_metrics), jnp.float32)
                  / math.sqrt(nbr_metrics),
            # BatchNorm parameters + running statistics (inference mode).
            "gamma": 1.0 + 0.1 * jax.random.normal(k2, (h,), jnp.float32),
            "beta": 0.1 * jax.random.normal(k3, (h,), jnp.float32),
            "running_mean": 0.1 * jax.random.normal(k4, (h,), jnp.float32),
            "running_var": jax.random.uniform(k5, (h,), jnp.float32, 0.5, 1.5),
            # conv2: (out=1, in=2M), 1x1x1 kernel, no bias.
            "w2": jax.random.normal(k6, (h,), jnp.float32) / math.sqrt(h),
        }

    def forward(self, x):
        # TODO(synk): training-mode BatchNorm (batch statistics) is not
        # implemented; inference-mode running stats are folded into conv1.
        p = self.params
        return metric_regression_forward(
            x, p["w1"], p["gamma"], p["beta"], p["running_mean"],
            p["running_var"], p["w2"], eps=self.eps)


def metric_regression_reference(x, w1, gamma, beta, run_mean, run_var, w2,
                                eps=1e-5):
    """Pure-JAX reference of the same forward pass (for correctness check)."""
    N, C = x.shape[0], x.shape[1]
    spatial = tuple(x.shape[3:])
    xf = x.astype(jnp.float32).reshape(N, C, x.shape[2], -1)   # (N, C, M, S)
    h = jnp.einsum("ncms,jm->ncjs", xf, w1)                    # conv1 (1x1)
    s = gamma / jnp.sqrt(run_var + eps)
    h = s[None, None, :, None] * (h - run_mean[None, None, :, None]) \
        + beta[None, None, :, None]
    h = jnp.maximum(h, 0.0)                                    # ReLU
    logits = jnp.einsum("ncjs,j->ncs", h, w2)                  # conv2 (1x1)
    out = jax.nn.log_softmax(logits, axis=1)
    return out.reshape((N, C) + spatial)


if __name__ == "__main__":
    key = jax.random.PRNGKey(0)
    k_x, k_p = jax.random.split(key)

    nbr_metrics = 3
    n_batch, n_classes = 2, 4
    spatial = (16, 16, 16)                          # dim=3 -> Conv3d case
    x = jax.random.normal(
        k_x, (n_batch, n_classes, nbr_metrics) + spatial, jnp.float32)

    model = MetricRegressionPallas(nbr_metrics, dim=3, key=k_p)
    out = model.forward(x)
    jax.block_until_ready(out)

    assert out.shape == (n_batch, n_classes) + spatial
    assert out.dtype == x.dtype
    assert bool(jnp.isfinite(out).all())
    # log_softmax over the class axis must exponentiate-sum to 1.
    prob_sum = jnp.exp(out).sum(axis=1)
    assert bool(jnp.allclose(prob_sum, 1.0, atol=1e-4))

    p = model.params
    ref = metric_regression_reference(x, p["w1"], p["gamma"], p["beta"],
                                      p["running_mean"], p["running_var"],
                                      p["w2"], eps=model.eps)
    assert bool(jnp.allclose(out, ref, atol=1e-4, rtol=1e-4))

    print("KERNEL_OK")
</pallas_src>

<mosaic_0001>
module attributes {stable_mosaic.version = 11 : i64} {
  func.func @_metric_regression_kernel(%arg0: i32, %arg1: i32, %arg2: memref<18xf32, #tpu.memory_space<smem>>, %arg3: memref<6xf32, #tpu.memory_space<smem>>, %arg4: memref<6xf32, #tpu.memory_space<smem>>, %arg5: memref<1x3x4x4096xf32, #tpu.memory_space<vmem>>, %arg6: memref<1x4x4096xf32, #tpu.memory_space<vmem>>) attributes {dimension_semantics = [#tpu.dimension_semantics<parallel>, #tpu.dimension_semantics<parallel>], iteration_bounds = array<i64: 2, 1>, scalar_prefetch = 0 : i64, scratch_operands = 0 : i64, tpu.core_type = #tpu.core_type<tc>, window_params = [{transform_indices = @transform_0, window_bounds = array<i64: 18>}, {transform_indices = @transform_1, window_bounds = array<i64: 6>}, {transform_indices = @transform_2, window_bounds = array<i64: 6>}, {transform_indices = @transform_3, window_bounds = array<i64: 1, 3, 4, 4096>}, {transform_indices = @transform_4, window_bounds = array<i64: 1, 4, 4096>}]} {
    %c0_i32 = arith.constant 0 : i32
    %c512_i32 = arith.constant 512 : i32
    %0 = arith.muli %c0_i32, %c512_i32 : i32
    %1 = tpu.assume_multiple %0, 512 : i32
    %c0 = arith.constant 0 : index
    %c0_0 = arith.constant 0 : index
    %c0_1 = arith.constant 0 : index
    %2 = arith.index_cast %1 : i32 to index
    %3 = vector.load %arg5[%c0, %c0_0, %c0_1, %2] : memref<1x3x4x4096xf32, #tpu.memory_space<vmem>>, vector<1x1x4x512xf32>
    %4 = vector.shape_cast %3 : vector<1x1x4x512xf32> to vector<4x512xf32>
    %c0_2 = arith.constant 0 : index
    %c1 = arith.constant 1 : index
    %c0_3 = arith.constant 0 : index
    %5 = arith.index_cast %1 : i32 to index
    %6 = vector.load %arg5[%c0_2, %c1, %c0_3, %5] : memref<1x3x4x4096xf32, #tpu.memory_space<vmem>>, vector<1x1x4x512xf32>
    %7 = vector.shape_cast %6 : vector<1x1x4x512xf32> to vector<4x512xf32>
    %c0_4 = arith.constant 0 : index
    %c2 = arith.constant 2 : index
    %c0_5 = arith.constant 0 : index
    %8 = arith.index_cast %1 : i32 to index
    %9 = vector.load %arg5[%c0_4, %c2, %c0_5, %8] : memref<1x3x4x4096xf32, #tpu.memory_space<vmem>>, vector<1x1x4x512xf32>
    %10 = vector.shape_cast %9 : vector<1x1x4x512xf32> to vector<4x512xf32>
    %c0_6 = arith.constant 0 : index
    %11 = memref.load %arg2[%c0_6] : memref<18xf32, #tpu.memory_space<smem>>
    %12 = vector.broadcast %11 : f32 to vector<4x512xf32>
    %13 = arith.mulf %12, %4 : vector<4x512xf32>
    %c6 = arith.constant 6 : index
    %14 = memref.load %arg2[%c6] : memref<18xf32, #tpu.memory_space<smem>>
    %15 = vector.broadcast %14 : f32 to vector<4x512xf32>
    %16 = arith.mulf %15, %7 : vector<4x512xf32>
    %17 = arith.addf %13, %16 : vector<4x512xf32>
    %c12 = arith.constant 12 : index
    %18 = memref.load %arg2[%c12] : memref<18xf32, #tpu.memory_space<smem>>
    %19 = vector.broadcast %18 : f32 to vector<4x512xf32>
    %20 = arith.mulf %19, %10 : vector<4x512xf32>
    %21 = arith.addf %17, %20 : vector<4x512xf32>
    %c0_7 = arith.constant 0 : index
    %22 = memref.load %arg3[%c0_7] : memref<6xf32, #tpu.memory_space<smem>>
    %23 = vector.broadcast %22 : f32 to vector<4x512xf32>
    %24 = arith.addf %21, %23 : vector<4x512xf32>
    %cst = arith.constant 0.000000e+00 : f32
    %25 = vector.broadcast %cst : f32 to vector<4x512xf32>
    %26 = arith.maximumf %24, %25 : vector<4x512xf32>
    %c0_8 = arith.constant 0 : index
    %27 = memref.load %arg4[%c0_8] : memref<6xf32, #tpu.memory_space<smem>>
    %28 = vector.broadcast %27 : f32 to vector<4x512xf32>
    %29 = arith.mulf %28, %26 : vector<4x512xf32>
    %c1_9 = arith.constant 1 : index
    %30 = memref.load %arg2[%c1_9] : memref<18xf32, #tpu.memory_space<smem>>
    %31 = vector.broadcast %30 : f32 to vector<4x512xf32>
    %32 = arith.mulf %31, %4 : vector<4x512xf32>
    %c7 = arith.constant 7 : index
    %33 = memref.load %arg2[%c7] : memref<18xf32, #tpu.memory_space<smem>>
    %34 = vector.broadcast %33 : f32 to vector<4x512xf32>
    %35 = arith.mulf %34, %7 : vector<4x512xf32>
    %36 = arith.addf %32, %35 : vector<4x512xf32>
    %c13 = arith.constant 13 : index
    %37 = memref.load %arg2[%c13] : memref<18xf32, #tpu.memory_space<smem>>
    %38 = vector.broadcast %37 : f32 to vector<4x512xf32>
    %39 = arith.mulf %38, %10 : vector<4x512xf32>
    %40 = arith.addf %36, %39 : vector<4x512xf32>
    %c1_10 = arith.constant 1 : index
    %41 = memref.load %arg3[%c1_10] : memref<6xf32, #tpu.memory_space<smem>>
    %42 = vector.broadcast %41 : f32 to vector<4x512xf32>
    %43 = arith.addf %40, %42 : vector<4x512xf32>
    %cst_11 = arith.constant 0.000000e+00 : f32
    %44 = vector.broadcast %cst_11 : f32 to vector<4x512xf32>
    %45 = arith.maximumf %43, %44 : vector<4x512xf32>
    %c1_12 = arith.constant 1 : index
    %46 = memref.load %arg4[%c1_12] : memref<6xf32, #tpu.memory_space<smem>>
    %47 = vector.broadcast %46 : f32 to vector<4x512xf32>
    %48 = arith.mulf %47, %45 : vector<4x512xf32>
    %49 = arith.addf %29, %48 : vector<4x512xf32>
    %c2_13 = arith.constant 2 : index
    %50 = memref.load %arg2[%c2_13] : memref<18xf32, #tpu.memory_space<smem>>
    %51 = vector.broadcast %50 : f32 to vector<4x512xf32>
    %52 = arith.mulf %51, %4 : vector<4x512xf32>
    %c8 = arith.constant 8 : index
    %53 = memref.load %arg2[%c8] : memref<18xf32, #tpu.memory_space<smem>>
    %54 = vector.broadcast %53 : f32 to vector<4x512xf32>
    %55 = arith.mulf %54, %7 : vector<4x512xf32>
    %56 = arith.addf %52, %55 : vector<4x512xf32>
    %c14 = arith.constant 14 : index
    %57 = memref.load %arg2[%c14] : memref<18xf32, #tpu.memory_space<smem>>
    %58 = vector.broadcast %57 : f32 to vector<4x512xf32>
    %59 = arith.mulf %58, %10 : vector<4x512xf32>
    %60 = arith.addf %56, %59 : vector<4x512xf32>
    %c2_14 = arith.constant 2 : index
    %61 = memref.load %arg3[%c2_14] : memref<6xf32, #tpu.memory_space<smem>>
    %62 = vector.broadcast %61 : f32 to vector<4x512xf32>
    %63 = arith.addf %60, %62 : vector<4x512xf32>
    %cst_15 = arith.constant 0.000000e+00 : f32
    %64 = vector.broadcast %cst_15 : f32 to vector<4x512xf32>
    %65 = arith.maximumf %63, %64 : vector<4x512xf32>
    %c2_16 = arith.constant 2 : index
    %66 = memref.load %arg4[%c2_16] : memref<6xf32, #tpu.memory_space<smem>>
    %67 = vector.broadcast %66 : f32 to vector<4x512xf32>
    %68 = arith.mulf %67, %65 : vector<4x512xf32>
    %69 = arith.addf %49, %68 : vector<4x512xf32>
    %c3 = arith.constant 3 : index
    %70 = memref.load %arg2[%c3] : memref<18xf32, #tpu.memory_space<smem>>
    %71 = vector.broadcast %70 : f32 to vector<4x512xf32>
    %72 = arith.mulf %71, %4 : vector<4x512xf32>
    %c9 = arith.constant 9 : index
    %73 = memref.load %arg2[%c9] : memref<18xf32, #tpu.memory_space<smem>>
    %74 = vector.broadcast %73 : f32 to vector<4x512xf32>
    %75 = arith.mulf %74, %7 : vector<4x512xf32>
    %76 = arith.addf %72, %75 : vector<4x512xf32>
    %c15 = arith.constant 15 : index
    %77 = memref.load %arg2[%c15] : memref<18xf32, #tpu.memory_space<smem>>
    %78 = vector.broadcast %77 : f32 to vector<4x512xf32>
    %79 = arith.mulf %78, %10 : vector<4x512xf32>
    %80 = arith.addf %76, %79 : vector<4x512xf32>
    %c3_17 = arith.constant 3 : index
    %81 = memref.load %arg3[%c3_17] : memref<6xf32, #tpu.memory_space<smem>>
    %82 = vector.broadcast %81 : f32 to vector<4x512xf32>
    %83 = arith.addf %80, %82 : vector<4x512xf32>
    %cst_18 = arith.constant 0.000000e+00 : f32
    %84 = vector.broadcast %cst_18 : f32 to vector<4x512xf32>
    %85 = arith.maximumf %83, %84 : vector<4x512xf32>
    %c3_19 = arith.constant 3 : index
    %86 = memref.load %arg4[%c3_19] : memref<6xf32, #tpu.memory_space<smem>>
    %87 = vector.broadcast %86 : f32 to vector<4x512xf32>
    %88 = arith.mulf %87, %85 : vector<4x512xf32>
    %89 = arith.addf %69, %88 : vector<4x512xf32>
    %c4 = arith.constant 4 : index
    %90 = memref.load %arg2[%c4] : memref<18xf32, #tpu.memory_space<smem>>
    %91 = vector.broadcast %90 : f32 to vector<4x512xf32>
    %92 = arith.mulf %91, %4 : vector<4x512xf32>
    %c10 = arith.constant 10 : index
    %93 = memref.load %arg2[%c10] : memref<18xf32, #tpu.memory_space<smem>>
    %94 = vector.broadcast %93 : f32 to vector<4x512xf32>
    %95 = arith.mulf %94, %7 : vector<4x512xf32>
    %96 = arith.addf %92, %95 : vector<4x512xf32>
    %c16 = arith.constant 16 : index
    %97 = memref.load %arg2[%c16] : memref<18xf32, #tpu.memory_space<smem>>
    %98 = vector.broadcast %97 : f32 to vector<4x512xf32>
    %99 = arith.mulf %98, %10 : vector<4x512xf32>
    %100 = arith.addf %96, %99 : vector<4x512xf32>
    %c4_20 = arith.constant 4 : index
    %101 = memref.load %arg3[%c4_20] : memref<6xf32, #tpu.memory_space<smem>>
    %102 = vector.broadcast %101 : f32 to vector<4x512xf32>
    %103 = arith.addf %100, %102 : vector<4x512xf32>
    %cst_21 = arith.constant 0.000000e+00 : f32
    %104 = vector.broadcast %cst_21 : f32 to vector<4x512xf32>
    %105 = arith.maximumf %103, %104 : vector<4x512xf32>
    %c4_22 = arith.constant 4 : index
    %106 = memref.load %arg4[%c4_22] : memref<6xf32, #tpu.memory_space<smem>>
    %107 = vector.broadcast %106 : f32 to vector<4x512xf32>
    %108 = arith.mulf %107, %105 : vector<4x512xf32>
    %109 = arith.addf %89, %108 : vector<4x512xf32>
    %c5 = arith.constant 5 : index
    %110 = memref.load %arg2[%c5] : memref<18xf32, #tpu.memory_space<smem>>
    %111 = vector.broadcast %110 : f32 to vector<4x512xf32>
    %112 = arith.mulf %111, %4 : vector<4x512xf32>
    %c11 = arith.constant 11 : index
    %113 = memref.load %arg2[%c11] : memref<18xf32, #tpu.memory_space<smem>>
    %114 = vector.broadcast %113 : f32 to vector<4x512xf32>
    %115 = arith.mulf %114, %7 : vector<4x512xf32>
    %116 = arith.addf %112, %115 : vector<4x512xf32>
    %c17 = arith.constant 17 : index
    %117 = memref.load %arg2[%c17] : memref<18xf32, #tpu.memory_space<smem>>
    %118 = vector.broadcast %117 : f32 to vector<4x512xf32>
    %119 = arith.mulf %118, %10 : vector<4x512xf32>
    %120 = arith.addf %116, %119 : vector<4x512xf32>
    %c5_23 = arith.constant 5 : index
    %121 = memref.load %arg3[%c5_23] : memref<6xf32, #tpu.memory_space<smem>>
    %122 = vector.broadcast %121 : f32 to vector<4x512xf32>
    %123 = arith.addf %120, %122 : vector<4x512xf32>
    %cst_24 = arith.constant 0.000000e+00 : f32
    %124 = vector.broadcast %cst_24 : f32 to vector<4x512xf32>
    %125 = arith.maximumf %123, %124 : vector<4x512xf32>
    %c5_25 = arith.constant 5 : index
    %126 = memref.load %arg4[%c5_25] : memref<6xf32, #tpu.memory_space<smem>>
    %127 = vector.broadcast %126 : f32 to vector<4x512xf32>
    %128 = arith.mulf %127, %125 : vector<4x512xf32>
    %129 = arith.addf %109, %128 : vector<4x512xf32>
    %cst_26 = arith.constant dense<0xFF800000> : vector<512xf32>
    %130 = vector.multi_reduction <maximumf>, %129, %cst_26 [0] : vector<4x512xf32> to vector<512xf32>
    %131 = vector.shape_cast %130 : vector<512xf32> to vector<1x512xf32>
    %132 = vector.broadcast %131 : vector<1x512xf32> to vector<4x512xf32>
    %133 = arith.subf %129, %132 : vector<4x512xf32>
    %134 = math.exp %133 : vector<4x512xf32>
    %cst_27 = arith.constant dense<0.000000e+00> : vector<512xf32>
    %135 = vector.multi_reduction <add>, %134, %cst_27 [0] : vector<4x512xf32> to vector<512xf32>
    %136 = vector.shape_cast %135 : vector<512xf32> to vector<1x512xf32>
    %137 = math.log %136 : vector<1x512xf32>
    %138 = vector.broadcast %137 : vector<1x512xf32> to vector<4x512xf32>
    %139 = arith.subf %133, %138 : vector<4x512xf32>
    %c0_28 = arith.constant 0 : index
    %c0_29 = arith.constant 0 : index
    %140 = arith.index_cast %1 : i32 to index
    %141 = vector.load %arg6[%c0_28, %c0_29, %140] : memref<1x4x4096xf32, #tpu.memory_space<vmem>>, vector<1x4x512xf32>
    %142 = vector.shape_cast %141 : vector<1x4x512xf32> to vector<4x512xf32>
    %143 = vector.shape_cast %139 : vector<4x512xf32> to vector<1x4x512xf32>
    tpu.vector_store %arg6[%c0_28, %c0_29, %140], %143 {strides = array<i32>} : memref<1x4x4096xf32, #tpu.memory_space<vmem>>, vector<1x4x512xf32>,
    %c1_i32 = arith.constant 1 : i32
    %c512_i32_30 = arith.constant 512 : i32
    %144 = arith.muli %c1_i32, %c512_i32_30 : i32
    %145 = tpu.assume_multiple %144, 512 : i32
    %c0_31 = arith.constant 0 : index
    %c0_32 = arith.constant 0 : index
    %c0_33 = arith.constant 0 : index
    %146 = arith.index_cast %145 : i32 to index
    %147 = vector.load %arg5[%c0_31, %c0_32, %c0_33, %146] : memref<1x3x4x4096xf32, #tpu.memory_space<vmem>>, vector<1x1x4x512xf32>
    %148 = vector.shape_cast %147 : vector<1x1x4x512xf32> to vector<4x512xf32>
    %c0_34 = arith.constant 0 : index
    %c1_35 = arith.constant 1 : index
    %c0_36 = arith.constant 0 : index
    %149 = arith.index_cast %145 : i32 to index
    %150 = vector.load %arg5[%c0_34, %c1_35, %c0_36, %149] : memref<1x3x4x4096xf32, #tpu.memory_space<vmem>>, vector<1x1x4x512xf32>
    %151 = vector.shape_cast %150 : vector<1x1x4x512xf32> to vector<4x512xf32>
    %c0_37 = arith.constant 0 : index
    %c2_38 = arith.constant 2 : index
    %c0_39 = arith.constant 0 : index
    %152 = arith.index_cast %145 : i32 to index
    %153 = vector.load %arg5[%c0_37, %c2_38, %c0_39, %152] : memref<1x3x4x4096xf32, #tpu.memory_space<vmem>>, vector<1x1x4x512xf32>
    %154 = vector.shape_cast %153 : vector<1x1x4x512xf32> to vector<4x512xf32>
    %c0_40 = arith.constant 0 : index
    %155 = memref.load %arg2[%c0_40] : memref<18xf32, #tpu.memory_space<smem>>
    %156 = vector.broadcast %155 : f32 to vector<4x512xf32>
    %157 = arith.mulf %156, %148 : vector<4x512xf32>
    %c6_41 = arith.constant 6 : index
    %158 = memref.load %arg2[%c6_41] : memref<18xf32, #tpu.memory_space<smem>>
    %159 = vector.broadcast %158 : f32 to vector<4x512xf32>
    %160 = arith.mulf %159, %151 : vector<4x512xf32>
    %161 = arith.addf %157, %160 : vector<4x512xf32>
    %c12_42 = arith.constant 12 : index
    %162 = memref.load %arg2[%c12_42] : memref<18xf32, #tpu.memory_space<smem>>
    %163 = vector.broadcast %162 : f32 to vector<4x512xf32>
    %164 = arith.mulf %163, %154 : vector<4x512xf32>
    %165 = arith.addf %161, %164 : vector<4x512xf32>
    %c0_43 = arith.constant 0 : index
    %166 = memref.load %arg3[%c0_43] : memref<6xf32, #tpu.memory_space<smem>>
    %167 = vector.broadcast %166 : f32 to vector<4x512xf32>
    %168 = arith.addf %165, %167 : vector<4x512xf32>
    %cst_44 = arith.constant 0.000000e+00 : f32
    %169 = vector.broadcast %cst_44 : f32 to vector<4x512xf32>
    %170 = arith.maximumf %168, %169 : vector<4x512xf32>
    %c0_45 = arith.constant 0 : index
    %171 = memref.load %arg4[%c0_45] : memref<6xf32, #tpu.memory_space<smem>>
    %172 = vector.broadcast %171 : f32 to vector<4x512xf32>
    %173 = arith.mulf %172, %170 : vector<4x512xf32>
    %c1_46 = arith.constant 1 : index
    %174 = memref.load %arg2[%c1_46] : memref<18xf32, #tpu.memory_space<smem>>
    %175 = vector.broadcast %174 : f32 to vector<4x512xf32>
    %176 = arith.mulf %175, %148 : vector<4x512xf32>
    %c7_47 = arith.constant 7 : index
    %177 = memref.load %arg2[%c7_47] : memref<18xf32, #tpu.memory_space<smem>>
    %178 = vector.broadcast %177 : f32 to vector<4x512xf32>
    %179 = arith.mulf %178, %151 : vector<4x512xf32>
    %180 = arith.addf %176, %179 : vector<4x512xf32>
    %c13_48 = arith.constant 13 : index
    %181 = memref.load %arg2[%c13_48] : memref<18xf32, #tpu.memory_space<smem>>
    %182 = vector.broadcast %181 : f32 to vector<4x512xf32>
    %183 = arith.mulf %182, %154 : vector<4x512xf32>
    %184 = arith.addf %180, %183 : vector<4x512xf32>
    %c1_49 = arith.constant 1 : index
    %185 = memref.load %arg3[%c1_49] : memref<6xf32, #tpu.memory_space<smem>>
    %186 = vector.broadcast %185 : f32 to vector<4x512xf32>
    %187 = arith.addf %184, %186 : vector<4x512xf32>
    %cst_50 = arith.constant 0.000000e+00 : f32
    %188 = vector.broadcast %cst_50 : f32 to vector<4x512xf32>
    %189 = arith.maximumf %187, %188 : vector<4x512xf32>
    %c1_51 = arith.constant 1 : index
    %190 = memref.load %arg4[%c1_51] : memref<6xf32, #tpu.memory_space<smem>>
    %191 = vector.broadcast %190 : f32 to vector<4x512xf32>
    %192 = arith.mulf %191, %189 : vector<4x512xf32>
    %193 = arith.addf %173, %192 : vector<4x512xf32>
    %c2_52 = arith.constant 2 : index
    %194 = memref.load %arg2[%c2_52] : memref<18xf32, #tpu.memory_space<smem>>
    %195 = vector.broadcast %194 : f32 to vector<4x512xf32>
    %196 = arith.mulf %195, %148 : vector<4x512xf32>
    %c8_53 = arith.constant 8 : index
    %197 = memref.load %arg2[%c8_53] : memref<18xf32, #tpu.memory_space<smem>>
    %198 = vector.broadcast %197 : f32 to vector<4x512xf32>
    %199 = arith.mulf %198, %151 : vector<4x512xf32>
    %200 = arith.addf %196, %199 : vector<4x512xf32>
    %c14_54 = arith.constant 14 : index
    %201 = memref.load %arg2[%c14_54] : memref<18xf32, #tpu.memory_space<smem>>
    %202 = vector.broadcast %201 : f32 to vector<4x512xf32>
    %203 = arith.mulf %202, %154 : vector<4x512xf32>
    %204 = arith.addf %200, %203 : vector<4x512xf32>
    %c2_55 = arith.constant 2 : index
    %205 = memref.load %arg3[%c2_55] : memref<6xf32, #tpu.memory_space<smem>>
    %206 = vector.broadcast %205 : f32 to vector<4x512xf32>
    %207 = arith.addf %204, %206 : vector<4x512xf32>
    %cst_56 = arith.constant 0.000000e+00 : f32
    %208 = vector.broadcast %cst_56 : f32 to vector<4x512xf32>
    %209 = arith.maximumf %207, %208 : vector<4x512xf32>
    %c2_57 = arith.constant 2 : index
    %210 = memref.load %arg4[%c2_57] : memref<6xf32, #tpu.memory_space<smem>>
    %211 = vector.broadcast %210 : f32 to vector<4x512xf32>
    %212 = arith.mulf %211, %209 : vector<4x512xf32>
    %213 = arith.addf %193, %212 : vector<4x512xf32>
    %c3_58 = arith.constant 3 : index
    %214 = memref.load %arg2[%c3_58] : memref<18xf32, #tpu.memory_space<smem>>
    %215 = vector.broadcast %214 : f32 to vector<4x512xf32>
    %216 = arith.mulf %215, %148 : vector<4x512xf32>
    %c9_59 = arith.constant 9 : index
    %217 = memref.load %arg2[%c9_59] : memref<18xf32, #tpu.memory_space<smem>>
    %218 = vector.broadcast %217 : f32 to vector<4x512xf32>
    %219 = arith.mulf %218, %151 : vector<4x512xf32>
    %220 = arith.addf %216, %219 : vector<4x512xf32>
    %c15_60 = arith.constant 15 : index
    %221 = memref.load %arg2[%c15_60] : memref<18xf32, #tpu.memory_space<smem>>
    %222 = vector.broadcast %221 : f32 to vector<4x512xf32>
    %223 = arith.mulf %222, %154 : vector<4x512xf32>
    %224 = arith.addf %220, %223 : vector<4x512xf32>
    %c3_61 = arith.constant 3 : index
    %225 = memref.load %arg3[%c3_61] : memref<6xf32, #tpu.memory_space<smem>>
    %226 = vector.broadcast %225 : f32 to vector<4x512xf32>
    %227 = arith.addf %224, %226 : vector<4x512xf32>
    %cst_62 = arith.constant 0.000000e+00 : f32
    %228 = vector.broadcast %cst_62 : f32 to vector<4x512xf32>
    %229 = arith.maximumf %227, %228 : vector<4x512xf32>
    %c3_63 = arith.constant 3 : index
    %230 = memref.load %arg4[%c3_63] : memref<6xf32, #tpu.memory_space<smem>>
    %231 = vector.broadcast %230 : f32 to vector<4x512xf32>
    %232 = arith.mulf %231, %229 : vector<4x512xf32>
    %233 = arith.addf %213, %232 : vector<4x512xf32>
    %c4_64 = arith.constant 4 : index
    %234 = memref.load %arg2[%c4_64] : memref<18xf32, #tpu.memory_space<smem>>
    %235 = vector.broadcast %234 : f32 to vector<4x512xf32>
    %236 = arith.mulf %235, %148 : vector<4x512xf32>
    %c10_65 = arith.constant 10 : index
    %237 = memref.load %arg2[%c10_65] : memref<18xf32, #tpu.memory_space<smem>>
    %238 = vector.broadcast %237 : f32 to vector<4x512xf32>
    %239 = arith.mulf %238, %151 : vector<4x512xf32>
    %240 = arith.addf %236, %239 : vector<4x512xf32>
    %c16_66 = arith.constant 16 : index
    %241 = memref.load %arg2[%c16_66] : memref<18xf32, #tpu.memory_space<smem>>
    %242 = vector.broadcast %241 : f32 to vector<4x512xf32>
    %243 = arith.mulf %242, %154 : vector<4x512xf32>
    %244 = arith.addf %240, %243 : vector<4x512xf32>
    %c4_67 = arith.constant 4 : index
    %245 = memref.load %arg3[%c4_67] : memref<6xf32, #tpu.memory_space<smem>>
    %246 = vector.broadcast %245 : f32 to vector<4x512xf32>
    %247 = arith.addf %244, %246 : vector<4x512xf32>
    %cst_68 = arith.constant 0.000000e+00 : f32
    %248 = vector.broadcast %cst_68 : f32 to vector<4x512xf32>
    %249 = arith.maximumf %247, %248 : vector<4x512xf32>
    %c4_69 = arith.constant 4 : index
    %250 = memref.load %arg4[%c4_69] : memref<6xf32, #tpu.memory_space<smem>>
    %251 = vector.broadcast %250 : f32 to vector<4x512xf32>
    %252 = arith.mulf %251, %249 : vector<4x512xf32>
    %253 = arith.addf %233, %252 : vector<4x512xf32>
    %c5_70 = arith.constant 5 : index
    %254 = memref.load %arg2[%c5_70] : memref<18xf32, #tpu.memory_space<smem>>
    %255 = vector.broadcast %254 : f32 to vector<4x512xf32>
    %256 = arith.mulf %255, %148 : vector<4x512xf32>
    %c11_71 = arith.constant 11 : index
    %257 = memref.load %arg2[%c11_71] : memref<18xf32, #tpu.memory_space<smem>>
    %258 = vector.broadcast %257 : f32 to vector<4x512xf32>
    %259 = arith.mulf %258, %151 : vector<4x512xf32>
    %260 = arith.addf %256, %259 : vector<4x512xf32>
    %c17_72 = arith.constant 17 : index
    %261 = memref.load %arg2[%c17_72] : memref<18xf32, #tpu.memory_space<smem>>
    %262 = vector.broadcast %261 : f32 to vector<4x512xf32>
    %263 = arith.mulf %262, %154 : vector<4x512xf32>
    %264 = arith.addf %260, %263 : vector<4x512xf32>
    %c5_73 = arith.constant 5 : index
    %265 = memref.load %arg3[%c5_73] : memref<6xf32, #tpu.memory_space<smem>>
    %266 = vector.broadcast %265 : f32 to vector<4x512xf32>
    %267 = arith.addf %264, %266 : vector<4x512xf32>
    %cst_74 = arith.constant 0.000000e+00 : f32
    %268 = vector.broadcast %cst_74 : f32 to vector<4x512xf32>
    %269 = arith.maximumf %267, %268 : vector<4x512xf32>
    %c5_75 = arith.constant 5 : index
    %270 = memref.load %arg4[%c5_75] : memref<6xf32, #tpu.memory_space<smem>>
    %271 = vector.broadcast %270 : f32 to vector<4x512xf32>
    %272 = arith.mulf %271, %269 : vector<4x512xf32>
    %273 = arith.addf %253, %272 : vector<4x512xf32>
    %cst_76 = arith.constant dense<0xFF800000> : vector<512xf32>
    %274 = vector.multi_reduction <maximumf>, %273, %cst_76 [0] : vector<4x512xf32> to vector<512xf32>
    %275 = vector.shape_cast %274 : vector<512xf32> to vector<1x512xf32>
    %276 = vector.broadcast %275 : vector<1x512xf32> to vector<4x512xf32>
    %277 = arith.subf %273, %276 : vector<4x512xf32>
    %278 = math.exp %277 : vector<4x512xf32>
    %cst_77 = arith.constant dense<0.000000e+00> : vector<512xf32>
    %279 = vector.multi_reduction <add>, %278, %cst_77 [0] : vector<4x512xf32> to vector<512xf32>
    %280 = vector.shape_cast %279 : vector<512xf32> to vector<1x512xf32>
    %281 = math.log %280 : vector<1x512xf32>
    %282 = vector.broadcast %281 : vector<1x512xf32> to vector<4x512xf32>
    %283 = arith.subf %277, %282 : vector<4x512xf32>
    %c0_78 = arith.constant 0 : index
    %c0_79 = arith.constant 0 : index
    %284 = arith.index_cast %145 : i32 to index
    %285 = vector.load %arg6[%c0_78, %c0_79, %284] : memref<1x4x4096xf32, #tpu.memory_space<vmem>>, vector<1x4x512xf32>
    %286 = vector.shape_cast %285 : vector<1x4x512xf32> to vector<4x512xf32>
    %287 = vector.shape_cast %283 : vector<4x512xf32> to vector<1x4x512xf32>
    tpu.vector_store %arg6[%c0_78, %c0_79, %284], %287 {strides = array<i32>} : memref<1x4x4096xf32, #tpu.memory_space<vmem>>, vector<1x4x512xf32>,
    %c2_i32 = arith.constant 2 : i32
    %c512_i32_80 = arith.constant 512 : i32
    %288 = arith.muli %c2_i32, %c512_i32_80 : i32
    %289 = tpu.assume_multiple %288, 512 : i32
    %c0_81 = arith.constant 0 : index
    %c0_82 = arith.constant 0 : index
    %c0_83 = arith.constant 0 : index
    %290 = arith.index_cast %289 : i32 to index
    %291 = vector.load %arg5[%c0_81, %c0_82, %c0_83, %290] : memref<1x3x4x4096xf32, #tpu.memory_space<vmem>>, vector<1x1x4x512xf32>
    %292 = vector.shape_cast %291 : vector<1x1x4x512xf32> to vector<4x512xf32>
    %c0_84 = arith.constant 0 : index
    %c1_85 = arith.constant 1 : index
    %c0_86 = arith.constant 0 : index
    %293 = arith.index_cast %289 : i32 to index
    %294 = vector.load %arg5[%c0_84, %c1_85, %c0_86, %293] : memref<1x3x4x4096xf32, #tpu.memory_space<vmem>>, vector<1x1x4x512xf32>
    %295 = vector.shape_cast %294 : vector<1x1x4x512xf32> to vector<4x512xf32>
    %c0_87 = arith.constant 0 : index
    %c2_88 = arith.constant 2 : index
    %c0_89 = arith.constant 0 : index
    %296 = arith.index_cast %289 : i32 to index
    %297 = vector.load %arg5[%c0_87, %c2_88, %c0_89, %296] : memref<1x3x4x4096xf32, #tpu.memory_space<vmem>>, vector<1x1x4x512xf32>
    %298 = vector.shape_cast %297 : vector<1x1x4x512xf32> to vector<4x512xf32>
    %c0_90 = arith.constant 0 : index
    %299 = memref.load %arg2[%c0_90] : memref<18xf32, #tpu.memory_space<smem>>
    %300 = vector.broadcast %299 : f32 to vector<4x512xf32>
    %301 = arith.mulf %300, %292 : vector<4x512xf32>
    %c6_91 = arith.constant 6 : index
    %302 = memref.load %arg2[%c6_91] : memref<18xf32, #tpu.memory_space<smem>>
    %303 = vector.broadcast %302 : f32 to vector<4x512xf32>
    %304 = arith.mulf %303, %295 : vector<4x512xf32>
    %305 = arith.addf %301, %304 : vector<4x512xf32>
    %c12_92 = arith.constant 12 : index
    %306 = memref.load %arg2[%c12_92] : memref<18xf32, #tpu.memory_space<smem>>
    %307 = vector.broadcast %306 : f32 to vector<4x512xf32>
    %308 = arith.mulf %307, %298 : vector<4x512xf32>
    %309 = arith.addf %305, %308 : vector<4x512xf32>
    %c0_93 = arith.constant 0 : index
    %310 = memref.load %arg3[%c0_93] : memref<6xf32, #tpu.memory_space<smem>>
    %311 = vector.broadcast %310 : f32 to vector<4x512xf32>
    %312 = arith.addf %309, %311 : vector<4x512xf32>
    %cst_94 = arith.constant 0.000000e+00 : f32
    %313 = vector.broadcast %cst_94 : f32 to vector<4x512xf32>
    %314 = arith.maximumf %312, %313 : vector<4x512xf32>
    %c0_95 = arith.constant 0 : index
    %315 = memref.load %arg4[%c0_95] : memref<6xf32, #tpu.memory_space<smem>>
    %316 = vector.broadcast %315 : f32 to vector<4x512xf32>
    %317 = arith.mulf %316, %314 : vector<4x512xf32>
    %c1_96 = arith.constant 1 : index
    %318 = memref.load %arg2[%c1_96] : memref<18xf32, #tpu.memory_space<smem>>
    %319 = vector.broadcast %318 : f32 to vector<4x512xf32>
    %320 = arith.mulf %319, %292 : vector<4x512xf32>
    %c7_97 = arith.constant 7 : index
    %321 = memref.load %arg2[%c7_97] : memref<18xf32, #tpu.memory_space<smem>>
    %322 = vector.broadcast %321 : f32 to vector<4x512xf32>
    %323 = arith.mulf %322, %295 : vector<4x512xf32>
    %324 = arith.addf %320, %323 : vector<4x512xf32>
    %c13_98 = arith.constant 13 : index
    %325 = memref.load %arg2[%c13_98] : memref<18xf32, #tpu.memory_space<smem>>
    %326 = vector.broadcast %325 : f32 to vector<4x512xf32>
    %327 = arith.mulf %326, %298 : vector<4x512xf32>
    %328 = arith.addf %324, %327 : vector<4x512xf32>
    %c1_99 = arith.constant 1 : index
    %329 = memref.load %arg3[%c1_99] : memref<6xf32, #tpu.memory_space<smem>>
    %330 = vector.broadcast %329 : f32 to vector<4x512xf32>
    %331 = arith.addf %328, %330 : vector<4x512xf32>
    %cst_100 = arith.constant 0.000000e+00 : f32
    %332 = vector.broadcast %cst_100 : f32 to vector<4x512xf32>
    %333 = arith.maximumf %331, %332 : vector<4x512xf32>
    %c1_101 = arith.constant 1 : index
    %334 = memref.load %arg4[%c1_101] : memref<6xf32, #tpu.memory_space<smem>>
    %335 = vector.broadcast %334 : f32 to vector<4x512xf32>
    %336 = arith.mulf %335, %333 : vector<4x512xf32>
    %337 = arith.addf %317, %336 : vector<4x512xf32>
    %c2_102 = arith.constant 2 : index
    %338 = memref.load %arg2[%c2_102] : memref<18xf32, #tpu.memory_space<smem>>
    %339 = vector.broadcast %338 : f32 to vector<4x512xf32>
    %340 = arith.mulf %339, %292 : vector<4x512xf32>
    %c8_103 = arith.constant 8 : index
    %341 = memref.load %arg2[%c8_103] : memref<18xf32, #tpu.memory_space<smem>>
    %342 = vector.broadcast %341 : f32 to vector<4x512xf32>
    %343 = arith.mulf %342, %295 : vector<4x512xf32>
    %344 = arith.addf %340, %343 : vector<4x512xf32>
    %c14_104 = arith.constant 14 : index
    %345 = memref.load %arg2[%c14_104] : memref<18xf32, #tpu.memory_space<smem>>
    %346 = vector.broadcast %345 : f32 to vector<4x512xf32>
    %347 = arith.mulf %346, %298 : vector<4x512xf32>
    %348 = arith.addf %344, %347 : vector<4x512xf32>
    %c2_105 = arith.constant 2 : index
    %349 = memref.load %arg3[%c2_105] : memref<6xf32, #tpu.memory_space<smem>>
    %350 = vector.broadcast %349 : f32 to vector<4x512xf32>
    %351 = arith.addf %348, %350 : vector<4x512xf32>
    %cst_106 = arith.constant 0.000000e+00 : f32
    %352 = vector.broadcast %cst_106 : f32 to vector<4x512xf32>
    %353 = arith.maximumf %351, %352 : vector<4x512xf32>
    %c2_107 = arith.constant 2 : index
    %354 = memref.load %arg4[%c2_107] : memref<6xf32, #tpu.memory_space<smem>>
    %355 = vector.broadcast %354 : f32 to vector<4x512xf32>
    %356 = arith.mulf %355, %353 : vector<4x512xf32>
    %357 = arith.addf %337, %356 : vector<4x512xf32>
    %c3_108 = arith.constant 3 : index
    %358 = memref.load %arg2[%c3_108] : memref<18xf32, #tpu.memory_space<smem>>
    %359 = vector.broadcast %358 : f32 to vector<4x512xf32>
    %360 = arith.mulf %359, %292 : vector<4x512xf32>
    %c9_109 = arith.constant 9 : index
    %361 = memref.load %arg2[%c9_109] : memref<18xf32, #tpu.memory_space<smem>>
    %362 = vector.broadcast %361 : f32 to vector<4x512xf32>
    %363 = arith.mulf %362, %295 : vector<4x512xf32>
    %364 = arith.addf %360, %363 : vector<4x512xf32>
    %c15_110 = arith.constant 15 : index
    %365 = memref.load %arg2[%c15_110] : memref<18xf32, #tpu.memory_space<smem>>
    %366 = vector.broadcast %365 : f32 to vector<4x512xf32>
    %367 = arith.mulf %366, %298 : vector<4x512xf32>
    %368 = arith.addf %364, %367 : vector<4x512xf32>
    %c3_111 = arith.constant 3 : index
    %369 = memref.load %arg3[%c3_111] : memref<6xf32, #tpu.memory_space<smem>>
    %370 = vector.broadcast %369 : f32 to vector<4x512xf32>
    %371 = arith.addf %368, %370 : vector<4x512xf32>
    %cst_112 = arith.constant 0.000000e+00 : f32
    %372 = vector.broadcast %cst_112 : f32 to vector<4x512xf32>
    %373 = arith.maximumf %371, %372 : vector<4x512xf32>
    %c3_113 = arith.constant 3 : index
    %374 = memref.load %arg4[%c3_113] : memref<6xf32, #tpu.memory_space<smem>>
    %375 = vector.broadcast %374 : f32 to vector<4x512xf32>
    %376 = arith.mulf %375, %373 : vector<4x512xf32>
    %377 = arith.addf %357, %376 : vector<4x512xf32>
    %c4_114 = arith.constant 4 : index
    %378 = memref.load %arg2[%c4_114] : memref<18xf32, #tpu.memory_space<smem>>
    %379 = vector.broadcast %378 : f32 to vector<4x512xf32>
    %380 = arith.mulf %379, %292 : vector<4x512xf32>
    %c10_115 = arith.constant 10 : index
    %381 = memref.load %arg2[%c10_115] : memref<18xf32, #tpu.memory_space<smem>>
    %382 = vector.broadcast %381 : f32 to vector<4x512xf32>
    %383 = arith.mulf %382, %295 : vector<4x512xf32>
    %384 = arith.addf %380, %383 : vector<4x512xf32>
    %c16_116 = arith.constant 16 : index
    %385 = memref.load %arg2[%c16_116] : memref<18xf32, #tpu.memory_space<smem>>
    %386 = vector.broadcast %385 : f32 to vector<4x512xf32>
    %387 = arith.mulf %386, %298 : vector<4x512xf32>
    %388 = arith.addf %384, %387 : vector<4x512xf32>
    %c4_117 = arith.constant 4 : index
    %389 = memref.load %arg3[%c4_117] : memref<6xf32, #tpu.memory_space<smem>>
    %390 = vector.broadcast %389 : f32 to vector<4x512xf32>
    %391 = arith.addf %388, %390 : vector<4x512xf32>
    %cst_118 = arith.constant 0.000000e+00 : f32
    %392 = vector.broadcast %cst_118 : f32 to vector<4x512xf32>
    %393 = arith.maximumf %391, %392 : vector<4x512xf32>
    %c4_119 = arith.constant 4 : index
    %394 = memref.load %arg4[%c4_119] : memref<6xf32, #tpu.memory_space<smem>>
    %395 = vector.broadcast %394 : f32 to vector<4x512xf32>
    %396 = arith.mulf %395, %393 : vector<4x512xf32>
    %397 = arith.addf %377, %396 : vector<4x512xf32>
    %c5_120 = arith.constant 5 : index
    %398 = memref.load %arg2[%c5_120] : memref<18xf32, #tpu.memory_space<smem>>
    %399 = vector.broadcast %398 : f32 to vector<4x512xf32>
    %400 = arith.mulf %399, %292 : vector<4x512xf32>
    %c11_121 = arith.constant 11 : index
    %401 = memref.load %arg2[%c11_121] : memref<18xf32, #tpu.memory_space<smem>>
    %402 = vector.broadcast %401 : f32 to vector<4x512xf32>
    %403 = arith.mulf %402, %295 : vector<4x512xf32>
    %404 = arith.addf %400, %403 : vector<4x512xf32>
    %c17_122 = arith.constant 17 : index
    %405 = memref.load %arg2[%c17_122] : memref<18xf32, #tpu.memory_space<smem>>
    %406 = vector.broadcast %405 : f32 to vector<4x512xf32>
    %407 = arith.mulf %406, %298 : vector<4x512xf32>
    %408 = arith.addf %404, %407 : vector<4x512xf32>
    %c5_123 = arith.constant 5 : index
    %409 = memref.load %arg3[%c5_123] : memref<6xf32, #tpu.memory_space<smem>>
    %410 = vector.broadcast %409 : f32 to vector<4x512xf32>
    %411 = arith.addf %408, %410 : vector<4x512xf32>
    %cst_124 = arith.constant 0.000000e+00 : f32
    %412 = vector.broadcast %cst_124 : f32 to vector<4x512xf32>
    %413 = arith.maximumf %411, %412 : vector<4x512xf32>
    %c5_125 = arith.constant 5 : index
    %414 = memref.load %arg4[%c5_125] : memref<6xf32, #tpu.memory_space<smem>>
    %415 = vector.broadcast %414 : f32 to vector<4x512xf32>
    %416 = arith.mulf %415, %413 : vector<4x512xf32>
    %417 = arith.addf %397, %416 : vector<4x512xf32>
    %cst_126 = arith.constant dense<0xFF800000> : vector<512xf32>
    %418 = vector.multi_reduction <maximumf>, %417, %cst_126 [0] : vector<4x512xf32> to vector<512xf32>
    %419 = vector.shape_cast %418 : vector<512xf32> to vector<1x512xf32>
    %420 = vector.broadcast %419 : vector<1x512xf32> to vector<4x512xf32>
    %421 = arith.subf %417, %420 : vector<4x512xf32>
    %422 = math.exp %421 : vector<4x512xf32>
    %cst_127 = arith.constant dense<0.000000e+00> : vector<512xf32>
    %423 = vector.multi_reduction <add>, %422, %cst_127 [0] : vector<4x512xf32> to vector<512xf32>
    %424 = vector.shape_cast %423 : vector<512xf32> to vector<1x512xf32>
    %425 = math.log %424 : vector<1x512xf32>
    %426 = vector.broadcast %425 : vector<1x512xf32> to vector<4x512xf32>
    %427 = arith.subf %421, %426 : vector<4x512xf32>
    %c0_128 = arith.constant 0 : index
    %c0_129 = arith.constant 0 : index
    %428 = arith.index_cast %289 : i32 to index
    %429 = vector.load %arg6[%c0_128, %c0_129, %428] : memref<1x4x4096xf32, #tpu.memory_space<vmem>>, vector<1x4x512xf32>
    %430 = vector.shape_cast %429 : vector<1x4x512xf32> to vector<4x512xf32>
    %431 = vector.shape_cast %427 : vector<4x512xf32> to vector<1x4x512xf32>
    tpu.vector_store %arg6[%c0_128, %c0_129, %428], %431 {strides = array<i32>} : memref<1x4x4096xf32, #tpu.memory_space<vmem>>, vector<1x4x512xf32>,
    %c3_i32 = arith.constant 3 : i32
    %c512_i32_130 = arith.constant 512 : i32
    %432 = arith.muli %c3_i32, %c512_i32_130 : i32
    %433 = tpu.assume_multiple %432, 512 : i32
    %c0_131 = arith.constant 0 : index
    %c0_132 = arith.constant 0 : index
    %c0_133 = arith.constant 0 : index
    %434 = arith.index_cast %433 : i32 to index
    %435 = vector.load %arg5[%c0_131, %c0_132, %c0_133, %434] : memref<1x3x4x4096xf32, #tpu.memory_space<vmem>>, vector<1x1x4x512xf32>
    %436 = vector.shape_cast %435 : vector<1x1x4x512xf32> to vector<4x512xf32>
    %c0_134 = arith.constant 0 : index
    %c1_135 = arith.constant 1 : index
    %c0_136 = arith.constant 0 : index
    %437 = arith.index_cast %433 : i32 to index
    %438 = vector.load %arg5[%c0_134, %c1_135, %c0_136, %437] : memref<1x3x4x4096xf32, #tpu.memory_space<vmem>>, vector<1x1x4x512xf32>
    %439 = vector.shape_cast %438 : vector<1x1x4x512xf32> to vector<4x512xf32>
    %c0_137 = arith.constant 0 : index
    %c2_138 = arith.constant 2 : index
    %c0_139 = arith.constant 0 : index
    %440 = arith.index_cast %433 : i32 to index
    %441 = vector.load %arg5[%c0_137, %c2_138, %c0_139, %440] : memref<1x3x4x4096xf32, #tpu.memory_space<vmem>>, vector<1x1x4x512xf32>
    %442 = vector.shape_cast %441 : vector<1x1x4x512xf32> to vector<4x512xf32>
    %c0_140 = arith.constant 0 : index
    %443 = memref.load %arg2[%c0_140] : memref<18xf32, #tpu.memory_space<smem>>
    %444 = vector.broadcast %443 : f32 to vector<4x512xf32>
    %445 = arith.mulf %444, %436 : vector<4x512xf32>
    %c6_141 = arith.constant 6 : index
    %446 = memref.load %arg2[%c6_141] : memref<18xf32, #tpu.memory_space<smem>>
    %447 = vector.broadcast %446 : f32 to vector<4x512xf32>
    %448 = arith.mulf %447, %439 : vector<4x512xf32>
    %449 = arith.addf %445, %448 : vector<4x512xf32>
    %c12_142 = arith.constant 12 : index
    %450 = memref.load %arg2[%c12_142] : memref<18xf32, #tpu.memory_space<smem>>
    %451 = vector.broadcast %450 : f32 to vector<4x512xf32>
    %452 = arith.mulf %451, %442 : vector<4x512xf32>
    %453 = arith.addf %449, %452 : vector<4x512xf32>
    %c0_143 = arith.constant 0 : index
    %454 = memref.load %arg3[%c0_143] : memref<6xf32, #tpu.memory_space<smem>>
    %455 = vector.broadcast %454 : f32 to vector<4x512xf32>
    %456 = arith.addf %453, %455 : vector<4x512xf32>
    %cst_144 = arith.constant 0.000000e+00 : f32
    %457 = vector.broadcast %cst_144 : f32 to vector<4x512xf32>
    %458 = arith.maximumf %456, %457 : vector<4x512xf32>
    %c0_145 = arith.constant 0 : index
    %459 = memref.load %arg4[%c0_145] : memref<6xf32, #tpu.memory_space<smem>>
    %460 = vector.broadcast %459 : f32 to vector<4x512xf32>
    %461 = arith.mulf %460, %458 : vector<4x512xf32>
    %c1_146 = arith.constant 1 : index
    %462 = memref.load %arg2[%c1_146] : memref<18xf32, #tpu.memory_space<smem>>
    %463 = vector.broadcast %462 : f32 to vector<4x512xf32>
    %464 = arith.mulf %463, %436 : vector<4x512xf32>
    %c7_147 = arith.constant 7 : index
    %465 = memref.load %arg2[%c7_147] : memref<18xf32, #tpu.memory_space<smem>>
    %466 = vector.broadcast %465 : f32 to vector<4x512xf32>
    %467 = arith.mulf %466, %439 : vector<4x512xf32>
    %468 = arith.addf %464, %467 : vector<4x512xf32>
    %c13_148 = arith.constant 13 : index
    %469 = memref.load %arg2[%c13_148] : memref<18xf32, #tpu.memory_space<smem>>
    %470 = vector.broadcast %469 : f32 to vector<4x512xf32>
    %471 = arith.mulf %470, %442 : vector<4x512xf32>
    %472 = arith.addf %468, %471 : vector<4x512xf32>
    %c1_149 = arith.constant 1 : index
    %473 = memref.load %arg3[%c1_149] : memref<6xf32, #tpu.memory_space<smem>>
    %474 = vector.broadcast %473 : f32 to vector<4x512xf32>
    %475 = arith.addf %472, %474 : vector<4x512xf32>
    %cst_150 = arith.constant 0.000000e+00 : f32
    %476 = vector.broadcast %cst_150 : f32 to vector<4x512xf32>
    %477 = arith.maximumf %475, %476 : vector<4x512xf32>
    %c1_151 = arith.constant 1 : index
    %478 = memref.load %arg4[%c1_151] : memref<6xf32, #tpu.memory_space<smem>>
    %479 = vector.broadcast %478 : f32 to vector<4x512xf32>
    %480 = arith.mulf %479, %477 : vector<4x512xf32>
    %481 = arith.addf %461, %480 : vector<4x512xf32>
    %c2_152 = arith.constant 2 : index
    %482 = memref.load %arg2[%c2_152] : memref<18xf32, #tpu.memory_space<smem>>
    %483 = vector.broadcast %482 : f32 to vector<4x512xf32>
    %484 = arith.mulf %483, %436 : vector<4x512xf32>
    %c8_153 = arith.constant 8 : index
    %485 = memref.load %arg2[%c8_153] : memref<18xf32, #tpu.memory_space<smem>>
    %486 = vector.broadcast %485 : f32 to vector<4x512xf32>
    %487 = arith.mulf %486, %439 : vector<4x512xf32>
    %488 = arith.addf %484, %487 : vector<4x512xf32>
    %c14_154 = arith.constant 14 : index
    %489 = memref.load %arg2[%c14_154] : memref<18xf32, #tpu.memory_space<smem>>
    %490 = vector.broadcast %489 : f32 to vector<4x512xf32>
    %491 = arith.mulf %490, %442 : vector<4x512xf32>
    %492 = arith.addf %488, %491 : vector<4x512xf32>
    %c2_155 = arith.constant 2 : index
    %493 = memref.load %arg3[%c2_155] : memref<6xf32, #tpu.memory_space<smem>>
    %494 = vector.broadcast %493 : f32 to vector<4x512xf32>
    %495 = arith.addf %492, %494 : vector<4x512xf32>
    %cst_156 = arith.constant 0.000000e+00 : f32
    %496 = vector.broadcast %cst_156 : f32 to vector<4x512xf32>
    %497 = arith.maximumf %495, %496 : vector<4x512xf32>
    %c2_157 = arith.constant 2 : index
    %498 = memref.load %arg4[%c2_157] : memref<6xf32, #tpu.memory_space<smem>>
    %499 = vector.broadcast %498 : f32 to vector<4x512xf32>
    %500 = arith.mulf %499, %497 : vector<4x512xf32>
    %501 = arith.addf %481, %500 : vector<4x512xf32>
    %c3_158 = arith.constant 3 : index
    %502 = memref.load %arg2[%c3_158] : memref<18xf32, #tpu.memory_space<smem>>
    %503 = vector.broadcast %502 : f32 to vector<4x512xf32>
    %504 = arith.mulf %503, %436 : vector<4x512xf32>
    %c9_159 = arith.constant 9 : index
    %505 = memref.load %arg2[%c9_159] : memref<18xf32, #tpu.memory_space<smem>>
    %506 = vector.broadcast %505 : f32 to vector<4x512xf32>
    %507 = arith.mulf %506, %439 : vector<4x512xf32>
    %508 = arith.addf %504, %507 : vector<4x512xf32>
    %c15_160 = arith.constant 15 : index
    %509 = memref.load %arg2[%c15_160] : memref<18xf32, #tpu.memory_space<smem>>
    %510 = vector.broadcast %509 : f32 to vector<4x512xf32>
    %511 = arith.mulf %510, %442 : vector<4x512xf32>
    %512 = arith.addf %508, %511 : vector<4x512xf32>
    %c3_161 = arith.constant 3 : index
    %513 = memref.load %arg3[%c3_161] : memref<6xf32, #tpu.memory_space<smem>>
    %514 = vector.broadcast %513 : f32 to vector<4x512xf32>
    %515 = arith.addf %512, %514 : vector<4x512xf32>
    %cst_162 = arith.constant 0.000000e+00 : f32
    %516 = vector.broadcast %cst_162 : f32 to vector<4x512xf32>
    %517 = arith.maximumf %515, %516 : vector<4x512xf32>
    %c3_163 = arith.constant 3 : index
    %518 = memref.load %arg4[%c3_163] : memref<6xf32, #tpu.memory_space<smem>>
    %519 = vector.broadcast %518 : f32 to vector<4x512xf32>
    %520 = arith.mulf %519, %517 : vector<4x512xf32>
    %521 = arith.addf %501, %520 : vector<4x512xf32>
    %c4_164 = arith.constant 4 : index
    %522 = memref.load %arg2[%c4_164] : memref<18xf32, #tpu.memory_space<smem>>
    %523 = vector.broadcast %522 : f32 to vector<4x512xf32>
    %524 = arith.mulf %523, %436 : vector<4x512xf32>
    %c10_165 = arith.constant 10 : index
    %525 = memref.load %arg2[%c10_165] : memref<18xf32, #tpu.memory_space<smem>>
    %526 = vector.broadcast %525 : f32 to vector<4x512xf32>
    %527 = arith.mulf %526, %439 : vector<4x512xf32>
    %528 = arith.addf %524, %527 : vector<4x512xf32>
    %c16_166 = arith.constant 16 : index
    %529 = memref.load %arg2[%c16_166] : memref<18xf32, #tpu.memory_space<smem>>
    %530 = vector.broadcast %529 : f32 to vector<4x512xf32>
    %531 = arith.mulf %530, %442 : vector<4x512xf32>
    %532 = arith.addf %528, %531 : vector<4x512xf32>
    %c4_167 = arith.constant 4 : index
    %533 = memref.load %arg3[%c4_167] : memref<6xf32, #tpu.memory_space<smem>>
    %534 = vector.broadcast %533 : f32 to vector<4x512xf32>
    %535 = arith.addf %532, %534 : vector<4x512xf32>
    %cst_168 = arith.constant 0.000000e+00 : f32
    %536 = vector.broadcast %cst_168 : f32 to vector<4x512xf32>
    %537 = arith.maximumf %535, %536 : vector<4x512xf32>
    %c4_169 = arith.constant 4 : index
    %538 = memref.load %arg4[%c4_169] : memref<6xf32, #tpu.memory_space<smem>>
    %539 = vector.broadcast %538 : f32 to vector<4x512xf32>
    %540 = arith.mulf %539, %537 : vector<4x512xf32>
    %541 = arith.addf %521, %540 : vector<4x512xf32>
    %c5_170 = arith.constant 5 : index
    %542 = memref.load %arg2[%c5_170] : memref<18xf32, #tpu.memory_space<smem>>
    %543 = vector.broadcast %542 : f32 to vector<4x512xf32>
    %544 = arith.mulf %543, %436 : vector<4x512xf32>
    %c11_171 = arith.constant 11 : index
    %545 = memref.load %arg2[%c11_171] : memref<18xf32, #tpu.memory_space<smem>>
    %546 = vector.broadcast %545 : f32 to vector<4x512xf32>
    %547 = arith.mulf %546, %439 : vector<4x512xf32>
    %548 = arith.addf %544, %547 : vector<4x512xf32>
    %c17_172 = arith.constant 17 : index
    %549 = memref.load %arg2[%c17_172] : memref<18xf32, #tpu.memory_space<smem>>
    %550 = vector.broadcast %549 : f32 to vector<4x512xf32>
    %551 = arith.mulf %550, %442 : vector<4x512xf32>
    %552 = arith.addf %548, %551 : vector<4x512xf32>
    %c5_173 = arith.constant 5 : index
    %553 = memref.load %arg3[%c5_173] : memref<6xf32, #tpu.memory_space<smem>>
    %554 = vector.broadcast %553 : f32 to vector<4x512xf32>
    %555 = arith.addf %552, %554 : vector<4x512xf32>
    %cst_174 = arith.constant 0.000000e+00 : f32
    %556 = vector.broadcast %cst_174 : f32 to vector<4x512xf32>
    %557 = arith.maximumf %555, %556 : vector<4x512xf32>
    %c5_175 = arith.constant 5 : index
    %558 = memref.load %arg4[%c5_175] : memref<6xf32, #tpu.memory_space<smem>>
    %559 = vector.broadcast %558 : f32 to vector<4x512xf32>
    %560 = arith.mulf %559, %557 : vector<4x512xf32>
    %561 = arith.addf %541, %560 : vector<4x512xf32>
    %cst_176 = arith.constant dense<0xFF800000> : vector<512xf32>
    %562 = vector.multi_reduction <maximumf>, %561, %cst_176 [0] : vector<4x512xf32> to vector<512xf32>
    %563 = vector.shape_cast %562 : vector<512xf32> to vector<1x512xf32>
    %564 = vector.broadcast %563 : vector<1x512xf32> to vector<4x512xf32>
    %565 = arith.subf %561, %564 : vector<4x512xf32>
    %566 = math.exp %565 : vector<4x512xf32>
    %cst_177 = arith.constant dense<0.000000e+00> : vector<512xf32>
    %567 = vector.multi_reduction <add>, %566, %cst_177 [0] : vector<4x512xf32> to vector<512xf32>
    %568 = vector.shape_cast %567 : vector<512xf32> to vector<1x512xf32>
    %569 = math.log %568 : vector<1x512xf32>
    %570 = vector.broadcast %569 : vector<1x512xf32> to vector<4x512xf32>
    %571 = arith.subf %565, %570 : vector<4x512xf32>
    %c0_178 = arith.constant 0 : index
    %c0_179 = arith.constant 0 : index
    %572 = arith.index_cast %433 : i32 to index
    %573 = vector.load %arg6[%c0_178, %c0_179, %572] : memref<1x4x4096xf32, #tpu.memory_space<vmem>>, vector<1x4x512xf32>
    %574 = vector.shape_cast %573 : vector<1x4x512xf32> to vector<4x512xf32>
    %575 = vector.shape_cast %571 : vector<4x512xf32> to vector<1x4x512xf32>
    tpu.vector_store %arg6[%c0_178, %c0_179, %572], %575 {strides = array<i32>} : memref<1x4x4096xf32, #tpu.memory_space<vmem>>, vector<1x4x512xf32>,
    %c4_i32 = arith.constant 4 : i32
    %c512_i32_180 = arith.constant 512 : i32
    %576 = arith.muli %c4_i32, %c512_i32_180 : i32
    %577 = tpu.assume_multiple %576, 512 : i32
    %c0_181 = arith.constant 0 : index
    %c0_182 = arith.constant 0 : index
    %c0_183 = arith.constant 0 : index
    %578 = arith.index_cast %577 : i32 to index
    %579 = vector.load %arg5[%c0_181, %c0_182, %c0_183, %578] : memref<1x3x4x4096xf32, #tpu.memory_space<vmem>>, vector<1x1x4x512xf32>
    %580 = vector.shape_cast %579 : vector<1x1x4x512xf32> to vector<4x512xf32>
    %c0_184 = arith.constant 0 : index
    %c1_185 = arith.constant 1 : index
    %c0_186 = arith.constant 0 : index
    %581 = arith.index_cast %577 : i32 to index
    %582 = vector.load %arg5[%c0_184, %c1_185, %c0_186, %581] : memref<1x3x4x4096xf32, #tpu.memory_space<vmem>>, vector<1x1x4x512xf32>
    %583 = vector.shape_cast %582 : vector<1x1x4x512xf32> to vector<4x512xf32>
    %c0_187 = arith.constant 0 : index
    %c2_188 = arith.constant 2 : index
    %c0_189 = arith.constant 0 : index
    %584 = arith.index_cast %577 : i32 to index
    %585 = vector.load %arg5[%c0_187, %c2_188, %c0_189, %584] : memref<1x3x4x4096xf32, #tpu.memory_space<vmem>>, vector<1x1x4x512xf32>
    %586 = vector.shape_cast %585 : vector<1x1x4x512xf32> to vector<4x512xf32>
    %c0_190 = arith.constant 0 : index
    %587 = memref.load %arg2[%c0_190] : memref<18xf32, #tpu.memory_space<smem>>
    %588 = vector.broadcast %587 : f32 to vector<4x512xf32>
    %589 = arith.mulf %588, %580 : vector<4x512xf32>
    %c6_191 = arith.constant 6 : index
    %590 = memref.load %arg2[%c6_191] : memref<18xf32, #tpu.memory_space<smem>>
    %591 = vector.broadcast %590 : f32 to vector<4x512xf32>
    %592 = arith.mulf %591, %583 : vector<4x512xf32>
    %593 = arith.addf %589, %592 : vector<4x512xf32>
    %c12_192 = arith.constant 12 : index
    %594 = memref.load %arg2[%c12_192] : memref<18xf32, #tpu.memory_space<smem>>
    %595 = vector.broadcast %594 : f32 to vector<4x512xf32>
    %596 = arith.mulf %595, %586 : vector<4x512xf32>
    %597 = arith.addf %593, %596 : vector<4x512xf32>
    %c0_193 = arith.constant 0 : index
    %598 = memref.load %arg3[%c0_193] : memref<6xf32, #tpu.memory_space<smem>>
    %599 = vector.broadcast %598 : f32 to vector<4x512xf32>
    %600 = arith.addf %597, %599 : vector<4x512xf32>
    %cst_194 = arith.constant 0.000000e+00 : f32
    %601 = vector.broadcast %cst_194 : f32 to vector<4x512xf32>
    %602 = arith.maximumf %600, %601 : vector<4x512xf32>
    %c0_195 = arith.constant 0 : index
    %603 = memref.load %arg4[%c0_195] : memref<6xf32, #tpu.memory_space<smem>>
    %604 = vector.broadcast %603 : f32 to vector<4x512xf32>
    %605 = arith.mulf %604, %602 : vector<4x512xf32>
    %c1_196 = arith.constant 1 : index
    %606 = memref.load %arg2[%c1_196] : memref<18xf32, #tpu.memory_space<smem>>
    %607 = vector.broadcast %606 : f32 to vector<4x512xf32>
    %608 = arith.mulf %607, %580 : vector<4x512xf32>
    %c7_197 = arith.constant 7 : index
    %609 = memref.load %arg2[%c7_197] : memref<18xf32, #tpu.memory_space<smem>>
    %610 = vector.broadcast %609 : f32 to vector<4x512xf32>
    %611 = arith.mulf %610, %583 : vector<4x512xf32>
    %612 = arith.addf %608, %611 : vector<4x512xf32>
    %c13_198 = arith.constant 13 : index
    %613 = memref.load %arg2[%c13_198] : memref<18xf32, #tpu.memory_space<smem>>
    %614 = vector.broadcast %613 : f32 to vector<4x512xf32>
    %615 = arith.mulf %614, %586 : vector<4x512xf32>
    %616 = arith.addf %612, %615 : vector<4x512xf32>
    %c1_199 = arith.constant 1 : index
    %617 = memref.load %arg3[%c1_199] : memref<6xf32, #tpu.memory_space<smem>>
    %618 = vector.broadcast %617 : f32 to vector<4x512xf32>
    %619 = arith.addf %616, %618 : vector<4x512xf32>
    %cst_200 = arith.constant 0.000000e+00 : f32
    %620 = vector.broadcast %cst_200 : f32 to vector<4x512xf32>
    %621 = arith.maximumf %619, %620 : vector<4x512xf32>
    %c1_201 = arith.constant 1 : index
    %622 = memref.load %arg4[%c1_201] : memref<6xf32, #tpu.memory_space<smem>>
    %623 = vector.broadcast %622 : f32 to vector<4x512xf32>
    %624 = arith.mulf %623, %621 : vector<4x512xf32>
    %625 = arith.addf %605, %624 : vector<4x512xf32>
    %c2_202 = arith.constant 2 : index
    %626 = memref.load %arg2[%c2_202] : memref<18xf32, #tpu.memory_space<smem>>
    %627 = vector.broadcast %626 : f32 to vector<4x512xf32>
    %628 = arith.mulf %627, %580 : vector<4x512xf32>
    %c8_203 = arith.constant 8 : index
    %629 = memref.load %arg2[%c8_203] : memref<18xf32, #tpu.memory_space<smem>>
    %630 = vector.broadcast %629 : f32 to vector<4x512xf32>
    %631 = arith.mulf %630, %583 : vector<4x512xf32>
    %632 = arith.addf %628, %631 : vector<4x512xf32>
    %c14_204 = arith.constant 14 : index
    %633 = memref.load %arg2[%c14_204] : memref<18xf32, #tpu.memory_space<smem>>
    %634 = vector.broadcast %633 : f32 to vector<4x512xf32>
    %635 = arith.mulf %634, %586 : vector<4x512xf32>
    %636 = arith.addf %632, %635 : vector<4x512xf32>
    %c2_205 = arith.constant 2 : index
    %637 = memref.load %arg3[%c2_205] : memref<6xf32, #tpu.memory_space<smem>>
    %638 = vector.broadcast %637 : f32 to vector<4x512xf32>
    %639 = arith.addf %636, %638 : vector<4x512xf32>
    %cst_206 = arith.constant 0.000000e+00 : f32
    %640 = vector.broadcast %cst_206 : f32 to vector<4x512xf32>
    %641 = arith.maximumf %639, %640 : vector<4x512xf32>
    %c2_207 = arith.constant 2 : index
    %642 = memref.load %arg4[%c2_207] : memref<6xf32, #tpu.memory_space<smem>>
    %643 = vector.broadcast %642 : f32 to vector<4x512xf32>
    %644 = arith.mulf %643, %641 : vector<4x512xf32>
    %645 = arith.addf %625, %644 : vector<4x512xf32>
    %c3_208 = arith.constant 3 : index
    %646 = memref.load %arg2[%c3_208] : memref<18xf32, #tpu.memory_space<smem>>
    %647 = vector.broadcast %646 : f32 to vector<4x512xf32>
    %648 = arith.mulf %647, %580 : vector<4x512xf32>
    %c9_209 = arith.constant 9 : index
    %649 = memref.load %arg2[%c9_209] : memref<18xf32, #tpu.memory_space<smem>>
    %650 = vector.broadcast %649 : f32 to vector<4x512xf32>
    %651 = arith.mulf %650, %583 : vector<4x512xf32>
    %652 = arith.addf %648, %651 : vector<4x512xf32>
    %c15_210 = arith.constant 15 : index
    %653 = memref.load %arg2[%c15_210] : memref<18xf32, #tpu.memory_space<smem>>
    %654 = vector.broadcast %653 : f32 to vector<4x512xf32>
    %655 = arith.mulf %654, %586 : vector<4x512xf32>
    %656 = arith.addf %652, %655 : vector<4x512xf32>
    %c3_211 = arith.constant 3 : index
    %657 = memref.load %arg3[%c3_211] : memref<6xf32, #tpu.memory_space<smem>>
    %658 = vector.broadcast %657 : f32 to vector<4x512xf32>
    %659 = arith.addf %656, %658 : vector<4x512xf32>
    %cst_212 = arith.constant 0.000000e+00 : f32
    %660 = vector.broadcast %cst_212 : f32 to vector<4x512xf32>
    %661 = arith.maximumf %659, %660 : vector<4x512xf32>
    %c3_213 = arith.constant 3 : index
    %662 = memref.load %arg4[%c3_213] : memref<6xf32, #tpu.memory_space<smem>>
    %663 = vector.broadcast %662 : f32 to vector<4x512xf32>
    %664 = arith.mulf %663, %661 : vector<4x512xf32>
    %665 = arith.addf %645, %664 : vector<4x512xf32>
    %c4_214 = arith.constant 4 : index
    %666 = memref.load %arg2[%c4_214] : memref<18xf32, #tpu.memory_space<smem>>
    %667 = vector.broadcast %666 : f32 to vector<4x512xf32>
    %668 = arith.mulf %667, %580 : vector<4x512xf32>
    %c10_215 = arith.constant 10 : index
    %669 = memref.load %arg2[%c10_215] : memref<18xf32, #tpu.memory_space<smem>>
    %670 = vector.broadcast %669 : f32 to vector<4x512xf32>
    %671 = arith.mulf %670, %583 : vector<4x512xf32>
    %672 = arith.addf %668, %671 : vector<4x512xf32>
    %c16_216 = arith.constant 16 : index
    %673 = memref.load %arg2[%c16_216] : memref<18xf32, #tpu.memory_space<smem>>
    %674 = vector.broadcast %673 : f32 to vector<4x512xf32>
    %675 = arith.mulf %674, %586 : vector<4x512xf32>
    %676 = arith.addf %672, %675 : vector<4x512xf32>
    %c4_217 = arith.constant 4 : index
    %677 = memref.load %arg3[%c4_217] : memref<6xf32, #tpu.memory_space<smem>>
    %678 = vector.broadcast %677 : f32 to vector<4x512xf32>
    %679 = arith.addf %676, %678 : vector<4x512xf32>
    %cst_218 = arith.constant 0.000000e+00 : f32
    %680 = vector.broadcast %cst_218 : f32 to vector<4x512xf32>
    %681 = arith.maximumf %679, %680 : vector<4x512xf32>
    %c4_219 = arith.constant 4 : index
    %682 = memref.load %arg4[%c4_219] : memref<6xf32, #tpu.memory_space<smem>>
    %683 = vector.broadcast %682 : f32 to vector<4x512xf32>
    %684 = arith.mulf %683, %681 : vector<4x512xf32>
    %685 = arith.addf %665, %684 : vector<4x512xf32>
    %c5_220 = arith.constant 5 : index
    %686 = memref.load %arg2[%c5_220] : memref<18xf32, #tpu.memory_space<smem>>
    %687 = vector.broadcast %686 : f32 to vector<4x512xf32>
    %688 = arith.mulf %687, %580 : vector<4x512xf32>
    %c11_221 = arith.constant 11 : index
    %689 = memref.load %arg2[%c11_221] : memref<18xf32, #tpu.memory_space<smem>>
    %690 = vector.broadcast %689 : f32 to vector<4x512xf32>
    %691 = arith.mulf %690, %583 : vector<4x512xf32>
    %692 = arith.addf %688, %691 : vector<4x512xf32>
    %c17_222 = arith.constant 17 : index
    %693 = memref.load %arg2[%c17_222] : memref<18xf32, #tpu.memory_space<smem>>
    %694 = vector.broadcast %693 : f32 to vector<4x512xf32>
    %695 = arith.mulf %694, %586 : vector<4x512xf32>
    %696 = arith.addf %692, %695 : vector<4x512xf32>
    %c5_223 = arith.constant 5 : index
    %697 = memref.load %arg3[%c5_223] : memref<6xf32, #tpu.memory_space<smem>>
    %698 = vector.broadcast %697 : f32 to vector<4x512xf32>
    %699 = arith.addf %696, %698 : vector<4x512xf32>
    %cst_224 = arith.constant 0.000000e+00 : f32
    %700 = vector.broadcast %cst_224 : f32 to vector<4x512xf32>
    %701 = arith.maximumf %699, %700 : vector<4x512xf32>
    %c5_225 = arith.constant 5 : index
    %702 = memref.load %arg4[%c5_225] : memref<6xf32, #tpu.memory_space<smem>>
    %703 = vector.broadcast %702 : f32 to vector<4x512xf32>
    %704 = arith.mulf %703, %701 : vector<4x512xf32>
    %705 = arith.addf %685, %704 : vector<4x512xf32>
    %cst_226 = arith.constant dense<0xFF800000> : vector<512xf32>
    %706 = vector.multi_reduction <maximumf>, %705, %cst_226 [0] : vector<4x512xf32> to vector<512xf32>
    %707 = vector.shape_cast %706 : vector<512xf32> to vector<1x512xf32>
    %708 = vector.broadcast %707 : vector<1x512xf32> to vector<4x512xf32>
    %709 = arith.subf %705, %708 : vector<4x512xf32>
    %710 = math.exp %709 : vector<4x512xf32>
    %cst_227 = arith.constant dense<0.000000e+00> : vector<512xf32>
    %711 = vector.multi_reduction <add>, %710, %cst_227 [0] : vector<4x512xf32> to vector<512xf32>
    %712 = vector.shape_cast %711 : vector<512xf32> to vector<1x512xf32>
    %713 = math.log %712 : vector<1x512xf32>
    %714 = vector.broadcast %713 : vector<1x512xf32> to vector<4x512xf32>
    %715 = arith.subf %709, %714 : vector<4x512xf32>
    %c0_228 = arith.constant 0 : index
    %c0_229 = arith.constant 0 : index
    %716 = arith.index_cast %577 : i32 to index
    %717 = vector.load %arg6[%c0_228, %c0_229, %716] : memref<1x4x4096xf32, #tpu.memory_space<vmem>>, vector<1x4x512xf32>
    %718 = vector.shape_cast %717 : vector<1x4x512xf32> to vector<4x512xf32>
    %719 = vector.shape_cast %715 : vector<4x512xf32> to vector<1x4x512xf32>
    tpu.vector_store %arg6[%c0_228, %c0_229, %716], %719 {strides = array<i32>} : memref<1x4x4096xf32, #tpu.memory_space<vmem>>, vector<1x4x512xf32>,
    %c5_i32 = arith.constant 5 : i32
    %c512_i32_230 = arith.constant 512 : i32
    %720 = arith.muli %c5_i32, %c512_i32_230 : i32
    %721 = tpu.assume_multiple %720, 512 : i32
    %c0_231 = arith.constant 0 : index
    %c0_232 = arith.constant 0 : index
    %c0_233 = arith.constant 0 : index
    %722 = arith.index_cast %721 : i32 to index
    %723 = vector.load %arg5[%c0_231, %c0_232, %c0_233, %722] : memref<1x3x4x4096xf32, #tpu.memory_space<vmem>>, vector<1x1x4x512xf32>
    %724 = vector.shape_cast %723 : vector<1x1x4x512xf32> to vector<4x512xf32>
    %c0_234 = arith.constant 0 : index
    %c1_235 = arith.constant 1 : index
    %c0_236 = arith.constant 0 : index
    %725 = arith.index_cast %721 : i32 to index
    %726 = vector.load %arg5[%c0_234, %c1_235, %c0_236, %725] : memref<1x3x4x4096xf32, #tpu.memory_space<vmem>>, vector<1x1x4x512xf32>
    %727 = vector.shape_cast %726 : vector<1x1x4x512xf32> to vector<4x512xf32>
    %c0_237 = arith.constant 0 : index
    %c2_238 = arith.constant 2 : index
    %c0_239 = arith.constant 0 : index
    %728 = arith.index_cast %721 : i32 to index
    %729 = vector.load %arg5[%c0_237, %c2_238, %c0_239, %728] : memref<1x3x4x4096xf32, #tpu.memory_space<vmem>>, vector<1x1x4x512xf32>
    %730 = vector.shape_cast %729 : vector<1x1x4x512xf32> to vector<4x512xf32>
    %c0_240 = arith.constant 0 : index
    %731 = memref.load %arg2[%c0_240] : memref<18xf32, #tpu.memory_space<smem>>
    %732 = vector.broadcast %731 : f32 to vector<4x512xf32>
    %733 = arith.mulf %732, %724 : vector<4x512xf32>
    %c6_241 = arith.constant 6 : index
    %734 = memref.load %arg2[%c6_241] : memref<18xf32, #tpu.memory_space<smem>>
    %735 = vector.broadcast %734 : f32 to vector<4x512xf32>
    %736 = arith.mulf %735, %727 : vector<4x512xf32>
    %737 = arith.addf %733, %736 : vector<4x512xf32>
    %c12_242 = arith.constant 12 : index
    %738 = memref.load %arg2[%c12_242] : memref<18xf32, #tpu.memory_space<smem>>
    %739 = vector.broadcast %738 : f32 to vector<4x512xf32>
    %740 = arith.mulf %739, %730 : vector<4x512xf32>
    %741 = arith.addf %737, %740 : vector<4x512xf32>
    %c0_243 = arith.constant 0 : index
    %742 = memref.load %arg3[%c0_243] : memref<6xf32, #tpu.memory_space<smem>>
    %743 = vector.broadcast %742 : f32 to vector<4x512xf32>
    %744 = arith.addf %741, %743 : vector<4x512xf32>
    %cst_244 = arith.constant 0.000000e+00 : f32
    %745 = vector.broadcast %cst_244 : f32 to vector<4x512xf32>
    %746 = arith.maximumf %744, %745 : vector<4x512xf32>
    %c0_245 = arith.constant 0 : index
    %747 = memref.load %arg4[%c0_245] : memref<6xf32, #tpu.memory_space<smem>>
    %748 = vector.broadcast %747 : f32 to vector<4x512xf32>
    %749 = arith.mulf %748, %746 : vector<4x512xf32>
    %c1_246 = arith.constant 1 : index
    %750 = memref.load %arg2[%c1_246] : memref<18xf32, #tpu.memory_space<smem>>
    %751 = vector.broadcast %750 : f32 to vector<4x512xf32>
    %752 = arith.mulf %751, %724 : vector<4x512xf32>
    %c7_247 = arith.constant 7 : index
    %753 = memref.load %arg2[%c7_247] : memref<18xf32, #tpu.memory_space<smem>>
    %754 = vector.broadcast %753 : f32 to vector<4x512xf32>
    %755 = arith.mulf %754, %727 : vector<4x512xf32>
    %756 = arith.addf %752, %755 : vector<4x512xf32>
    %c13_248 = arith.constant 13 : index
    %757 = memref.load %arg2[%c13_248] : memref<18xf32, #tpu.memory_space<smem>>
    %758 = vector.broadcast %757 : f32 to vector<4x512xf32>
    %759 = arith.mulf %758, %730 : vector<4x512xf32>
    %760 = arith.addf %756, %759 : vector<4x512xf32>
    %c1_249 = arith.constant 1 : index
    %761 = memref.load %arg3[%c1_249] : memref<6xf32, #tpu.memory_space<smem>>
    %762 = vector.broadcast %761 : f32 to vector<4x512xf32>
    %763 = arith.addf %760, %762 : vector<4x512xf32>
    %cst_250 = arith.constant 0.000000e+00 : f32
    %764 = vector.broadcast %cst_250 : f32 to vector<4x512xf32>
    %765 = arith.maximumf %763, %764 : vector<4x512xf32>
    %c1_251 = arith.constant 1 : index
    %766 = memref.load %arg4[%c1_251] : memref<6xf32, #tpu.memory_space<smem>>
    %767 = vector.broadcast %766 : f32 to vector<4x512xf32>
    %768 = arith.mulf %767, %765 : vector<4x512xf32>
    %769 = arith.addf %749, %768 : vector<4x512xf32>
    %c2_252 = arith.constant 2 : index
    %770 = memref.load %arg2[%c2_252] : memref<18xf32, #tpu.memory_space<smem>>
    %771 = vector.broadcast %770 : f32 to vector<4x512xf32>
    %772 = arith.mulf %771, %724 : vector<4x512xf32>
    %c8_253 = arith.constant 8 : index
    %773 = memref.load %arg2[%c8_253] : memref<18xf32, #tpu.memory_space<smem>>
    %774 = vector.broadcast %773 : f32 to vector<4x512xf32>
    %775 = arith.mulf %774, %727 : vector<4x512xf32>
    %776 = arith.addf %772, %775 : vector<4x512xf32>
    %c14_254 = arith.constant 14 : index
    %777 = memref.load %arg2[%c14_254] : memref<18xf32, #tpu.memory_space<smem>>
    %778 = vector.broadcast %777 : f32 to vector<4x512xf32>
    %779 = arith.mulf %778, %730 : vector<4x512xf32>
    %780 = arith.addf %776, %779 : vector<4x512xf32>
    %c2_255 = arith.constant 2 : index
    %781 = memref.load %arg3[%c2_255] : memref<6xf32, #tpu.memory_space<smem>>
    %782 = vector.broadcast %781 : f32 to vector<4x512xf32>
    %783 = arith.addf %780, %782 : vector<4x512xf32>
    %cst_256 = arith.constant 0.000000e+00 : f32
    %784 = vector.broadcast %cst_256 : f32 to vector<4x512xf32>
    %785 = arith.maximumf %783, %784 : vector<4x512xf32>
    %c2_257 = arith.constant 2 : index
    %786 = memref.load %arg4[%c2_257] : memref<6xf32, #tpu.memory_space<smem>>
    %787 = vector.broadcast %786 : f32 to vector<4x512xf32>
    %788 = arith.mulf %787, %785 : vector<4x512xf32>
    %789 = arith.addf %769, %788 : vector<4x512xf32>
    %c3_258 = arith.constant 3 : index
    %790 = memref.load %arg2[%c3_258] : memref<18xf32, #tpu.memory_space<smem>>
    %791 = vector.broadcast %790 : f32 to vector<4x512xf32>
    %792 = arith.mulf %791, %724 : vector<4x512xf32>
    %c9_259 = arith.constant 9 : index
    %793 = memref.load %arg2[%c9_259] : memref<18xf32, #tpu.memory_space<smem>>
    %794 = vector.broadcast %793 : f32 to vector<4x512xf32>
    %795 = arith.mulf %794, %727 : vector<4x512xf32>
    %796 = arith.addf %792, %795 : vector<4x512xf32>
    %c15_260 = arith.constant 15 : index
    %797 = memref.load %arg2[%c15_260] : memref<18xf32, #tpu.memory_space<smem>>
    %798 = vector.broadcast %797 : f32 to vector<4x512xf32>
    %799 = arith.mulf %798, %730 : vector<4x512xf32>
    %800 = arith.addf %796, %799 : vector<4x512xf32>
    %c3_261 = arith.constant 3 : index
    %801 = memref.load %arg3[%c3_261] : memref<6xf32, #tpu.memory_space<smem>>
    %802 = vector.broadcast %801 : f32 to vector<4x512xf32>
    %803 = arith.addf %800, %802 : vector<4x512xf32>
    %cst_262 = arith.constant 0.000000e+00 : f32
    %804 = vector.broadcast %cst_262 : f32 to vector<4x512xf32>
    %805 = arith.maximumf %803, %804 : vector<4x512xf32>
    %c3_263 = arith.constant 3 : index
    %806 = memref.load %arg4[%c3_263] : memref<6xf32, #tpu.memory_space<smem>>
    %807 = vector.broadcast %806 : f32 to vector<4x512xf32>
    %808 = arith.mulf %807, %805 : vector<4x512xf32>
    %809 = arith.addf %789, %808 : vector<4x512xf32>
    %c4_264 = arith.constant 4 : index
    %810 = memref.load %arg2[%c4_264] : memref<18xf32, #tpu.memory_space<smem>>
    %811 = vector.broadcast %810 : f32 to vector<4x512xf32>
    %812 = arith.mulf %811, %724 : vector<4x512xf32>
    %c10_265 = arith.constant 10 : index
    %813 = memref.load %arg2[%c10_265] : memref<18xf32, #tpu.memory_space<smem>>
    %814 = vector.broadcast %813 : f32 to vector<4x512xf32>
    %815 = arith.mulf %814, %727 : vector<4x512xf32>
    %816 = arith.addf %812, %815 : vector<4x512xf32>
    %c16_266 = arith.constant 16 : index
    %817 = memref.load %arg2[%c16_266] : memref<18xf32, #tpu.memory_space<smem>>
    %818 = vector.broadcast %817 : f32 to vector<4x512xf32>
    %819 = arith.mulf %818, %730 : vector<4x512xf32>
    %820 = arith.addf %816, %819 : vector<4x512xf32>
    %c4_267 = arith.constant 4 : index
    %821 = memref.load %arg3[%c4_267] : memref<6xf32, #tpu.memory_space<smem>>
    %822 = vector.broadcast %821 : f32 to vector<4x512xf32>
    %823 = arith.addf %820, %822 : vector<4x512xf32>
    %cst_268 = arith.constant 0.000000e+00 : f32
    %824 = vector.broadcast %cst_268 : f32 to vector<4x512xf32>
    %825 = arith.maximumf %823, %824 : vector<4x512xf32>
    %c4_269 = arith.constant 4 : index
    %826 = memref.load %arg4[%c4_269] : memref<6xf32, #tpu.memory_space<smem>>
    %827 = vector.broadcast %826 : f32 to vector<4x512xf32>
    %828 = arith.mulf %827, %825 : vector<4x512xf32>
    %829 = arith.addf %809, %828 : vector<4x512xf32>
    %c5_270 = arith.constant 5 : index
    %830 = memref.load %arg2[%c5_270] : memref<18xf32, #tpu.memory_space<smem>>
    %831 = vector.broadcast %830 : f32 to vector<4x512xf32>
    %832 = arith.mulf %831, %724 : vector<4x512xf32>
    %c11_271 = arith.constant 11 : index
    %833 = memref.load %arg2[%c11_271] : memref<18xf32, #tpu.memory_space<smem>>
    %834 = vector.broadcast %833 : f32 to vector<4x512xf32>
    %835 = arith.mulf %834, %727 : vector<4x512xf32>
    %836 = arith.addf %832, %835 : vector<4x512xf32>
    %c17_272 = arith.constant 17 : index
    %837 = memref.load %arg2[%c17_272] : memref<18xf32, #tpu.memory_space<smem>>
    %838 = vector.broadcast %837 : f32 to vector<4x512xf32>
    %839 = arith.mulf %838, %730 : vector<4x512xf32>
    %840 = arith.addf %836, %839 : vector<4x512xf32>
    %c5_273 = arith.constant 5 : index
    %841 = memref.load %arg3[%c5_273] : memref<6xf32, #tpu.memory_space<smem>>
    %842 = vector.broadcast %841 : f32 to vector<4x512xf32>
    %843 = arith.addf %840, %842 : vector<4x512xf32>
    %cst_274 = arith.constant 0.000000e+00 : f32
    %844 = vector.broadcast %cst_274 : f32 to vector<4x512xf32>
    %845 = arith.maximumf %843, %844 : vector<4x512xf32>
    %c5_275 = arith.constant 5 : index
    %846 = memref.load %arg4[%c5_275] : memref<6xf32, #tpu.memory_space<smem>>
    %847 = vector.broadcast %846 : f32 to vector<4x512xf32>
    %848 = arith.mulf %847, %845 : vector<4x512xf32>
    %849 = arith.addf %829, %848 : vector<4x512xf32>
    %cst_276 = arith.constant dense<0xFF800000> : vector<512xf32>
    %850 = vector.multi_reduction <maximumf>, %849, %cst_276 [0] : vector<4x512xf32> to vector<512xf32>
    %851 = vector.shape_cast %850 : vector<512xf32> to vector<1x512xf32>
    %852 = vector.broadcast %851 : vector<1x512xf32> to vector<4x512xf32>
    %853 = arith.subf %849, %852 : vector<4x512xf32>
    %854 = math.exp %853 : vector<4x512xf32>
    %cst_277 = arith.constant dense<0.000000e+00> : vector<512xf32>
    %855 = vector.multi_reduction <add>, %854, %cst_277 [0] : vector<4x512xf32> to vector<512xf32>
    %856 = vector.shape_cast %855 : vector<512xf32> to vector<1x512xf32>
    %857 = math.log %856 : vector<1x512xf32>
    %858 = vector.broadcast %857 : vector<1x512xf32> to vector<4x512xf32>
    %859 = arith.subf %853, %858 : vector<4x512xf32>
    %c0_278 = arith.constant 0 : index
    %c0_279 = arith.constant 0 : index
    %860 = arith.index_cast %721 : i32 to index
    %861 = vector.load %arg6[%c0_278, %c0_279, %860] : memref<1x4x4096xf32, #tpu.memory_space<vmem>>, vector<1x4x512xf32>
    %862 = vector.shape_cast %861 : vector<1x4x512xf32> to vector<4x512xf32>
    %863 = vector.shape_cast %859 : vector<4x512xf32> to vector<1x4x512xf32>
    tpu.vector_store %arg6[%c0_278, %c0_279, %860], %863 {strides = array<i32>} : memref<1x4x4096xf32, #tpu.memory_space<vmem>>, vector<1x4x512xf32>,
    %c6_i32 = arith.constant 6 : i32
    %c512_i32_280 = arith.constant 512 : i32
    %864 = arith.muli %c6_i32, %c512_i32_280 : i32
    %865 = tpu.assume_multiple %864, 512 : i32
    %c0_281 = arith.constant 0 : index
    %c0_282 = arith.constant 0 : index
    %c0_283 = arith.constant 0 : index
    %866 = arith.index_cast %865 : i32 to index
    %867 = vector.load %arg5[%c0_281, %c0_282, %c0_283, %866] : memref<1x3x4x4096xf32, #tpu.memory_space<vmem>>, vector<1x1x4x512xf32>
    %868 = vector.shape_cast %867 : vector<1x1x4x512xf32> to vector<4x512xf32>
    %c0_284 = arith.constant 0 : index
    %c1_285 = arith.constant 1 : index
    %c0_286 = arith.constant 0 : index
    %869 = arith.index_cast %865 : i32 to index
    %870 = vector.load %arg5[%c0_284, %c1_285, %c0_286, %869] : memref<1x3x4x4096xf32, #tpu.memory_space<vmem>>, vector<1x1x4x512xf32>
    %871 = vector.shape_cast %870 : vector<1x1x4x512xf32> to vector<4x512xf32>
    %c0_287 = arith.constant 0 : index
    %c2_288 = arith.constant 2 : index
    %c0_289 = arith.constant 0 : index
    %872 = arith.index_cast %865 : i32 to index
    %873 = vector.load %arg5[%c0_287, %c2_288, %c0_289, %872] : memref<1x3x4x4096xf32, #tpu.memory_space<vmem>>, vector<1x1x4x512xf32>
    %874 = vector.shape_cast %873 : vector<1x1x4x512xf32> to vector<4x512xf32>
    %c0_290 = arith.constant 0 : index
    %875 = memref.load %arg2[%c0_290] : memref<18xf32, #tpu.memory_space<smem>>
    %876 = vector.broadcast %875 : f32 to vector<4x512xf32>
    %877 = arith.mulf %876, %868 : vector<4x512xf32>
    %c6_291 = arith.constant 6 : index
    %878 = memref.load %arg2[%c6_291] : memref<18xf32, #tpu.memory_space<smem>>
    %879 = vector.broadcast %878 : f32 to vector<4x512xf32>
    %880 = arith.mulf %879, %871 : vector<4x512xf32>
    %881 = arith.addf %877, %880 : vector<4x512xf32>
    %c12_292 = arith.constant 12 : index
    %882 = memref.load %arg2[%c12_292] : memref<18xf32, #tpu.memory_space<smem>>
    %883 = vector.broadcast %882 : f32 to vector<4x512xf32>
    %884 = arith.mulf %883, %874 : vector<4x512xf32>
    %885 = arith.addf %881, %884 : vector<4x512xf32>
    %c0_293 = arith.constant 0 : index
    %886 = memref.load %arg3[%c0_293] : memref<6xf32, #tpu.memory_space<smem>>
    %887 = vector.broadcast %886 : f32 to vector<4x512xf32>
    %888 = arith.addf %885, %887 : vector<4x512xf32>
    %cst_294 = arith.constant 0.000000e+00 : f32
    %889 = vector.broadcast %cst_294 : f32 to vector<4x512xf32>
    %890 = arith.maximumf %888, %889 : vector<4x512xf32>
    %c0_295 = arith.constant 0 : index
    %891 = memref.load %arg4[%c0_295] : memref<6xf32, #tpu.memory_space<smem>>
    %892 = vector.broadcast %891 : f32 to vector<4x512xf32>
    %893 = arith.mulf %892, %890 : vector<4x512xf32>
    %c1_296 = arith.constant 1 : index
    %894 = memref.load %arg2[%c1_296] : memref<18xf32, #tpu.memory_space<smem>>
    %895 = vector.broadcast %894 : f32 to vector<4x512xf32>
    %896 = arith.mulf %895, %868 : vector<4x512xf32>
    %c7_297 = arith.constant 7 : index
    %897 = memref.load %arg2[%c7_297] : memref<18xf32, #tpu.memory_space<smem>>
    %898 = vector.broadcast %897 : f32 to vector<4x512xf32>
    %899 = arith.mulf %898, %871 : vector<4x512xf32>
    %900 = arith.addf %896, %899 : vector<4x512xf32>
    %c13_298 = arith.constant 13 : index
    %901 = memref.load %arg2[%c13_298] : memref<18xf32, #tpu.memory_space<smem>>
    %902 = vector.broadcast %901 : f32 to vector<4x512xf32>
    %903 = arith.mulf %902, %874 : vector<4x512xf32>
    %904 = arith.addf %900, %903 : vector<4x512xf32>
    %c1_299 = arith.constant 1 : index
    %905 = memref.load %arg3[%c1_299] : memref<6xf32, #tpu.memory_space<smem>>
    %906 = vector.broadcast %905 : f32 to vector<4x512xf32>
    %907 = arith.addf %904, %906 : vector<4x512xf32>
    %cst_300 = arith.constant 0.000000e+00 : f32
    %908 = vector.broadcast %cst_300 : f32 to vector<4x512xf32>
    %909 = arith.maximumf %907, %908 : vector<4x512xf32>
    %c1_301 = arith.constant 1 : index
    %910 = memref.load %arg4[%c1_301] : memref<6xf32, #tpu.memory_space<smem>>
    %911 = vector.broadcast %910 : f32 to vector<4x512xf32>
    %912 = arith.mulf %911, %909 : vector<4x512xf32>
    %913 = arith.addf %893, %912 : vector<4x512xf32>
    %c2_302 = arith.constant 2 : index
    %914 = memref.load %arg2[%c2_302] : memref<18xf32, #tpu.memory_space<smem>>
    %915 = vector.broadcast %914 : f32 to vector<4x512xf32>
    %916 = arith.mulf %915, %868 : vector<4x512xf32>
    %c8_303 = arith.constant 8 : index
    %917 = memref.load %arg2[%c8_303] : memref<18xf32, #tpu.memory_space<smem>>
    %918 = vector.broadcast %917 : f32 to vector<4x512xf32>
    %919 = arith.mulf %918, %871 : vector<4x512xf32>
    %920 = arith.addf %916, %919 : vector<4x512xf32>
    %c14_304 = arith.constant 14 : index
    %921 = memref.load %arg2[%c14_304] : memref<18xf32, #tpu.memory_space<smem>>
    %922 = vector.broadcast %921 : f32 to vector<4x512xf32>
    %923 = arith.mulf %922, %874 : vector<4x512xf32>
    %924 = arith.addf %920, %923 : vector<4x512xf32>
    %c2_305 = arith.constant 2 : index
    %925 = memref.load %arg3[%c2_305] : memref<6xf32, #tpu.memory_space<smem>>
    %926 = vector.broadcast %925 : f32 to vector<4x512xf32>
    %927 = arith.addf %924, %926 : vector<4x512xf32>
    %cst_306 = arith.constant 0.000000e+00 : f32
    %928 = vector.broadcast %cst_306 : f32 to vector<4x512xf32>
    %929 = arith.maximumf %927, %928 : vector<4x512xf32>
    %c2_307 = arith.constant 2 : index
    %930 = memref.load %arg4[%c2_307] : memref<6xf32, #tpu.memory_space<smem>>
    %931 = vector.broadcast %930 : f32 to vector<4x512xf32>
    %932 = arith.mulf %931, %929 : vector<4x512xf32>
    %933 = arith.addf %913, %932 : vector<4x512xf32>
    %c3_308 = arith.constant 3 : index
    %934 = memref.load %arg2[%c3_308] : memref<18xf32, #tpu.memory_space<smem>>
    %935 = vector.broadcast %934 : f32 to vector<4x512xf32>
    %936 = arith.mulf %935, %868 : vector<4x512xf32>
    %c9_309 = arith.constant 9 : index
    %937 = memref.load %arg2[%c9_309] : memref<18xf32, #tpu.memory_space<smem>>
    %938 = vector.broadcast %937 : f32 to vector<4x512xf32>
    %939 = arith.mulf %938, %871 : vector<4x512xf32>
    %940 = arith.addf %936, %939 : vector<4x512xf32>
    %c15_310 = arith.constant 15 : index
    %941 = memref.load %arg2[%c15_310] : memref<18xf32, #tpu.memory_space<smem>>
    %942 = vector.broadcast %941 : f32 to vector<4x512xf32>
    %943 = arith.mulf %942, %874 : vector<4x512xf32>
    %944 = arith.addf %940, %943 : vector<4x512xf32>
    %c3_311 = arith.constant 3 : index
    %945 = memref.load %arg3[%c3_311] : memref<6xf32, #tpu.memory_space<smem>>
    %946 = vector.broadcast %945 : f32 to vector<4x512xf32>
    %947 = arith.addf %944, %946 : vector<4x512xf32>
    %cst_312 = arith.constant 0.000000e+00 : f32
    %948 = vector.broadcast %cst_312 : f32 to vector<4x512xf32>
    %949 = arith.maximumf %947, %948 : vector<4x512xf32>
    %c3_313 = arith.constant 3 : index
    %950 = memref.load %arg4[%c3_313] : memref<6xf32, #tpu.memory_space<smem>>
    %951 = vector.broadcast %950 : f32 to vector<4x512xf32>
    %952 = arith.mulf %951, %949 : vector<4x512xf32>
    %953 = arith.addf %933, %952 : vector<4x512xf32>
    %c4_314 = arith.constant 4 : index
    %954 = memref.load %arg2[%c4_314] : memref<18xf32, #tpu.memory_space<smem>>
    %955 = vector.broadcast %954 : f32 to vector<4x512xf32>
    %956 = arith.mulf %955, %868 : vector<4x512xf32>
    %c10_315 = arith.constant 10 : index
    %957 = memref.load %arg2[%c10_315] : memref<18xf32, #tpu.memory_space<smem>>
    %958 = vector.broadcast %957 : f32 to vector<4x512xf32>
    %959 = arith.mulf %958, %871 : vector<4x512xf32>
    %960 = arith.addf %956, %959 : vector<4x512xf32>
    %c16_316 = arith.constant 16 : index
    %961 = memref.load %arg2[%c16_316] : memref<18xf32, #tpu.memory_space<smem>>
    %962 = vector.broadcast %961 : f32 to vector<4x512xf32>
    %963 = arith.mulf %962, %874 : vector<4x512xf32>
    %964 = arith.addf %960, %963 : vector<4x512xf32>
    %c4_317 = arith.constant 4 : index
    %965 = memref.load %arg3[%c4_317] : memref<6xf32, #tpu.memory_space<smem>>
    %966 = vector.broadcast %965 : f32 to vector<4x512xf32>
    %967 = arith.addf %964, %966 : vector<4x512xf32>
    %cst_318 = arith.constant 0.000000e+00 : f32
    %968 = vector.broadcast %cst_318 : f32 to vector<4x512xf32>
    %969 = arith.maximumf %967, %968 : vector<4x512xf32>
    %c4_319 = arith.constant 4 : index
    %970 = memref.load %arg4[%c4_319] : memref<6xf32, #tpu.memory_space<smem>>
    %971 = vector.broadcast %970 : f32 to vector<4x512xf32>
    %972 = arith.mulf %971, %969 : vector<4x512xf32>
    %973 = arith.addf %953, %972 : vector<4x512xf32>
    %c5_320 = arith.constant 5 : index
    %974 = memref.load %arg2[%c5_320] : memref<18xf32, #tpu.memory_space<smem>>
    %975 = vector.broadcast %974 : f32 to vector<4x512xf32>
    %976 = arith.mulf %975, %868 : vector<4x512xf32>
    %c11_321 = arith.constant 11 : index
    %977 = memref.load %arg2[%c11_321] : memref<18xf32, #tpu.memory_space<smem>>
    %978 = vector.broadcast %977 : f32 to vector<4x512xf32>
    %979 = arith.mulf %978, %871 : vector<4x512xf32>
    %980 = arith.addf %976, %979 : vector<4x512xf32>
    %c17_322 = arith.constant 17 : index
    %981 = memref.load %arg2[%c17_322] : memref<18xf32, #tpu.memory_space<smem>>
    %982 = vector.broadcast %981 : f32 to vector<4x512xf32>
    %983 = arith.mulf %982, %874 : vector<4x512xf32>
    %984 = arith.addf %980, %983 : vector<4x512xf32>
    %c5_323 = arith.constant 5 : index
    %985 = memref.load %arg3[%c5_323] : memref<6xf32, #tpu.memory_space<smem>>
    %986 = vector.broadcast %985 : f32 to vector<4x512xf32>
    %987 = arith.addf %984, %986 : vector<4x512xf32>
    %cst_324 = arith.constant 0.000000e+00 : f32
    %988 = vector.broadcast %cst_324 : f32 to vector<4x512xf32>
    %989 = arith.maximumf %987, %988 : vector<4x512xf32>
    %c5_325 = arith.constant 5 : index
    %990 = memref.load %arg4[%c5_325] : memref<6xf32, #tpu.memory_space<smem>>
    %991 = vector.broadcast %990 : f32 to vector<4x512xf32>
    %992 = arith.mulf %991, %989 : vector<4x512xf32>
    %993 = arith.addf %973, %992 : vector<4x512xf32>
    %cst_326 = arith.constant dense<0xFF800000> : vector<512xf32>
    %994 = vector.multi_reduction <maximumf>, %993, %cst_326 [0] : vector<4x512xf32> to vector<512xf32>
    %995 = vector.shape_cast %994 : vector<512xf32> to vector<1x512xf32>
    %996 = vector.broadcast %995 : vector<1x512xf32> to vector<4x512xf32>
    %997 = arith.subf %993, %996 : vector<4x512xf32>
    %998 = math.exp %997 : vector<4x512xf32>
    %cst_327 = arith.constant dense<0.000000e+00> : vector<512xf32>
    %999 = vector.multi_reduction <add>, %998, %cst_327 [0] : vector<4x512xf32> to vector<512xf32>
    %1000 = vector.shape_cast %999 : vector<512xf32> to vector<1x512xf32>
    %1001 = math.log %1000 : vector<1x512xf32>
    %1002 = vector.broadcast %1001 : vector<1x512xf32> to vector<4x512xf32>
    %1003 = arith.subf %997, %1002 : vector<4x512xf32>
    %c0_328 = arith.constant 0 : index
    %c0_329 = arith.constant 0 : index
    %1004 = arith.index_cast %865 : i32 to index
    %1005 = vector.load %arg6[%c0_328, %c0_329, %1004] : memref<1x4x4096xf32, #tpu.memory_space<vmem>>, vector<1x4x512xf32>
    %1006 = vector.shape_cast %1005 : vector<1x4x512xf32> to vector<4x512xf32>
    %1007 = vector.shape_cast %1003 : vector<4x512xf32> to vector<1x4x512xf32>
    tpu.vector_store %arg6[%c0_328, %c0_329, %1004], %1007 {strides = array<i32>} : memref<1x4x4096xf32, #tpu.memory_space<vmem>>, vector<1x4x512xf32>,
    %c7_i32 = arith.constant 7 : i32
    %c512_i32_330 = arith.constant 512 : i32
    %1008 = arith.muli %c7_i32, %c512_i32_330 : i32
    %1009 = tpu.assume_multiple %1008, 512 : i32
    %c0_331 = arith.constant 0 : index
    %c0_332 = arith.constant 0 : index
    %c0_333 = arith.constant 0 : index
    %1010 = arith.index_cast %1009 : i32 to index
    %1011 = vector.load %arg5[%c0_331, %c0_332, %c0_333, %1010] : memref<1x3x4x4096xf32, #tpu.memory_space<vmem>>, vector<1x1x4x512xf32>
    %1012 = vector.shape_cast %1011 : vector<1x1x4x512xf32> to vector<4x512xf32>
    %c0_334 = arith.constant 0 : index
    %c1_335 = arith.constant 1 : index
    %c0_336 = arith.constant 0 : index
    %1013 = arith.index_cast %1009 : i32 to index
    %1014 = vector.load %arg5[%c0_334, %c1_335, %c0_336, %1013] : memref<1x3x4x4096xf32, #tpu.memory_space<vmem>>, vector<1x1x4x512xf32>
    %1015 = vector.shape_cast %1014 : vector<1x1x4x512xf32> to vector<4x512xf32>
    %c0_337 = arith.constant 0 : index
    %c2_338 = arith.constant 2 : index
    %c0_339 = arith.constant 0 : index
    %1016 = arith.index_cast %1009 : i32 to index
    %1017 = vector.load %arg5[%c0_337, %c2_338, %c0_339, %1016] : memref<1x3x4x4096xf32, #tpu.memory_space<vmem>>, vector<1x1x4x512xf32>
    %1018 = vector.shape_cast %1017 : vector<1x1x4x512xf32> to vector<4x512xf32>
    %c0_340 = arith.constant 0 : index
    %1019 = memref.load %arg2[%c0_340] : memref<18xf32, #tpu.memory_space<smem>>
    %1020 = vector.broadcast %1019 : f32 to vector<4x512xf32>
    %1021 = arith.mulf %1020, %1012 : vector<4x512xf32>
    %c6_341 = arith.constant 6 : index
    %1022 = memref.load %arg2[%c6_341] : memref<18xf32, #tpu.memory_space<smem>>
    %1023 = vector.broadcast %1022 : f32 to vector<4x512xf32>
    %1024 = arith.mulf %1023, %1015 : vector<4x512xf32>
    %1025 = arith.addf %1021, %1024 : vector<4x512xf32>
    %c12_342 = arith.constant 12 : index
    %1026 = memref.load %arg2[%c12_342] : memref<18xf32, #tpu.memory_space<smem>>
    %1027 = vector.broadcast %1026 : f32 to vector<4x512xf32>
    %1028 = arith.mulf %1027, %1018 : vector<4x512xf32>
    %1029 = arith.addf %1025, %1028 : vector<4x512xf32>
    %c0_343 = arith.constant 0 : index
    %1030 = memref.load %arg3[%c0_343] : memref<6xf32, #tpu.memory_space<smem>>
    %1031 = vector.broadcast %1030 : f32 to vector<4x512xf32>
    %1032 = arith.addf %1029, %1031 : vector<4x512xf32>
    %cst_344 = arith.constant 0.000000e+00 : f32
    %1033 = vector.broadcast %cst_344 : f32 to vector<4x512xf32>
    %1034 = arith.maximumf %1032, %1033 : vector<4x512xf32>
    %c0_345 = arith.constant 0 : index
    %1035 = memref.load %arg4[%c0_345] : memref<6xf32, #tpu.memory_space<smem>>
    %1036 = vector.broadcast %1035 : f32 to vector<4x512xf32>
    %1037 = arith.mulf %1036, %1034 : vector<4x512xf32>
    %c1_346 = arith.constant 1 : index
    %1038 = memref.load %arg2[%c1_346] : memref<18xf32, #tpu.memory_space<smem>>
    %1039 = vector.broadcast %1038 : f32 to vector<4x512xf32>
    %1040 = arith.mulf %1039, %1012 : vector<4x512xf32>
    %c7_347 = arith.constant 7 : index
    %1041 = memref.load %arg2[%c7_347] : memref<18xf32, #tpu.memory_space<smem>>
    %1042 = vector.broadcast %1041 : f32 to vector<4x512xf32>
    %1043 = arith.mulf %1042, %1015 : vector<4x512xf32>
    %1044 = arith.addf %1040, %1043 : vector<4x512xf32>
    %c13_348 = arith.constant 13 : index
    %1045 = memref.load %arg2[%c13_348] : memref<18xf32, #tpu.memory_space<smem>>
    %1046 = vector.broadcast %1045 : f32 to vector<4x512xf32>
    %1047 = arith.mulf %1046, %1018 : vector<4x512xf32>
    %1048 = arith.addf %1044, %1047 : vector<4x512xf32>
    %c1_349 = arith.constant 1 : index
    %1049 = memref.load %arg3[%c1_349] : memref<6xf32, #tpu.memory_space<smem>>
    %1050 = vector.broadcast %1049 : f32 to vector<4x512xf32>
    %1051 = arith.addf %1048, %1050 : vector<4x512xf32>
    %cst_350 = arith.constant 0.000000e+00 : f32
    %1052 = vector.broadcast %cst_350 : f32 to vector<4x512xf32>
    %1053 = arith.maximumf %1051, %1052 : vector<4x512xf32>
    %c1_351 = arith.constant 1 : index
    %1054 = memref.load %arg4[%c1_351] : memref<6xf32, #tpu.memory_space<smem>>
    %1055 = vector.broadcast %1054 : f32 to vector<4x512xf32>
    %1056 = arith.mulf %1055, %1053 : vector<4x512xf32>
    %1057 = arith.addf %1037, %1056 : vector<4x512xf32>
    %c2_352 = arith.constant 2 : index
    %1058 = memref.load %arg2[%c2_352] : memref<18xf32, #tpu.memory_space<smem>>
    %1059 = vector.broadcast %1058 : f32 to vector<4x512xf32>
    %1060 = arith.mulf %1059, %1012 : vector<4x512xf32>
    %c8_353 = arith.constant 8 : index
    %1061 = memref.load %arg2[%c8_353] : memref<18xf32, #tpu.memory_space<smem>>
    %1062 = vector.broadcast %1061 : f32 to vector<4x512xf32>
    %1063 = arith.mulf %1062, %1015 : vector<4x512xf32>
    %1064 = arith.addf %1060, %1063 : vector<4x512xf32>
    %c14_354 = arith.constant 14 : index
    %1065 = memref.load %arg2[%c14_354] : memref<18xf32, #tpu.memory_space<smem>>
    %1066 = vector.broadcast %1065 : f32 to vector<4x512xf32>
    %1067 = arith.mulf %1066, %1018 : vector<4x512xf32>
    %1068 = arith.addf %1064, %1067 : vector<4x512xf32>
    %c2_355 = arith.constant 2 : index
    %1069 = memref.load %arg3[%c2_355] : memref<6xf32, #tpu.memory_space<smem>>
    %1070 = vector.broadcast %1069 : f32 to vector<4x512xf32>
    %1071 = arith.addf %1068, %1070 : vector<4x512xf32>
    %cst_356 = arith.constant 0.000000e+00 : f32
    %1072 = vector.broadcast %cst_356 : f32 to vector<4x512xf32>
    %1073 = arith.maximumf %1071, %1072 : vector<4x512xf32>
    %c2_357 = arith.constant 2 : index
    %1074 = memref.load %arg4[%c2_357] : memref<6xf32, #tpu.memory_space<smem>>
    %1075 = vector.broadcast %1074 : f32 to vector<4x512xf32>
    %1076 = arith.mulf %1075, %1073 : vector<4x512xf32>
    %1077 = arith.addf %1057, %1076 : vector<4x512xf32>
    %c3_358 = arith.constant 3 : index
    %1078 = memref.load %arg2[%c3_358] : memref<18xf32, #tpu.memory_space<smem>>
    %1079 = vector.broadcast %1078 : f32 to vector<4x512xf32>
    %1080 = arith.mulf %1079, %1012 : vector<4x512xf32>
    %c9_359 = arith.constant 9 : index
    %1081 = memref.load %arg2[%c9_359] : memref<18xf32, #tpu.memory_space<smem>>
    %1082 = vector.broadcast %1081 : f32 to vector<4x512xf32>
    %1083 = arith.mulf %1082, %1015 : vector<4x512xf32>
    %1084 = arith.addf %1080, %1083 : vector<4x512xf32>
    %c15_360 = arith.constant 15 : index
    %1085 = memref.load %arg2[%c15_360] : memref<18xf32, #tpu.memory_space<smem>>
    %1086 = vector.broadcast %1085 : f32 to vector<4x512xf32>
    %1087 = arith.mulf %1086, %1018 : vector<4x512xf32>
    %1088 = arith.addf %1084, %1087 : vector<4x512xf32>
    %c3_361 = arith.constant 3 : index
    %1089 = memref.load %arg3[%c3_361] : memref<6xf32, #tpu.memory_space<smem>>
    %1090 = vector.broadcast %1089 : f32 to vector<4x512xf32>
    %1091 = arith.addf %1088, %1090 : vector<4x512xf32>
    %cst_362 = arith.constant 0.000000e+00 : f32
    %1092 = vector.broadcast %cst_362 : f32 to vector<4x512xf32>
    %1093 = arith.maximumf %1091, %1092 : vector<4x512xf32>
    %c3_363 = arith.constant 3 : index
    %1094 = memref.load %arg4[%c3_363] : memref<6xf32, #tpu.memory_space<smem>>
    %1095 = vector.broadcast %1094 : f32 to vector<4x512xf32>
    %1096 = arith.mulf %1095, %1093 : vector<4x512xf32>
    %1097 = arith.addf %1077, %1096 : vector<4x512xf32>
    %c4_364 = arith.constant 4 : index
    %1098 = memref.load %arg2[%c4_364] : memref<18xf32, #tpu.memory_space<smem>>
    %1099 = vector.broadcast %1098 : f32 to vector<4x512xf32>
    %1100 = arith.mulf %1099, %1012 : vector<4x512xf32>
    %c10_365 = arith.constant 10 : index
    %1101 = memref.load %arg2[%c10_365] : memref<18xf32, #tpu.memory_space<smem>>
    %1102 = vector.broadcast %1101 : f32 to vector<4x512xf32>
    %1103 = arith.mulf %1102, %1015 : vector<4x512xf32>
    %1104 = arith.addf %1100, %1103 : vector<4x512xf32>
    %c16_366 = arith.constant 16 : index
    %1105 = memref.load %arg2[%c16_366] : memref<18xf32, #tpu.memory_space<smem>>
    %1106 = vector.broadcast %1105 : f32 to vector<4x512xf32>
    %1107 = arith.mulf %1106, %1018 : vector<4x512xf32>
    %1108 = arith.addf %1104, %1107 : vector<4x512xf32>
    %c4_367 = arith.constant 4 : index
    %1109 = memref.load %arg3[%c4_367] : memref<6xf32, #tpu.memory_space<smem>>
    %1110 = vector.broadcast %1109 : f32 to vector<4x512xf32>
    %1111 = arith.addf %1108, %1110 : vector<4x512xf32>
    %cst_368 = arith.constant 0.000000e+00 : f32
    %1112 = vector.broadcast %cst_368 : f32 to vector<4x512xf32>
    %1113 = arith.maximumf %1111, %1112 : vector<4x512xf32>
    %c4_369 = arith.constant 4 : index
    %1114 = memref.load %arg4[%c4_369] : memref<6xf32, #tpu.memory_space<smem>>
    %1115 = vector.broadcast %1114 : f32 to vector<4x512xf32>
    %1116 = arith.mulf %1115, %1113 : vector<4x512xf32>
    %1117 = arith.addf %1097, %1116 : vector<4x512xf32>
    %c5_370 = arith.constant 5 : index
    %1118 = memref.load %arg2[%c5_370] : memref<18xf32, #tpu.memory_space<smem>>
    %1119 = vector.broadcast %1118 : f32 to vector<4x512xf32>
    %1120 = arith.mulf %1119, %1012 : vector<4x512xf32>
    %c11_371 = arith.constant 11 : index
    %1121 = memref.load %arg2[%c11_371] : memref<18xf32, #tpu.memory_space<smem>>
    %1122 = vector.broadcast %1121 : f32 to vector<4x512xf32>
    %1123 = arith.mulf %1122, %1015 : vector<4x512xf32>
    %1124 = arith.addf %1120, %1123 : vector<4x512xf32>
    %c17_372 = arith.constant 17 : index
    %1125 = memref.load %arg2[%c17_372] : memref<18xf32, #tpu.memory_space<smem>>
    %1126 = vector.broadcast %1125 : f32 to vector<4x512xf32>
    %1127 = arith.mulf %1126, %1018 : vector<4x512xf32>
    %1128 = arith.addf %1124, %1127 : vector<4x512xf32>
    %c5_373 = arith.constant 5 : index
    %1129 = memref.load %arg3[%c5_373] : memref<6xf32, #tpu.memory_space<smem>>
    %1130 = vector.broadcast %1129 : f32 to vector<4x512xf32>
    %1131 = arith.addf %1128, %1130 : vector<4x512xf32>
    %cst_374 = arith.constant 0.000000e+00 : f32
    %1132 = vector.broadcast %cst_374 : f32 to vector<4x512xf32>
    %1133 = arith.maximumf %1131, %1132 : vector<4x512xf32>
    %c5_375 = arith.constant 5 : index
    %1134 = memref.load %arg4[%c5_375] : memref<6xf32, #tpu.memory_space<smem>>
    %1135 = vector.broadcast %1134 : f32 to vector<4x512xf32>
    %1136 = arith.mulf %1135, %1133 : vector<4x512xf32>
    %1137 = arith.addf %1117, %1136 : vector<4x512xf32>
    %cst_376 = arith.constant dense<0xFF800000> : vector<512xf32>
    %1138 = vector.multi_reduction <maximumf>, %1137, %cst_376 [0] : vector<4x512xf32> to vector<512xf32>
    %1139 = vector.shape_cast %1138 : vector<512xf32> to vector<1x512xf32>
    %1140 = vector.broadcast %1139 : vector<1x512xf32> to vector<4x512xf32>
    %1141 = arith.subf %1137, %1140 : vector<4x512xf32>
    %1142 = math.exp %1141 : vector<4x512xf32>
    %cst_377 = arith.constant dense<0.000000e+00> : vector<512xf32>
    %1143 = vector.multi_reduction <add>, %1142, %cst_377 [0] : vector<4x512xf32> to vector<512xf32>
    %1144 = vector.shape_cast %1143 : vector<512xf32> to vector<1x512xf32>
    %1145 = math.log %1144 : vector<1x512xf32>
    %1146 = vector.broadcast %1145 : vector<1x512xf32> to vector<4x512xf32>
    %1147 = arith.subf %1141, %1146 : vector<4x512xf32>
    %c0_378 = arith.constant 0 : index
    %c0_379 = arith.constant 0 : index
    %1148 = arith.index_cast %1009 : i32 to index
    %1149 = vector.load %arg6[%c0_378, %c0_379, %1148] : memref<1x4x4096xf32, #tpu.memory_space<vmem>>, vector<1x4x512xf32>
    %1150 = vector.shape_cast %1149 : vector<1x4x512xf32> to vector<4x512xf32>
    %1151 = vector.shape_cast %1147 : vector<4x512xf32> to vector<1x4x512xf32>
    tpu.vector_store %arg6[%c0_378, %c0_379, %1148], %1151 {strides = array<i32>} : memref<1x4x4096xf32, #tpu.memory_space<vmem>>, vector<1x4x512xf32>,
    %c8_i32 = arith.constant 8 : i32
    return
  }
  func.func @transform_0(%arg0: i32, %arg1: i32) -> i32 {
    %c0_i32 = arith.constant 0 : i32
    %c0_i32_0 = arith.constant 0 : i32
    return %c0_i32 : i32
  }
  func.func @transform_1(%arg0: i32, %arg1: i32) -> i32 {
    %c0_i32 = arith.constant 0 : i32
    %c0_i32_0 = arith.constant 0 : i32
    return %c0_i32 : i32
  }
  func.func @transform_2(%arg0: i32, %arg1: i32) -> i32 {
    %c0_i32 = arith.constant 0 : i32
    %c0_i32_0 = arith.constant 0 : i32
    return %c0_i32 : i32
  }
  func.func @transform_3(%arg0: i32, %arg1: i32) -> (i32, i32, i32, i32) {
    %c0_i32 = arith.constant 0 : i32
    %c0_i32_0 = arith.constant 0 : i32
    %c0_i32_1 = arith.constant 0 : i32
    return %arg0, %c0_i32, %c0_i32_0, %arg1 : i32, i32, i32, i32
  }
  func.func @transform_4(%arg0: i32, %arg1: i32) -> (i32, i32, i32) {
    %c0_i32 = arith.constant 0 : i32
    %c0_i32_0 = arith.constant 0 : i32
    return %arg0, %c0_i32, %arg1 : i32, i32, i32
  }
}

</mosaic_0001>

<llo_original>
// kernel: tpu_custom_call.1
$region0: #{tpu_custom_call.1}
  #allocation0 [shape = 'u32[]', space=smem, size = 0x4, offset = 0x4, fixed_abs, tag = 'smem constant byte address 0x4 - core index']
  #allocation1 [shape = 'u32[144,128]{1,0:T(1,128)}', space=vmem, size = 0x12000, scoped, tag = 'internal scratch']
  %s0 = inlined_call_operand.hbm [shape: f32[18], index: 0, kind: input, shape index: {}]
  %s1 = inlined_call_operand.vmem [shape: f32[6], index: 1, kind: input, shape index: {}]
  %s2 = inlined_call_operand.vmem [shape: f32[6], index: 2, kind: input, shape index: {}]
  %s3 = inlined_call_operand.hbm [shape: f32[2,3,4,4096], index: 3, kind: input, shape index: {}]
  %s4 = inlined_call_operand.hbm [shape: f32[2,4,4096], index: 4, kind: output, shape index: {}]
  %s5 = sld [smem:[#allocation0]]
  $region65: #{tpu_custom_call.1} parent=0
    _
  %s7 = ssub.s32 1, %s5
  %s8 = scalar_select 0, %s7, %s5
  $region1: #{tpu_custom_call.1} parent=0
    #allocation2 [shape = 'u8[512]{0}', space=smem, size = 0x200, scoped, tag = 'input window, operand 0, single buffered']
    #allocation3 [shape = 's32[2]{0}', space=sflag, size = 0x8, scoped, tag = 'scoped memory for tpu_custom_call.1']
    #allocation4 [shape = 's32[2]{0}', space=sflag, size = 0x8, scoped, tag = 'scoped memory for tpu_custom_call.1']
    #allocation5 [shape = 's32[2]{0}', space=sflag, size = 0x8, scoped, tag = 'scoped memory for tpu_custom_call.1']
    #allocation6 [shape = 's32[2]{0}', space=sflag, size = 0x8, scoped, tag = 'scoped memory for tpu_custom_call.1']
    #allocation7 [shape = 'u8[512]{0}', space=smem, size = 0x200, scoped, tag = 'input window, operand 1, single buffered']
    #allocation8 [shape = 'u8[512]{0}', space=smem, size = 0x200, scoped, tag = 'input window, operand 2, single buffered']
    #allocation9 [shape = 's32[1]{0}', space=sflag, size = 0x4, scoped, tag = 'scoped memory for tpu_custom_call.1']
    #allocation10 [shape = 'u8[393216]{0}', space=vmem, size = 0x60000, scoped, tag = 'input window, operand 3']
    #allocation11 [shape = 'u8[131072]{0}', space=vmem, size = 0x20000, scoped, tag = 'output window, operand 0']
    %9 = vsyncpa [#allocation5], 0
    %10 = vsyncpa [#allocation6], 0
    %11 = vsyncpa [#allocation9], 0
    %12 = vsyncpa [#allocation3], 0
    %s13 = scalar_lea.sflag [#allocation3], 1
    %14 = vsyncpa %s13, 0
    %15 = vsyncpa [#allocation4], 0
    %s16 = scalar_lea.sflag [#allocation4], 1
    %17 = vsyncpa %s16, 0
    loop: start=0, step=1, limit=4
    $region2: #{tpu_custom_call.1} parent=1 // loop_pre_header
      _
    $region3: #{tpu_custom_call.1} parent=1 // loop_header
      %s19 = sphi 0, %s23
      %p20 = scmp.ge.s32.totalorder %s19, 4
      %s26 = sphi 0, %s38
      %s27 = sphi 0, %s34
      %s28 = sphi 0, %s26
      %s29 = sphi 0, %s27
      %s30 = sphi 0, %s28
      %s31 = sphi 0, %s29
      %s39 = sphi 0, %s39
      %s41 = sphi 0, %s39
      %s42 = sphi 0, %s41
      %s56 = sphi 0, %s42
      %s60 = sphi 0, %s60
      %s62 = sphi 0, %s60
      %s63 = sphi 0, %s62
      %s77 = sphi 0, %s63
      %s81 = sphi 0, %s81
      %s83 = sphi 0, %s81
      %s84 = sphi 0, %s83
      %s98 = sphi 0, %s84
      %s106 = sphi 0, %s108
      %s109 = sphi 0, %s106
      %s110 = sphi 0, %s109
      %s126 = sphi 0, %s110
      %s134 = sphi 0, %s136
      %s137 = sphi 0, %s134
      %s138 = sphi 0, %s137
      %s154 = sphi 0, %s138
    $region4: #{tpu_custom_call.1} parent=1 // loop_header_branch
      %22 = sbr.rel (%p20) target = $region8
    $region5: #{tpu_custom_call.1} parent=1 // loop_body
      %s24 = ssub.s32 %s19, 1
      %s25 = ssub.s32 %s19, 2
      %s32 = sadd.s32 1, %s27
      %p33 = scmp.ge.s32.totalorder %s32, 1
      %s34 = scalar_select %p33, 0, %s32
      %s35 = sadd.s32 1, %s26
      %s36 = scalar_select %p33, %s35, %s26
      %p37 = scmp.ge.s32.totalorder %s36, 2
      %s38 = scalar_select %p37, 0, %s36
      %s40 = sadd.s32 %s39, 1
      %p43 = scmp.eq.s32.totalorder %s19, 1
      %p44 = scmp.ne.s32.totalorder %s39, %s41
      %p45 = scmp.eq.s32.totalorder %s19, 0
      %p46 = por %p44, %p45
      %p47 = scmp.ne.s32.totalorder %s39, %s41
      %p48 = scmp.eq.s32.totalorder %s24, 1
      %p49 = por %p47, %p48
      %p50 = scmp.ne.s32.totalorder %s41, %s42
      %p51 = scmp.eq.s32.totalorder %s24, 0
      %p52 = por %p50, %p51
      %p53 = scmp.ne.s32.totalorder %s41, %s42
      %p54 = scmp.eq.s32.totalorder %s25, 1
      %p55 = por %p53, %p54
      %p57 = scmp.ne.s32.totalorder %s42, %s56
      %p58 = scmp.eq.s32.totalorder %s25, 0
      %p59 = por %p57, %p58
      %s61 = sadd.s32 %s60, 1
      %p64 = scmp.eq.s32.totalorder %s19, 1
      %p65 = scmp.ne.s32.totalorder %s60, %s62
      %p66 = scmp.eq.s32.totalorder %s19, 0
      %p67 = por %p65, %p66
      %p68 = scmp.ne.s32.totalorder %s60, %s62
      %p69 = scmp.eq.s32.totalorder %s24, 1
      %p70 = por %p68, %p69
      %p71 = scmp.ne.s32.totalorder %s62, %s63
      %p72 = scmp.eq.s32.totalorder %s24, 0
      %p73 = por %p71, %p72
      %p74 = scmp.ne.s32.totalorder %s62, %s63
      %p75 = scmp.eq.s32.totalorder %s25, 1
      %p76 = por %p74, %p75
      %p78 = scmp.ne.s32.totalorder %s63, %s77
      %p79 = scmp.eq.s32.totalorder %s25, 0
      %p80 = por %p78, %p79
      %s82 = sadd.s32 %s81, 1
      %p85 = scmp.eq.s32.totalorder %s19, 1
      %p86 = scmp.ne.s32.totalorder %s81, %s83
      %p87 = scmp.eq.s32.totalorder %s19, 0
      %p88 = por %p86, %p87
      %p89 = scmp.ne.s32.totalorder %s81, %s83
      %p90 = scmp.eq.s32.totalorder %s24, 1
      %p91 = por %p89, %p90
      %p92 = scmp.ne.s32.totalorder %s83, %s84
      %p93 = scmp.eq.s32.totalorder %s24, 0
      %p94 = por %p92, %p93
      %p95 = scmp.ne.s32.totalorder %s83, %s84
      %p96 = scmp.eq.s32.totalorder %s25, 1
      %p97 = por %p95, %p96
      %p99 = scmp.ne.s32.totalorder %s84, %s98
      %p100 = scmp.eq.s32.totalorder %s25, 0
      %p101 = por %p99, %p100
      %s102 = ssub.s32 %s26, %s38
      %s103 = ssub.s32 %s27, %s34
      %s104 = sor.u32 %s102, %s103
      %p105 = scmp.eq.s32.totalorder %s104, 0
      %s107 = sadd.s32 %s106, 1
      %s108 = scalar_select %p105, %s106, %s107
      %p111 = pneg %p105
      %p112 = scmp.eq.s32.totalorder %s19, 1
      %p113 = por %p111, %p112
      %p114 = scmp.ne.s32.totalorder %s106, %s109
      %p115 = scmp.eq.s32.totalorder %s19, 0
      %p116 = por %p114, %p115
      %p117 = scmp.ne.s32.totalorder %s106, %s109
      %p118 = scmp.eq.s32.totalorder %s24, 1
      %p119 = por %p117, %p118
      %p120 = scmp.ne.s32.totalorder %s109, %s110
      %p121 = scmp.eq.s32.totalorder %s24, 0
      %p122 = por %p120, %p121
      %p123 = scmp.ne.s32.totalorder %s109, %s110
      %p124 = scmp.eq.s32.totalorder %s25, 1
      %p125 = por %p123, %p124
      %p127 = scmp.ne.s32.totalorder %s110, %s126
      %p128 = scmp.eq.s32.totalorder %s25, 0
      %p129 = por %p127, %p128
      %s130 = ssub.s32 %s26, %s38
      %s131 = ssub.s32 %s27, %s34
      %s132 = sor.u32 %s130, %s131
      %p133 = scmp.eq.s32.totalorder %s132, 0
      %s135 = sadd.s32 %s134, 1
      %s136 = scalar_select %p133, %s134, %s135
      %p139 = pneg %p133
      %p140 = scmp.eq.s32.totalorder %s19, 1
      %p141 = por %p139, %p140
      %p142 = scmp.ne.s32.totalorder %s134, %s137
      %p143 = scmp.eq.s32.totalorder %s19, 0
      %p144 = por %p142, %p143
      %p145 = scmp.ne.s32.totalorder %s134, %s137
      %p146 = scmp.eq.s32.totalorder %s24, 1
      %p147 = por %p145, %p146
      %p148 = scmp.ne.s32.totalorder %s137, %s138
      %p149 = scmp.eq.s32.totalorder %s24, 0
      %p150 = por %p148, %p149
      %p151 = scmp.ne.s32.totalorder %s137, %s138
      %p152 = scmp.eq.s32.totalorder %s25, 1
      %p153 = por %p151, %p152
      %p155 = scmp.ne.s32.totalorder %s138, %s154
      %p156 = scmp.eq.s32.totalorder %s25, 0
      %p157 = por %p155, %p156
      %p158 = scmp.le.s32.totalorder 1, %s19
      %p159 = scmp.lt.s32.totalorder %s19, 3
      %p160 = pnand %p158, %p159
      %p161 = pneg %p160
      // Predicated region
      $region9: #{tpu_custom_call.1} parent=5 // pred_check
        _
      $region10: #{tpu_custom_call.1} parent=5 // pred_check_branch
        %163 = sbr.rel (%p160) target = $region12
      $region11: #{tpu_custom_call.1} parent=5 // pred_region
        %s164 = ssub.s32 %s19, 1
        // Predicated region
        $region13: #{tpu_custom_call.1} parent=11 // pred_check
          %p165 = pneg %p52
        $region14: #{tpu_custom_call.1} parent=11 // pred_check_branch
          %167 = sbr.rel (%p165) target = $region16
        $region15: #{tpu_custom_call.1} parent=11 // pred_region
          %s169 = ssub.s32 16, 16
          %170 = vsyncadd [#allocation5], %s169
          %173 = dma.hbm_to_smem %s0, 16, [#allocation2], [#allocation5]
        $region16: #{tpu_custom_call.1} parent=11 // pred_fallthru
          _
        // Predicated region
        $region17: #{tpu_custom_call.1} parent=11 // pred_check
          %p174 = pneg %p73
        $region18: #{tpu_custom_call.1} parent=11 // pred_check_branch
          %176 = sbr.rel (%p174) target = $region20
        $region19: #{tpu_custom_call.1} parent=11 // pred_region
          %s178 = ssub.s32 16, 16
          %179 = vsyncadd [#allocation6], %s178
          %s181 = sshll.u32 %s1, 4
          %s182 = int_to_ptr.vmem [resolvable:$true] %s181
          %184 = dma.vmem_to_smem %s182, 16, [#allocation7], [#allocation6]
        $region20: #{tpu_custom_call.1} parent=11 // pred_fallthru
          _
        // Predicated region
        $region21: #{tpu_custom_call.1} parent=11 // pred_check
          %p185 = pneg %p94
        $region22: #{tpu_custom_call.1} parent=11 // pred_check_branch
          %187 = sbr.rel (%p185) target = $region24
        $region23: #{tpu_custom_call.1} parent=11 // pred_region
          %s189 = ssub.s32 16, 16
          %190 = vsyncadd [#allocation9], %s189
          %s192 = sshll.u32 %s2, 4
          %s193 = int_to_ptr.vmem [resolvable:$true] %s192
          %195 = dma.vmem_to_smem %s193, 16, [#allocation8], [#allocation9]
        $region24: #{tpu_custom_call.1} parent=11 // pred_fallthru
          _
      $region12: #{tpu_custom_call.1} parent=5 // pred_fallthru
        _
      %p196 = scmp.lt.s32.totalorder %s19, 2
      // Predicated region
      $region25: #{tpu_custom_call.1} parent=5 // pred_check
        %p197 = pneg %p196
      $region26: #{tpu_custom_call.1} parent=5 // pred_check_branch
        %199 = sbr.rel (%p197) target = $region28
      $region27: #{tpu_custom_call.1} parent=5 // pred_region
        // Predicated region
        $region29: #{tpu_custom_call.1} parent=27 // pred_check
          %p200 = pneg %p116
        $region30: #{tpu_custom_call.1} parent=27 // pred_check_branch
          %202 = sbr.rel (%p200) target = $region32
        $region31: #{tpu_custom_call.1} parent=27 // pred_region
          %s203 = sand.u32 %s106, 1
          %s204 = scalar_lea.sflag [#allocation3], %s203
          %s205 = sand.u32 %s106, 1
          %s206 = smul.addr %s205, 384
          %s207 = scalar_lea.vmem [#allocation10], %s206
          %s208 = smul.u32 32, %s27
          %s210 = ssub.s32 6144, 6144
          %211 = vsyncadd %s204, %s210
          %s212 = smul.addr %s26, 96
          %s213 = sadd.s32 %s208, %s212
          %s214 = smul.addr %s213, 64
          %s215 = scalar_lea.hbm %s3, %s214
          %s216 = sshll.u32 %s207, 4
          %s217 = int_to_ptr.vmem [resolvable:$true] %s216
          %222 = dma.hbm_to_vmem [thread:$0]  %s215, 6144, %s217, %s204, 2048, 2048, 128
        $region32: #{tpu_custom_call.1} parent=27 // pred_fallthru
          _
      $region28: #{tpu_custom_call.1} parent=5 // pred_fallthru
        _
      %p223 = scmp.le.s32.totalorder 1, %s19
      %p224 = scmp.lt.s32.totalorder %s19, 3
      %p225 = pnand %p223, %p224
      %p226 = pneg %p225
      // Predicated region
      $region33: #{tpu_custom_call.1} parent=5 // pred_check
        _
      $region34: #{tpu_custom_call.1} parent=5 // pred_check_branch
        %228 = sbr.rel (%p225) target = $region36
      $region35: #{tpu_custom_call.1} parent=5 // pred_region
        %s229 = ssub.s32 %s19, 1
        // Predicated region
        $region37: #{tpu_custom_call.1} parent=35 // pred_check
          %p230 = pneg %p52
        $region38: #{tpu_custom_call.1} parent=35 // pred_check_branch
          %232 = sbr.rel (%p230) target = $region40
        $region39: #{tpu_custom_call.1} parent=35 // pred_region
          %233 = dma.done [#allocation5], 16
        $region40: #{tpu_custom_call.1} parent=35 // pred_fallthru
          _
        // Predicated region
        $region41: #{tpu_custom_call.1} parent=35 // pred_check
          %p234 = pneg %p73
        $region42: #{tpu_custom_call.1} parent=35 // pred_check_branch
          %236 = sbr.rel (%p234) target = $region44
        $region43: #{tpu_custom_call.1} parent=35 // pred_region
          %237 = dma.done [#allocation6], 16
        $region44: #{tpu_custom_call.1} parent=35 // pred_fallthru
          _
        // Predicated region
        $region45: #{tpu_custom_call.1} parent=35 // pred_check
          %p238 = pneg %p94
        $region46: #{tpu_custom_call.1} parent=35 // pred_check_branch
          %240 = sbr.rel (%p238) target = $region48
        $region47: #{tpu_custom_call.1} parent=35 // pred_region
          %241 = dma.done [#allocation9], 16
        $region48: #{tpu_custom_call.1} parent=35 // pred_fallthru
          _
        %s242 = sand.u32 %s109, 1
        %s243 = scalar_lea.sflag [#allocation3], %s242
        %s244 = sand.u32 %s109, 1
        %s245 = smul.addr %s244, 384
        %s246 = scalar_lea.vmem [#allocation10], %s245
        // Predicated region
        $region49: #{tpu_custom_call.1} parent=35 // pred_check
          %p247 = pneg %p122
        $region50: #{tpu_custom_call.1} parent=35 // pred_check_branch
          %249 = sbr.rel (%p247) target = $region52
        $region51: #{tpu_custom_call.1} parent=35 // pred_region
          %250 = dma.done %s243, 6144
        $region52: #{tpu_custom_call.1} parent=35 // pred_fallthru
          _
        %251 = sfence
        %p252 = pneg %p52
        %p253 = pneg %p49
        %p254 = pneg %p73
        %p255 = pneg %p70
        %p256 = pneg %p94
        %p257 = pneg %p91
        %s258 = sand.u32 %s109, 1
        %s259 = scalar_lea.sflag [#allocation3], %s258
        %s260 = sand.u32 %s109, 1
        %s261 = smul.addr %s260, 384
        %s262 = scalar_lea.vmem [#allocation10], %s261
        %p263 = pneg %p122
        %p264 = pneg %p119
        %p265 = pneg %p150
        %p266 = pneg %p147
        %s267 = sand.u32 %s137, 1
        %s268 = scalar_lea.sflag [#allocation4], %s267
        %s269 = sand.u32 %s137, 1
        %s270 = smul.addr %s269, 128
        %s271 = scalar_lea.vmem [#allocation11], %s270
        %s272 = smul.u32 32, %s29
        %s273 = smul.u32 32, %s29
        %v274 = vld [vmem:[%s246] sm:$0xff]
        %v275 = vld [vmem:[%s246 + $0x8] sm:$0xff]
        %s276 = sadd.s32 0, 32
        %s277 = smul.addr %s276, 4
        %s278 = scalar_lea.vmem %s246, %s277 [#allocation10]
        %v279 = vld [vmem:[%s278] sm:$0xff]
        %v280 = vld [vmem:[%s278 + $0x8] sm:$0xff]
        %s281 = sadd.s32 0, 64
        %s282 = smul.addr %s281, 4
        %s283 = scalar_lea.vmem %s246, %s282 [#allocation10]
        %v284 = vld [vmem:[%s283] sm:$0xff]
        %v285 = vld [vmem:[%s283 + $0x8] sm:$0xff]
        %s286 = sld [smem:[#allocation2]]
        %v287 = vstv %s286
        %v288 = vmul.f32 %v287, %v274
        %v289 = vmul.f32 %v287, %v275
        %s290 = sld [smem:[#allocation2 + $0x6]]
        %v291 = vstv %s290
        %v292 = vmul.f32 %v291, %v279
        %v293 = vmul.f32 %v291, %v280
        %v294 = vadd.f32 %v288, %v292
        %v295 = vadd.f32 %v289, %v293
        %s296 = sld [smem:[#allocation2 + $0xc]]
        %v297 = vstv %s296
        %v298 = vmul.f32 %v297, %v284
        %v299 = vmul.f32 %v297, %v285
        %v300 = vadd.f32 %v294, %v298
        %v301 = vadd.f32 %v295, %v299
        %s302 = sld [smem:[#allocation7]]
        %v303 = vstv %s302
        %v304 = vadd.f32 %v300, %v303
        %v305 = vadd.f32 %v301, %v303
        %v306 = vmax.f32 %v304, 0.0
        %v307 = vmax.f32 %v305, 0.0
        %s308 = sld [smem:[#allocation8]]
        %v309 = vstv %s308
        %v310 = vmul.f32 %v309, %v306
        %v311 = vmul.f32 %v309, %v307
        %s312 = sld [smem:[#allocation2 + $0x1]]
        %v313 = vstv %s312
        %v314 = vmul.f32 %v313, %v274
        %v315 = vmul.f32 %v313, %v275
        %s316 = sld [smem:[#allocation2 + $0x7]]
        %v317 = vstv %s316
        %v318 = vmul.f32 %v317, %v279
        %v319 = vmul.f32 %v317, %v280
        %v320 = vadd.f32 %v314, %v318
        %v321 = vadd.f32 %v315, %v319
        %s322 = sld [smem:[#allocation2 + $0xd]]
        %v323 = vstv %s322
        %v324 = vmul.f32 %v323, %v284
        %v325 = vmul.f32 %v323, %v285
        %v326 = vadd.f32 %v320, %v324
        %v327 = vadd.f32 %v321, %v325
        %s328 = sld [smem:[#allocation7 + $0x1]]
        %v329 = vstv %s328
        %v330 = vadd.f32 %v326, %v329
        %v331 = vadd.f32 %v327, %v329
        %v332 = vmax.f32 %v330, 0.0
        %v333 = vmax.f32 %v331, 0.0
        %s334 = sld [smem:[#allocation8 + $0x1]]
        %v335 = vstv %s334
        %v336 = vmul.f32 %v335, %v332
        %v337 = vmul.f32 %v335, %v333
        %v338 = vadd.f32 %v310, %v336
        %v339 = vadd.f32 %v311, %v337
        %s340 = sld [smem:[#allocation2 + $0x2]]
        %v341 = vstv %s340
        %v342 = vmul.f32 %v341, %v274
        %v343 = vmul.f32 %v341, %v275
        %s344 = sld [smem:[#allocation2 + $0x8]]
        %v345 = vstv %s344
        %v346 = vmul.f32 %v345, %v279
        %v347 = vmul.f32 %v345, %v280
        %v348 = vadd.f32 %v342, %v346
        %v349 = vadd.f32 %v343, %v347
        %s350 = sld [smem:[#allocation2 + $0xe]]
        %v351 = vstv %s350
        %v352 = vmul.f32 %v351, %v284
        %v353 = vmul.f32 %v351, %v285
        %v354 = vadd.f32 %v348, %v352
        %v355 = vadd.f32 %v349, %v353
        %s356 = sld [smem:[#allocation7 + $0x2]]
        %v357 = vstv %s356
        %v358 = vadd.f32 %v354, %v357
        %v359 = vadd.f32 %v355, %v357
        %v360 = vmax.f32 %v358, 0.0
        %v361 = vmax.f32 %v359, 0.0
        %s362 = sld [smem:[#allocation8 + $0x2]]
        %v363 = vstv %s362
        %v364 = vmul.f32 %v363, %v360
        %v365 = vmul.f32 %v363, %v361
        %v366 = vadd.f32 %v338, %v364
        %v367 = vadd.f32 %v339, %v365
        %s368 = sld [smem:[#allocation2 + $0x3]]
        %v369 = vstv %s368
        %v370 = vmul.f32 %v369, %v274
        %v371 = vmul.f32 %v369, %v275
        %s372 = sld [smem:[#allocation2 + $0x9]]
        %v373 = vstv %s372
        %v374 = vmul.f32 %v373, %v279
        %v375 = vmul.f32 %v373, %v280
        %v376 = vadd.f32 %v370, %v374
        %v377 = vadd.f32 %v371, %v375
        %s378 = sld [smem:[#allocation2 + $0xf]]
        %v379 = vstv %s378
        %v380 = vmul.f32 %v379, %v284
        %v381 = vmul.f32 %v379, %v285
        %v382 = vadd.f32 %v376, %v380
        %v383 = vadd.f32 %v377, %v381
        %s384 = sld [smem:[#allocation7 + $0x3]]
        %v385 = vstv %s384
        %v386 = vadd.f32 %v382, %v385
        %v387 = vadd.f32 %v383, %v385
        %v388 = vmax.f32 %v386, 0.0
        %v389 = vmax.f32 %v387, 0.0
        %s390 = sld [smem:[#allocation8 + $0x3]]
        %v391 = vstv %s390
        %v392 = vmul.f32 %v391, %v388
        %v393 = vmul.f32 %v391, %v389
        %v394 = vadd.f32 %v366, %v392
        %v395 = vadd.f32 %v367, %v393
        %s396 = sld [smem:[#allocation2 + $0x4]]
        %v397 = vstv %s396
        %v398 = vmul.f32 %v397, %v274
        %v399 = vmul.f32 %v397, %v275
        %s400 = sld [smem:[#allocation2 + $0xa]]
        %v401 = vstv %s400
        %v402 = vmul.f32 %v401, %v279
        %v403 = vmul.f32 %v401, %v280
        %v404 = vadd.f32 %v398, %v402
        %v405 = vadd.f32 %v399, %v403
        %s406 = sld [smem:[#allocation2 + $0x10]]
        %v407 = vstv %s406
        %v408 = vmul.f32 %v407, %v284
        %v409 = vmul.f32 %v407, %v285
        %v410 = vadd.f32 %v404, %v408
        %v411 = vadd.f32 %v405, %v409
        %s412 = sld [smem:[#allocation7 + $0x4]]
        %v413 = vstv %s412
        %v414 = vadd.f32 %v410, %v413
        %v415 = vadd.f32 %v411, %v413
        %v416 = vmax.f32 %v414, 0.0
        %v417 = vmax.f32 %v415, 0.0
        %s418 = sld [smem:[#allocation8 + $0x4]]
        %v419 = vstv %s418
        %v420 = vmul.f32 %v419, %v416
        %v421 = vmul.f32 %v419, %v417
        %v422 = vadd.f32 %v394, %v420
        %v423 = vadd.f32 %v395, %v421
        %s424 = sld [smem:[#allocation2 + $0x5]]
        %v425 = vstv %s424
        %v426 = vmul.f32 %v425, %v274
        %v427 = vmul.f32 %v425, %v275
        %s428 = sld [smem:[#allocation2 + $0xb]]
        %v429 = vstv %s428
        %v430 = vmul.f32 %v429, %v279
        %v431 = vmul.f32 %v429, %v280
        %v432 = vadd.f32 %v426, %v430
        %v433 = vadd.f32 %v427, %v431
        %s434 = sld [smem:[#allocation2 + $0x11]]
        %v435 = vstv %s434
        %v436 = vmul.f32 %v435, %v284
        %v437 = vmul.f32 %v435, %v285
        %v438 = vadd.f32 %v432, %v436
        %v439 = vadd.f32 %v433, %v437
        %s440 = sld [smem:[#allocation7 + $0x5]]
        %v441 = vstv %s440
        %v442 = vadd.f32 %v438, %v441
        %v443 = vadd.f32 %v439, %v441
        %v444 = vmax.f32 %v442, 0.0
        %v445 = vmax.f32 %v443, 0.0
        %s446 = sld [smem:[#allocation8 + $0x5]]
        %v447 = vstv %s446
        %v448 = vmul.f32 %v447, %v444
        %v449 = vmul.f32 %v447, %v445
        %v450 = vadd.f32 %v422, %v448
        %v451 = vadd.f32 %v423, %v449
        %v454 = vcombine.high %v450, %v450
        %v455 = vcombine.high %v451, %v451
        %vm458 = vcmask 1043456
        %v459 = vsel %vm458, %v450, -inf
        %v460 = vrot.slane %v459, 4
        %v461 = vmax.f32 %v459, %v460
        %v462 = vrot.slane %v461, 2
        %v463 = vmax.f32 %v461, %v462
        %v464 = vrot.slane %v463, 1
        %v465 = vmax.f32 %v463, %v464
        %v466 = vsel %vm458, %v454, -inf
        %v467 = vrot.slane %v466, 4
        %v468 = vmax.f32 %v466, %v467
        %v469 = vrot.slane %v468, 2
        %v470 = vmax.f32 %v468, %v469
        %v471 = vrot.slane %v470, 1
        %v472 = vmax.f32 %v470, %v471
        %v473 = vsel %vm458, %v451, -inf
        %v474 = vrot.slane %v473, 4
        %v475 = vmax.f32 %v473, %v474
        %v476 = vrot.slane %v475, 2
        %v477 = vmax.f32 %v475, %v476
        %v478 = vrot.slane %v477, 1
        %v479 = vmax.f32 %v477, %v478
        %v480 = vsel %vm458, %v455, -inf
        %v481 = vrot.slane %v480, 4
        %v482 = vmax.f32 %v480, %v481
        %v483 = vrot.slane %v482, 2
        %v484 = vmax.f32 %v482, %v483
        %v485 = vrot.slane %v484, 1
        %v486 = vmax.f32 %v484, %v485
        %v491 = vcombine.low %v465, %v472
        %v492 = vcombine.low %v479, %v486
        %v495 = vsub.f32 %v450, %v491
        %v496 = vsub.f32 %v451, %v492
        %v497 = vmul.f32 %v495, 1.442695
        %v498 = vpow.pop %v497
        %v499 = vmul.f32 %v496, 1.442695
        %v500 = vpow.pop %v499
        %v503 = vcombine.high %v498, %v498
        %v504 = vcombine.high %v500, %v500
        %v507 = vsel %vm458, %v498, 0.0
        %v508 = vrot.slane %v507, 4
        %v509 = vadd.f32 %v507, %v508
        %v510 = vrot.slane %v509, 2
        %v511 = vadd.f32 %v509, %v510
        %v512 = vrot.slane %v511, 1
        %v513 = vadd.f32 %v511, %v512
        %v514 = vsel %vm458, %v503, 0.0
        %v515 = vrot.slane %v514, 4
        %v516 = vadd.f32 %v514, %v515
        %v517 = vrot.slane %v516, 2
        %v518 = vadd.f32 %v516, %v517
        %v519 = vrot.slane %v518, 1
        %v520 = vadd.f32 %v518, %v519
        %v521 = vsel %vm458, %v500, 0.0
        %v522 = vrot.slane %v521, 4
        %v523 = vadd.f32 %v521, %v522
        %v524 = vrot.slane %v523, 2
        %v525 = vadd.f32 %v523, %v524
        %v526 = vrot.slane %v525, 1
        %v527 = vadd.f32 %v525, %v526
        %v528 = vsel %vm458, %v504, 0.0
        %v529 = vrot.slane %v528, 4
        %v530 = vadd.f32 %v528, %v529
        %v531 = vrot.slane %v530, 2
        %v532 = vadd.f32 %v530, %v531
        %v533 = vrot.slane %v532, 1
        %v534 = vadd.f32 %v532, %v533
        %v535 = vlog2.pop %v513
        %v536 = vmul.f32 %v535, 0.6931472
        %v537 = vlog2.pop %v520
        %v538 = vmul.f32 %v537, 0.6931472
        %v539 = vlog2.pop %v527
        %v540 = vmul.f32 %v539, 0.6931472
        %v541 = vlog2.pop %v534
        %v542 = vmul.f32 %v541, 0.6931472
        %v547 = vcombine.low %v536, %v538
        %v548 = vcombine.low %v540, %v542
        %v551 = vsub.f32 %v495, %v547
        %v552 = vsub.f32 %v496, %v548
        %553 = vst [vmem:[%s271] sm:$0xff] %v551
        %554 = vst [vmem:[%s271 + $0x8] sm:$0xff] %v552
        %s555 = scalar_lea.vmem %s246, 16 [#allocation10]
        %v556 = vld [vmem:[%s555] sm:$0xff]
        %v557 = vld [vmem:[%s555 + $0x8] sm:$0xff]
        %s558 = sadd.s32 4, 32
        %s559 = smul.addr %s558, 4
        %s560 = scalar_lea.vmem %s246, %s559 [#allocation10]
        %v561 = vld [vmem:[%s560] sm:$0xff]
        %v562 = vld [vmem:[%s560 + $0x8] sm:$0xff]
        %s563 = sadd.s32 4, 64
        %s564 = smul.addr %s563, 4
        %s565 = scalar_lea.vmem %s246, %s564 [#allocation10]
        %v566 = vld [vmem:[%s565] sm:$0xff]
        %v567 = vld [vmem:[%s565 + $0x8] sm:$0xff]
        %s568 = sld [smem:[#allocation2]]
        %v569 = vstv %s568
        %v570 = vmul.f32 %v569, %v556
        %v571 = vmul.f32 %v569, %v557
        %s572 = sld [smem:[#allocation2 + $0x6]]
        %v573 = vstv %s572
        %v574 = vmul.f32 %v573, %v561
        %v575 = vmul.f32 %v573, %v562
        %v576 = vadd.f32 %v570, %v574
        %v577 = vadd.f32 %v571, %v575
        %s578 = sld [smem:[#allocation2 + $0xc]]
        %v579 = vstv %s578
        %v580 = vmul.f32 %v579, %v566
        %v581 = vmul.f32 %v579, %v567
        %v582 = vadd.f32 %v576, %v580
        %v583 = vadd.f32 %v577, %v581
        %s584 = sld [smem:[#allocation7]]
        %v585 = vstv %s584
        %v586 = vadd.f32 %v582, %v585
        %v587 = vadd.f32 %v583, %v585
        %v588 = vmax.f32 %v586, 0.0
        %v589 = vmax.f32 %v587, 0.0
        %s590 = sld [smem:[#allocation8]]
        %v591 = vstv %s590
        %v592 = vmul.f32 %v591, %v588
        %v593 = vmul.f32 %v591, %v589
        %s594 = sld [smem:[#allocation2 + $0x1]]
        %v595 = vstv %s594
        %v596 = vmul.f32 %v595, %v556
        %v597 = vmul.f32 %v595, %v557
        %s598 = sld [smem:[#allocation2 + $0x7]]
        %v599 = vstv %s598
        %v600 = vmul.f32 %v599, %v561
        %v601 = vmul.f32 %v599, %v562
        %v602 = vadd.f32 %v596, %v600
        %v603 = vadd.f32 %v597, %v601
        %s604 = sld [smem:[#allocation2 + $0xd]]
        %v605 = vstv %s604
        %v606 = vmul.f32 %v605, %v566
        %v607 = vmul.f32 %v605, %v567
        %v608 = vadd.f32 %v602, %v606
        %v609 = vadd.f32 %v603, %v607
        %s610 = sld [smem:[#allocation7 + $0x1]]
        %v611 = vstv %s610
        %v612 = vadd.f32 %v608, %v611
        %v613 = vadd.f32 %v609, %v611
        %v614 = vmax.f32 %v612, 0.0
        %v615 = vmax.f32 %v613, 0.0
        %s616 = sld [smem:[#allocation8 + $0x1]]
        %v617 = vstv %s616
        %v618 = vmul.f32 %v617, %v614
        %v619 = vmul.f32 %v617, %v615
        %v620 = vadd.f32 %v592, %v618
        %v621 = vadd.f32 %v593, %v619
        %s622 = sld [smem:[#allocation2 + $0x2]]
        %v623 = vstv %s622
        %v624 = vmul.f32 %v623, %v556
        %v625 = vmul.f32 %v623, %v557
        %s626 = sld [smem:[#allocation2 + $0x8]]
        %v627 = vstv %s626
        %v628 = vmul.f32 %v627, %v561
        %v629 = vmul.f32 %v627, %v562
        %v630 = vadd.f32 %v624, %v628
        %v631 = vadd.f32 %v625, %v629
        %s632 = sld [smem:[#allocation2 + $0xe]]
        %v633 = vstv %s632
        %v634 = vmul.f32 %v633, %v566
        %v635 = vmul.f32 %v633, %v567
        %v636 = vadd.f32 %v630, %v634
        %v637 = vadd.f32 %v631, %v635
        %s638 = sld [smem:[#allocation7 + $0x2]]
        %v639 = vstv %s638
        %v640 = vadd.f32 %v636, %v639
        %v641 = vadd.f32 %v637, %v639
        %v642 = vmax.f32 %v640, 0.0
        %v643 = vmax.f32 %v641, 0.0
        %s644 = sld [smem:[#allocation8 + $0x2]]
        %v645 = vstv %s644
        %v646 = vmul.f32 %v645, %v642
        %v647 = vmul.f32 %v645, %v643
        %v648 = vadd.f32 %v620, %v646
        %v649 = vadd.f32 %v621, %v647
        %s650 = sld [smem:[#allocation2 + $0x3]]
        %v651 = vstv %s650
        %v652 = vmul.f32 %v651, %v556
        %v653 = vmul.f32 %v651, %v557
        %s654 = sld [smem:[#allocation2 + $0x9]]
        %v655 = vstv %s654
        %v656 = vmul.f32 %v655, %v561
        %v657 = vmul.f32 %v655, %v562
        %v658 = vadd.f32 %v652, %v656
        %v659 = vadd.f32 %v653, %v657
        %s660 = sld [smem:[#allocation2 + $0xf]]
        %v661 = vstv %s660
        %v662 = vmul.f32 %v661, %v566
        %v663 = vmul.f32 %v661, %v567
        %v664 = vadd.f32 %v658, %v662
        %v665 = vadd.f32 %v659, %v663
        %s666 = sld [smem:[#allocation7 + $0x3]]
        %v667 = vstv %s666
        %v668 = vadd.f32 %v664, %v667
        %v669 = vadd.f32 %v665, %v667
        %v670 = vmax.f32 %v668, 0.0
        %v671 = vmax.f32 %v669, 0.0
        %s672 = sld [smem:[#allocation8 + $0x3]]
        %v673 = vstv %s672
        %v674 = vmul.f32 %v673, %v670
        %v675 = vmul.f32 %v673, %v671
        %v676 = vadd.f32 %v648, %v674
        %v677 = vadd.f32 %v649, %v675
        %s678 = sld [smem:[#allocation2 + $0x4]]
        %v679 = vstv %s678
        %v680 = vmul.f32 %v679, %v556
        %v681 = vmul.f32 %v679, %v557
        %s682 = sld [smem:[#allocation2 + $0xa]]
        %v683 = vstv %s682
        %v684 = vmul.f32 %v683, %v561
        %v685 = vmul.f32 %v683, %v562
        %v686 = vadd.f32 %v680, %v684
        %v687 = vadd.f32 %v681, %v685
        %s688 = sld [smem:[#allocation2 + $0x10]]
        %v689 = vstv %s688
        %v690 = vmul.f32 %v689, %v566
        %v691 = vmul.f32 %v689, %v567
        %v692 = vadd.f32 %v686, %v690
        %v693 = vadd.f32 %v687, %v691
        %s694 = sld [smem:[#allocation7 + $0x4]]
        %v695 = vstv %s694
        %v696 = vadd.f32 %v692, %v695
        %v697 = vadd.f32 %v693, %v695
        %v698 = vmax.f32 %v696, 0.0
        %v699 = vmax.f32 %v697, 0.0
        %s700 = sld [smem:[#allocation8 + $0x4]]
        %v701 = vstv %s700
        %v702 = vmul.f32 %v701, %v698
        %v703 = vmul.f32 %v701, %v699
        %v704 = vadd.f32 %v676, %v702
        %v705 = vadd.f32 %v677, %v703
        %s706 = sld [smem:[#allocation2 + $0x5]]
        %v707 = vstv %s706
        %v708 = vmul.f32 %v707, %v556
        %v709 = vmul.f32 %v707, %v557
        %s710 = sld [smem:[#allocation2 + $0xb]]
        %v711 = vstv %s710
        %v712 = vmul.f32 %v711, %v561
        %v713 = vmul.f32 %v711, %v562
        %v714 = vadd.f32 %v708, %v712
        %v715 = vadd.f32 %v709, %v713
        %s716 = sld [smem:[#allocation2 + $0x11]]
        %v717 = vstv %s716
        %v718 = vmul.f32 %v717, %v566
        %v719 = vmul.f32 %v717, %v567
        %v720 = vadd.f32 %v714, %v718
        %v721 = vadd.f32 %v715, %v719
        %s722 = sld [smem:[#allocation7 + $0x5]]
        %v723 = vstv %s722
        %v724 = vadd.f32 %v720, %v723
        %v725 = vadd.f32 %v721, %v723
        %v726 = vmax.f32 %v724, 0.0
        %v727 = vmax.f32 %v725, 0.0
        %s728 = sld [smem:[#allocation8 + $0x5]]
        %v729 = vstv %s728
        %v730 = vmul.f32 %v729, %v726
        %v731 = vmul.f32 %v729, %v727
        %v732 = vadd.f32 %v704, %v730
        %v733 = vadd.f32 %v705, %v731
        %v736 = vcombine.high %v732, %v732
        %v737 = vcombine.high %v733, %v733
        %v740 = vsel %vm458, %v732, -inf
        %v741 = vrot.slane %v740, 4
        %v742 = vmax.f32 %v740, %v741
        %v743 = vrot.slane %v742, 2
        %v744 = vmax.f32 %v742, %v743
        %v745 = vrot.slane %v744, 1
        %v746 = vmax.f32 %v744, %v745
        %v747 = vsel %vm458, %v736, -inf
        %v748 = vrot.slane %v747, 4
        %v749 = vmax.f32 %v747, %v748
        %v750 = vrot.slane %v749, 2
        %v751 = vmax.f32 %v749, %v750
        %v752 = vrot.slane %v751, 1
        %v753 = vmax.f32 %v751, %v752
        %v754 = vsel %vm458, %v733, -inf
        %v755 = vrot.slane %v754, 4
        %v756 = vmax.f32 %v754, %v755
        %v757 = vrot.slane %v756, 2
        %v758 = vmax.f32 %v756, %v757
        %v759 = vrot.slane %v758, 1
        %v760 = vmax.f32 %v758, %v759
        %v761 = vsel %vm458, %v737, -inf
        %v762 = vrot.slane %v761, 4
        %v763 = vmax.f32 %v761, %v762
        %v764 = vrot.slane %v763, 2
        %v765 = vmax.f32 %v763, %v764
        %v766 = vrot.slane %v765, 1
        %v767 = vmax.f32 %v765, %v766
        %v772 = vcombine.low %v746, %v753
        %v773 = vcombine.low %v760, %v767
        %v776 = vsub.f32 %v732, %v772
        %v777 = vsub.f32 %v733, %v773
        %v778 = vmul.f32 %v776, 1.442695
        %v779 = vpow.pop %v778
        %v780 = vmul.f32 %v777, 1.442695
        %v781 = vpow.pop %v780
        %v784 = vcombine.high %v779, %v779
        %v785 = vcombine.high %v781, %v781
        %v788 = vsel %vm458, %v779, 0.0
        %v789 = vrot.slane %v788, 4
        %v790 = vadd.f32 %v788, %v789
        %v791 = vrot.slane %v790, 2
        %v792 = vadd.f32 %v790, %v791
        %v793 = vrot.slane %v792, 1
        %v794 = vadd.f32 %v792, %v793
        %v795 = vsel %vm458, %v784, 0.0
        %v796 = vrot.slane %v795, 4
        %v797 = vadd.f32 %v795, %v796
        %v798 = vrot.slane %v797, 2
        %v799 = vadd.f32 %v797, %v798
        %v800 = vrot.slane %v799, 1
        %v801 = vadd.f32 %v799, %v800
        %v802 = vsel %vm458, %v781, 0.0
        %v803 = vrot.slane %v802, 4
        %v804 = vadd.f32 %v802, %v803
        %v805 = vrot.slane %v804, 2
        %v806 = vadd.f32 %v804, %v805
        %v807 = vrot.slane %v806, 1
        %v808 = vadd.f32 %v806, %v807
        %v809 = vsel %vm458, %v785, 0.0
        %v810 = vrot.slane %v809, 4
        %v811 = vadd.f32 %v809, %v810
        %v812 = vrot.slane %v811, 2
        %v813 = vadd.f32 %v811, %v812
        %v814 = vrot.slane %v813, 1
        %v815 = vadd.f32 %v813, %v814
        %v816 = vlog2.pop %v794
        %v817 = vmul.f32 %v816, 0.6931472
        %v818 = vlog2.pop %v801
        %v819 = vmul.f32 %v818, 0.6931472
        %v820 = vlog2.pop %v808
        %v821 = vmul.f32 %v820, 0.6931472
        %v822 = vlog2.pop %v815
        %v823 = vmul.f32 %v822, 0.6931472
        %v828 = vcombine.low %v817, %v819
        %v829 = vcombine.low %v821, %v823
        %v832 = vsub.f32 %v776, %v828
        %v833 = vsub.f32 %v777, %v829
        %s834 = scalar_lea.vmem %s271, 16 [#allocation11]
        %835 = vst [vmem:[%s834] sm:$0xff] %v832
        %836 = vst [vmem:[%s834 + $0x8] sm:$0xff] %v833
        %s837 = scalar_lea.vmem %s246, 32 [#allocation10]
        %v838 = vld [vmem:[%s837] sm:$0xff]
        %v839 = vld [vmem:[%s837 + $0x8] sm:$0xff]
        %s840 = sadd.s32 8, 32
        %s841 = smul.addr %s840, 4
        %s842 = scalar_lea.vmem %s246, %s841 [#allocation10]
        %v843 = vld [vmem:[%s842] sm:$0xff]
        %v844 = vld [vmem:[%s842 + $0x8] sm:$0xff]
        %s845 = sadd.s32 8, 64
        %s846 = smul.addr %s845, 4
        %s847 = scalar_lea.vmem %s246, %s846 [#allocation10]
        %v848 = vld [vmem:[%s847] sm:$0xff]
        %v849 = vld [vmem:[%s847 + $0x8] sm:$0xff]
        %s850 = sld [smem:[#allocation2]]
        %v851 = vstv %s850
        %v852 = vmul.f32 %v851, %v838
        %v853 = vmul.f32 %v851, %v839
        %s854 = sld [smem:[#allocation2 + $0x6]]
        %v855 = vstv %s854
        %v856 = vmul.f32 %v855, %v843
        %v857 = vmul.f32 %v855, %v844
        %v858 = vadd.f32 %v852, %v856
        %v859 = vadd.f32 %v853, %v857
        %s860 = sld [smem:[#allocation2 + $0xc]]
        %v861 = vstv %s860
        %v862 = vmul.f32 %v861, %v848
        %v863 = vmul.f32 %v861, %v849
        %v864 = vadd.f32 %v858, %v862
        %v865 = vadd.f32 %v859, %v863
        %s866 = sld [smem:[#allocation7]]
        %v867 = vstv %s866
        %v868 = vadd.f32 %v864, %v867
        %v869 = vadd.f32 %v865, %v867
        %v870 = vmax.f32 %v868, 0.0
        %v871 = vmax.f32 %v869, 0.0
        %s872 = sld [smem:[#allocation8]]
        %v873 = vstv %s872
        %v874 = vmul.f32 %v873, %v870
        %v875 = vmul.f32 %v873, %v871
        %s876 = sld [smem:[#allocation2 + $0x1]]
        %v877 = vstv %s876
        %v878 = vmul.f32 %v877, %v838
        %v879 = vmul.f32 %v877, %v839
        %s880 = sld [smem:[#allocation2 + $0x7]]
        %v881 = vstv %s880
        %v882 = vmul.f32 %v881, %v843
        %v883 = vmul.f32 %v881, %v844
        %v884 = vadd.f32 %v878, %v882
        %v885 = vadd.f32 %v879, %v883
        %s886 = sld [smem:[#allocation2 + $0xd]]
        %v887 = vstv %s886
        %v888 = vmul.f32 %v887, %v848
        %v889 = vmul.f32 %v887, %v849
        %v890 = vadd.f32 %v884, %v888
        %v891 = vadd.f32 %v885, %v889
        %s892 = sld [smem:[#allocation7 + $0x1]]
        %v893 = vstv %s892
        %v894 = vadd.f32 %v890, %v893
        %v895 = vadd.f32 %v891, %v893
        %v896 = vmax.f32 %v894, 0.0
        %v897 = vmax.f32 %v895, 0.0
        %s898 = sld [smem:[#allocation8 + $0x1]]
        %v899 = vstv %s898
        %v900 = vmul.f32 %v899, %v896
        %v901 = vmul.f32 %v899, %v897
        %v902 = vadd.f32 %v874, %v900
        %v903 = vadd.f32 %v875, %v901
        %s904 = sld [smem:[#allocation2 + $0x2]]
        %v905 = vstv %s904
        %v906 = vmul.f32 %v905, %v838
        %v907 = vmul.f32 %v905, %v839
        %s908 = sld [smem:[#allocation2 + $0x8]]
        %v909 = vstv %s908
        %v910 = vmul.f32 %v909, %v843
        %v911 = vmul.f32 %v909, %v844
        %v912 = vadd.f32 %v906, %v910
        %v913 = vadd.f32 %v907, %v911
        %s914 = sld [smem:[#allocation2 + $0xe]]
        %v915 = vstv %s914
        %v916 = vmul.f32 %v915, %v848
        %v917 = vmul.f32 %v915, %v849
        %v918 = vadd.f32 %v912, %v916
        %v919 = vadd.f32 %v913, %v917
        %s920 = sld [smem:[#allocation7 + $0x2]]
        %v921 = vstv %s920
        %v922 = vadd.f32 %v918, %v921
        %v923 = vadd.f32 %v919, %v921
        %v924 = vmax.f32 %v922, 0.0
        %v925 = vmax.f32 %v923, 0.0
        %s926 = sld [smem:[#allocation8 + $0x2]]
        %v927 = vstv %s926
        %v928 = vmul.f32 %v927, %v924
        %v929 = vmul.f32 %v927, %v925
        %v930 = vadd.f32 %v902, %v928
        %v931 = vadd.f32 %v903, %v929
        %s932 = sld [smem:[#allocation2 + $0x3]]
        %v933 = vstv %s932
        %v934 = vmul.f32 %v933, %v838
        %v935 = vmul.f32 %v933, %v839
        %s936 = sld [smem:[#allocation2 + $0x9]]
        %v937 = vstv %s936
        %v938 = vmul.f32 %v937, %v843
        %v939 = vmul.f32 %v937, %v844
        %v940 = vadd.f32 %v934, %v938
        %v941 = vadd.f32 %v935, %v939
        %s942 = sld [smem:[#allocation2 + $0xf]]
        %v943 = vstv %s942
        %v944 = vmul.f32 %v943, %v848
        %v945 = vmul.f32 %v943, %v849
        %v946 = vadd.f32 %v940, %v944
        %v947 = vadd.f32 %v941, %v945
        %s948 = sld [smem:[#allocation7 + $0x3]]
        %v949 = vstv %s948
        %v950 = vadd.f32 %v946, %v949
        %v951 = vadd.f32 %v947, %v949
        %v952 = vmax.f32 %v950, 0.0
        %v953 = vmax.f32 %v951, 0.0
        %s954 = sld [smem:[#allocation8 + $0x3]]
        %v955 = vstv %s954
        %v956 = vmul.f32 %v955, %v952
        %v957 = vmul.f32 %v955, %v953
        %v958 = vadd.f32 %v930, %v956
        %v959 = vadd.f32 %v931, %v957
        %s960 = sld [smem:[#allocation2 + $0x4]]
        %v961 = vstv %s960
        %v962 = vmul.f32 %v961, %v838
        %v963 = vmul.f32 %v961, %v839
        %s964 = sld [smem:[#allocation2 + $0xa]]
        %v965 = vstv %s964
        %v966 = vmul.f32 %v965, %v843
        %v967 = vmul.f32 %v965, %v844
        %v968 = vadd.f32 %v962, %v966
        %v969 = vadd.f32 %v963, %v967
        %s970 = sld [smem:[#allocation2 + $0x10]]
        %v971 = vstv %s970
        %v972 = vmul.f32 %v971, %v848
        %v973 = vmul.f32 %v971, %v849
        %v974 = vadd.f32 %v968, %v972
        %v975 = vadd.f32 %v969, %v973
        %s976 = sld [smem:[#allocation7 + $0x4]]
        %v977 = vstv %s976
        %v978 = vadd.f32 %v974, %v977
        %v979 = vadd.f32 %v975, %v977
        %v980 = vmax.f32 %v978, 0.0
        %v981 = vmax.f32 %v979, 0.0
        %s982 = sld [smem:[#allocation8 + $0x4]]
        %v983 = vstv %s982
        %v984 = vmul.f32 %v983, %v980
        %v985 = vmul.f32 %v983, %v981
        %v986 = vadd.f32 %v958, %v984
        %v987 = vadd.f32 %v959, %v985
        %s988 = sld [smem:[#allocation2 + $0x5]]
        %v989 = vstv %s988
        %v990 = vmul.f32 %v989, %v838
        %v991 = vmul.f32 %v989, %v839
        %s992 = sld [smem:[#allocation2 + $0xb]]
        %v993 = vstv %s992
        %v994 = vmul.f32 %v993, %v843
        %v995 = vmul.f32 %v993, %v844
        %v996 = vadd.f32 %v990, %v994
        %v997 = vadd.f32 %v991, %v995
        %s998 = sld [smem:[#allocation2 + $0x11]]
        %v999 = vstv %s998
        %v1000 = vmul.f32 %v999, %v848
        %v1001 = vmul.f32 %v999, %v849
        %v1002 = vadd.f32 %v996, %v1000
        %v1003 = vadd.f32 %v997, %v1001
        %s1004 = sld [smem:[#allocation7 + $0x5]]
        %v1005 = vstv %s1004
        %v1006 = vadd.f32 %v1002, %v1005
        %v1007 = vadd.f32 %v1003, %v1005
        %v1008 = vmax.f32 %v1006, 0.0
        %v1009 = vmax.f32 %v1007, 0.0
        %s1010 = sld [smem:[#allocation8 + $0x5]]
        %v1011 = vstv %s1010
        %v1012 = vmul.f32 %v1011, %v1008
        %v1013 = vmul.f32 %v1011, %v1009
        %v1014 = vadd.f32 %v986, %v1012
        %v1015 = vadd.f32 %v987, %v1013
        %v1018 = vcombine.high %v1014, %v1014
        %v1019 = vcombine.high %v1015, %v1015
        %v1022 = vsel %vm458, %v1014, -inf
        %v1023 = vrot.slane %v1022, 4
        %v1024 = vmax.f32 %v1022, %v1023
        %v1025 = vrot.slane %v1024, 2
        %v1026 = vmax.f32 %v1024, %v1025
        %v1027 = vrot.slane %v1026, 1
        %v1028 = vmax.f32 %v1026, %v1027
        %v1029 = vsel %vm458, %v1018, -inf
        %v1030 = vrot.slane %v1029, 4
        %v1031 = vmax.f32 %v1029, %v1030
        %v1032 = vrot.slane %v1031, 2
        %v1033 = vmax.f32 %v1031, %v1032
        %v1034 = vrot.slane %v1033, 1
        %v1035 = vmax.f32 %v1033, %v1034
        %v1036 = vsel %vm458, %v1015, -inf
        %v1037 = vrot.slane %v1036, 4
        %v1038 = vmax.f32 %v1036, %v1037
        %v1039 = vrot.slane %v1038, 2
        %v1040 = vmax.f32 %v1038, %v1039
        %v1041 = vrot.slane %v1040, 1
        %v1042 = vmax.f32 %v1040, %v1041
        %v1043 = vsel %vm458, %v1019, -inf
        %v1044 = vrot.slane %v1043, 4
        %v1045 = vmax.f32 %v1043, %v1044
        %v1046 = vrot.slane %v1045, 2
        %v1047 = vmax.f32 %v1045, %v1046
        %v1048 = vrot.slane %v1047, 1
        %v1049 = vmax.f32 %v1047, %v1048
        %v1054 = vcombine.low %v1028, %v1035
        %v1055 = vcombine.low %v1042, %v1049
        %v1058 = vsub.f32 %v1014, %v1054
        %v1059 = vsub.f32 %v1015, %v1055
        %v1060 = vmul.f32 %v1058, 1.442695
        %v1061 = vpow.pop %v1060
        %v1062 = vmul.f32 %v1059, 1.442695
        %v1063 = vpow.pop %v1062
        %v1066 = vcombine.high %v1061, %v1061
        %v1067 = vcombine.high %v1063, %v1063
        %v1070 = vsel %vm458, %v1061, 0.0
        %v1071 = vrot.slane %v1070, 4
        %v1072 = vadd.f32 %v1070, %v1071
        %v1073 = vrot.slane %v1072, 2
        %v1074 = vadd.f32 %v1072, %v1073
        %v1075 = vrot.slane %v1074, 1
        %v1076 = vadd.f32 %v1074, %v1075
        %v1077 = vsel %vm458, %v1066, 0.0
        %v1078 = vrot.slane %v1077, 4
        %v1079 = vadd.f32 %v1077, %v1078
        %v1080 = vrot.slane %v1079, 2
        %v1081 = vadd.f32 %v1079, %v1080
        %v1082 = vrot.slane %v1081, 1
        %v1083 = vadd.f32 %v1081, %v1082
        %v1084 = vsel %vm458, %v1063, 0.0
        %v1085 = vrot.slane %v1084, 4
        %v1086 = vadd.f32 %v1084, %v1085
        %v1087 = vrot.slane %v1086, 2
        %v1088 = vadd.f32 %v1086, %v1087
        %v1089 = vrot.slane %v1088, 1
        %v1090 = vadd.f32 %v1088, %v1089
        %v1091 = vsel %vm458, %v1067, 0.0
        %v1092 = vrot.slane %v1091, 4
        %v1093 = vadd.f32 %v1091, %v1092
        %v1094 = vrot.slane %v1093, 2
        %v1095 = vadd.f32 %v1093, %v1094
        %v1096 = vrot.slane %v1095, 1
        %v1097 = vadd.f32 %v1095, %v1096
        %v1098 = vlog2.pop %v1076
        %v1099 = vmul.f32 %v1098, 0.6931472
        %v1100 = vlog2.pop %v1083
        %v1101 = vmul.f32 %v1100, 0.6931472
        %v1102 = vlog2.pop %v1090
        %v1103 = vmul.f32 %v1102, 0.6931472
        %v1104 = vlog2.pop %v1097
        %v1105 = vmul.f32 %v1104, 0.6931472
        %v1110 = vcombine.low %v1099, %v1101
        %v1111 = vcombine.low %v1103, %v1105
        %v1114 = vsub.f32 %v1058, %v1110
        %v1115 = vsub.f32 %v1059, %v1111
        %s1116 = scalar_lea.vmem %s271, 32 [#allocation11]
        %1117 = vst [vmem:[%s1116] sm:$0xff] %v1114
        %1118 = vst [vmem:[%s1116 + $0x8] sm:$0xff] %v1115
        %s1119 = scalar_lea.vmem %s246, 48 [#allocation10]
        %v1120 = vld [vmem:[%s1119] sm:$0xff]
        %v1121 = vld [vmem:[%s1119 + $0x8] sm:$0xff]
        %s1122 = sadd.s32 12, 32
        %s1123 = smul.addr %s1122, 4
        %s1124 = scalar_lea.vmem %s246, %s1123 [#allocation10]
        %v1125 = vld [vmem:[%s1124] sm:$0xff]
        %v1126 = vld [vmem:[%s1124 + $0x8] sm:$0xff]
        %s1127 = sadd.s32 12, 64
        %s1128 = smul.addr %s1127, 4
        %s1129 = scalar_lea.vmem %s246, %s1128 [#allocation10]
        %v1130 = vld [vmem:[%s1129] sm:$0xff]
        %v1131 = vld [vmem:[%s1129 + $0x8] sm:$0xff]
        %s1132 = sld [smem:[#allocation2]]
        %v1133 = vstv %s1132
        %v1134 = vmul.f32 %v1133, %v1120
        %v1135 = vmul.f32 %v1133, %v1121
        %s1136 = sld [smem:[#allocation2 + $0x6]]
        %v1137 = vstv %s1136
        %v1138 = vmul.f32 %v1137, %v1125
        %v1139 = vmul.f32 %v1137, %v1126
        %v1140 = vadd.f32 %v1134, %v1138
        %v1141 = vadd.f32 %v1135, %v1139
        %s1142 = sld [smem:[#allocation2 + $0xc]]
        %v1143 = vstv %s1142
        %v1144 = vmul.f32 %v1143, %v1130
        %v1145 = vmul.f32 %v1143, %v1131
        %v1146 = vadd.f32 %v1140, %v1144
        %v1147 = vadd.f32 %v1141, %v1145
        %s1148 = sld [smem:[#allocation7]]
        %v1149 = vstv %s1148
        %v1150 = vadd.f32 %v1146, %v1149
        %v1151 = vadd.f32 %v1147, %v1149
        %v1152 = vmax.f32 %v1150, 0.0
        %v1153 = vmax.f32 %v1151, 0.0
        %s1154 = sld [smem:[#allocation8]]
        %v1155 = vstv %s1154
        %v1156 = vmul.f32 %v1155, %v1152
        %v1157 = vmul.f32 %v1155, %v1153
        %s1158 = sld [smem:[#allocation2 + $0x1]]
        %v1159 = vstv %s1158
        %v1160 = vmul.f32 %v1159, %v1120
        %v1161 = vmul.f32 %v1159, %v1121
        %s1162 = sld [smem:[#allocation2 + $0x7]]
        %v1163 = vstv %s1162
        %v1164 = vmul.f32 %v1163, %v1125
        %v1165 = vmul.f32 %v1163, %v1126
        %v1166 = vadd.f32 %v1160, %v1164
        %v1167 = vadd.f32 %v1161, %v1165
        %s1168 = sld [smem:[#allocation2 + $0xd]]
        %v1169 = vstv %s1168
        %v1170 = vmul.f32 %v1169, %v1130
        %v1171 = vmul.f32 %v1169, %v1131
        %v1172 = vadd.f32 %v1166, %v1170
        %v1173 = vadd.f32 %v1167, %v1171
        %s1174 = sld [smem:[#allocation7 + $0x1]]
        %v1175 = vstv %s1174
        %v1176 = vadd.f32 %v1172, %v1175
        %v1177 = vadd.f32 %v1173, %v1175
        %v1178 = vmax.f32 %v1176, 0.0
        %v1179 = vmax.f32 %v1177, 0.0
        %s1180 = sld [smem:[#allocation8 + $0x1]]
        %v1181 = vstv %s1180
        %v1182 = vmul.f32 %v1181, %v1178
        %v1183 = vmul.f32 %v1181, %v1179
        %v1184 = vadd.f32 %v1156, %v1182
        %v1185 = vadd.f32 %v1157, %v1183
        %s1186 = sld [smem:[#allocation2 + $0x2]]
        %v1187 = vstv %s1186
        %v1188 = vmul.f32 %v1187, %v1120
        %v1189 = vmul.f32 %v1187, %v1121
        %s1190 = sld [smem:[#allocation2 + $0x8]]
        %v1191 = vstv %s1190
        %v1192 = vmul.f32 %v1191, %v1125
        %v1193 = vmul.f32 %v1191, %v1126
        %v1194 = vadd.f32 %v1188, %v1192
        %v1195 = vadd.f32 %v1189, %v1193
        %s1196 = sld [smem:[#allocation2 + $0xe]]
        %v1197 = vstv %s1196
        %v1198 = vmul.f32 %v1197, %v1130
        %v1199 = vmul.f32 %v1197, %v1131
        %v1200 = vadd.f32 %v1194, %v1198
        %v1201 = vadd.f32 %v1195, %v1199
        %s1202 = sld [smem:[#allocation7 + $0x2]]
        %v1203 = vstv %s1202
        %v1204 = vadd.f32 %v1200, %v1203
        %v1205 = vadd.f32 %v1201, %v1203
        %v1206 = vmax.f32 %v1204, 0.0
        %v1207 = vmax.f32 %v1205, 0.0
        %s1208 = sld [smem:[#allocation8 + $0x2]]
        %v1209 = vstv %s1208
        %v1210 = vmul.f32 %v1209, %v1206
        %v1211 = vmul.f32 %v1209, %v1207
        %v1212 = vadd.f32 %v1184, %v1210
        %v1213 = vadd.f32 %v1185, %v1211
        %s1214 = sld [smem:[#allocation2 + $0x3]]
        %v1215 = vstv %s1214
        %v1216 = vmul.f32 %v1215, %v1120
        %v1217 = vmul.f32 %v1215, %v1121
        %s1218 = sld [smem:[#allocation2 + $0x9]]
        %v1219 = vstv %s1218
        %v1220 = vmul.f32 %v1219, %v1125
        %v1221 = vmul.f32 %v1219, %v1126
        %v1222 = vadd.f32 %v1216, %v1220
        %v1223 = vadd.f32 %v1217, %v1221
        %s1224 = sld [smem:[#allocation2 + $0xf]]
        %v1225 = vstv %s1224
        %v1226 = vmul.f32 %v1225, %v1130
        %v1227 = vmul.f32 %v1225, %v1131
        %v1228 = vadd.f32 %v1222, %v1226
        %v1229 = vadd.f32 %v1223, %v1227
        %s1230 = sld [smem:[#allocation7 + $0x3]]
        %v1231 = vstv %s1230
        %v1232 = vadd.f32 %v1228, %v1231
        %v1233 = vadd.f32 %v1229, %v1231
        %v1234 = vmax.f32 %v1232, 0.0
        %v1235 = vmax.f32 %v1233, 0.0
        %s1236 = sld [smem:[#allocation8 + $0x3]]
        %v1237 = vstv %s1236
        %v1238 = vmul.f32 %v1237, %v1234
        %v1239 = vmul.f32 %v1237, %v1235
        %v1240 = vadd.f32 %v1212, %v1238
        %v1241 = vadd.f32 %v1213, %v1239
        %s1242 = sld [smem:[#allocation2 + $0x4]]
        %v1243 = vstv %s1242
        %v1244 = vmul.f32 %v1243, %v1120
        %v1245 = vmul.f32 %v1243, %v1121
        %s1246 = sld [smem:[#allocation2 + $0xa]]
        %v1247 = vstv %s1246
        %v1248 = vmul.f32 %v1247, %v1125
        %v1249 = vmul.f32 %v1247, %v1126
        %v1250 = vadd.f32 %v1244, %v1248
        %v1251 = vadd.f32 %v1245, %v1249
        %s1252 = sld [smem:[#allocation2 + $0x10]]
        %v1253 = vstv %s1252
        %v1254 = vmul.f32 %v1253, %v1130
        %v1255 = vmul.f32 %v1253, %v1131
        %v1256 = vadd.f32 %v1250, %v1254
        %v1257 = vadd.f32 %v1251, %v1255
        %s1258 = sld [smem:[#allocation7 + $0x4]]
        %v1259 = vstv %s1258
        %v1260 = vadd.f32 %v1256, %v1259
        %v1261 = vadd.f32 %v1257, %v1259
        %v1262 = vmax.f32 %v1260, 0.0
        %v1263 = vmax.f32 %v1261, 0.0
        %s1264 = sld [smem:[#allocation8 + $0x4]]
        %v1265 = vstv %s1264
        %v1266 = vmul.f32 %v1265, %v1262
        %v1267 = vmul.f32 %v1265, %v1263
        %v1268 = vadd.f32 %v1240, %v1266
        %v1269 = vadd.f32 %v1241, %v1267
        %s1270 = sld [smem:[#allocation2 + $0x5]]
        %v1271 = vstv %s1270
        %v1272 = vmul.f32 %v1271, %v1120
        %v1273 = vmul.f32 %v1271, %v1121
        %s1274 = sld [smem:[#allocation2 + $0xb]]
        %v1275 = vstv %s1274
        %v1276 = vmul.f32 %v1275, %v1125
        %v1277 = vmul.f32 %v1275, %v1126
        %v1278 = vadd.f32 %v1272, %v1276
        %v1279 = vadd.f32 %v1273, %v1277
        %s1280 = sld [smem:[#allocation2 + $0x11]]
        %v1281 = vstv %s1280
        %v1282 = vmul.f32 %v1281, %v1130
        %v1283 = vmul.f32 %v1281, %v1131
        %v1284 = vadd.f32 %v1278, %v1282
        %v1285 = vadd.f32 %v1279, %v1283
        %s1286 = sld [smem:[#allocation7 + $0x5]]
        %v1287 = vstv %s1286
        %v1288 = vadd.f32 %v1284, %v1287
        %v1289 = vadd.f32 %v1285, %v1287
        %v1290 = vmax.f32 %v1288, 0.0
        %v1291 = vmax.f32 %v1289, 0.0
        %s1292 = sld [smem:[#allocation8 + $0x5]]
        %v1293 = vstv %s1292
        %v1294 = vmul.f32 %v1293, %v1290
        %v1295 = vmul.f32 %v1293, %v1291
        %v1296 = vadd.f32 %v1268, %v1294
        %v1297 = vadd.f32 %v1269, %v1295
        %v1300 = vcombine.high %v1296, %v1296
        %v1301 = vcombine.high %v1297, %v1297
        %v1304 = vsel %vm458, %v1296, -inf
        %v1305 = vrot.slane %v1304, 4
        %v1306 = vmax.f32 %v1304, %v1305
        %v1307 = vrot.slane %v1306, 2
        %v1308 = vmax.f32 %v1306, %v1307
        %v1309 = vrot.slane %v1308, 1
        %v1310 = vmax.f32 %v1308, %v1309
        %v1311 = vsel %vm458, %v1300, -inf
        %v1312 = vrot.slane %v1311, 4
        %v1313 = vmax.f32 %v1311, %v1312
        %v1314 = vrot.slane %v1313, 2
        %v1315 = vmax.f32 %v1313, %v1314
        %v1316 = vrot.slane %v1315, 1
        %v1317 = vmax.f32 %v1315, %v1316
        %v1318 = vsel %vm458, %v1297, -inf
        %v1319 = vrot.slane %v1318, 4
        %v1320 = vmax.f32 %v1318, %v1319
        %v1321 = vrot.slane %v1320, 2
        %v1322 = vmax.f32 %v1320, %v1321
        %v1323 = vrot.slane %v1322, 1
        %v1324 = vmax.f32 %v1322, %v1323
        %v1325 = vsel %vm458, %v1301, -inf
        %v1326 = vrot.slane %v1325, 4
        %v1327 = vmax.f32 %v1325, %v1326
        %v1328 = vrot.slane %v1327, 2
        %v1329 = vmax.f32 %v1327, %v1328
        %v1330 = vrot.slane %v1329, 1
        %v1331 = vmax.f32 %v1329, %v1330
        %v1336 = vcombine.low %v1310, %v1317
        %v1337 = vcombine.low %v1324, %v1331
        %v1340 = vsub.f32 %v1296, %v1336
        %v1341 = vsub.f32 %v1297, %v1337
        %v1342 = vmul.f32 %v1340, 1.442695
        %v1343 = vpow.pop %v1342
        %v1344 = vmul.f32 %v1341, 1.442695
        %v1345 = vpow.pop %v1344
        %v1348 = vcombine.high %v1343, %v1343
        %v1349 = vcombine.high %v1345, %v1345
        %v1352 = vsel %vm458, %v1343, 0.0
        %v1353 = vrot.slane %v1352, 4
        %v1354 = vadd.f32 %v1352, %v1353
        %v1355 = vrot.slane %v1354, 2
        %v1356 = vadd.f32 %v1354, %v1355
        %v1357 = vrot.slane %v1356, 1
        %v1358 = vadd.f32 %v1356, %v1357
        %v1359 = vsel %vm458, %v1348, 0.0
        %v1360 = vrot.slane %v1359, 4
        %v1361 = vadd.f32 %v1359, %v1360
        %v1362 = vrot.slane %v1361, 2
        %v1363 = vadd.f32 %v1361, %v1362
        %v1364 = vrot.slane %v1363, 1
        %v1365 = vadd.f32 %v1363, %v1364
        %v1366 = vsel %vm458, %v1345, 0.0
        %v1367 = vrot.slane %v1366, 4
        %v1368 = vadd.f32 %v1366, %v1367
        %v1369 = vrot.slane %v1368, 2
        %v1370 = vadd.f32 %v1368, %v1369
        %v1371 = vrot.slane %v1370, 1
        %v1372 = vadd.f32 %v1370, %v1371
        %v1373 = vsel %vm458, %v1349, 0.0
        %v1374 = vrot.slane %v1373, 4
        %v1375 = vadd.f32 %v1373, %v1374
        %v1376 = vrot.slane %v1375, 2
        %v1377 = vadd.f32 %v1375, %v1376
        %v1378 = vrot.slane %v1377, 1
        %v1379 = vadd.f32 %v1377, %v1378
        %v1380 = vlog2.pop %v1358
        %v1381 = vmul.f32 %v1380, 0.6931472
        %v1382 = vlog2.pop %v1365
        %v1383 = vmul.f32 %v1382, 0.6931472
        %v1384 = vlog2.pop %v1372
        %v1385 = vmul.f32 %v1384, 0.6931472
        %v1386 = vlog2.pop %v1379
        %v1387 = vmul.f32 %v1386, 0.6931472
        %v1392 = vcombine.low %v1381, %v1383
        %v1393 = vcombine.low %v1385, %v1387
        %v1396 = vsub.f32 %v1340, %v1392
        %v1397 = vsub.f32 %v1341, %v1393
        %s1398 = scalar_lea.vmem %s271, 48 [#allocation11]
        %1399 = vst [vmem:[%s1398] sm:$0xff] %v1396
        %1400 = vst [vmem:[%s1398 + $0x8] sm:$0xff] %v1397
        %s1401 = scalar_lea.vmem %s246, 64 [#allocation10]
        %v1402 = vld [vmem:[%s1401] sm:$0xff]
        %v1403 = vld [vmem:[%s1401 + $0x8] sm:$0xff]
        %s1404 = sadd.s32 16, 32
        %s1405 = smul.addr %s1404, 4
        %s1406 = scalar_lea.vmem %s246, %s1405 [#allocation10]
        %v1407 = vld [vmem:[%s1406] sm:$0xff]
        %v1408 = vld [vmem:[%s1406 + $0x8] sm:$0xff]
        %s1409 = sadd.s32 16, 64
        %s1410 = smul.addr %s1409, 4
        %s1411 = scalar_lea.vmem %s246, %s1410 [#allocation10]
        %v1412 = vld [vmem:[%s1411] sm:$0xff]
        %v1413 = vld [vmem:[%s1411 + $0x8] sm:$0xff]
        %s1414 = sld [smem:[#allocation2]]
        %v1415 = vstv %s1414
        %v1416 = vmul.f32 %v1415, %v1402
        %v1417 = vmul.f32 %v1415, %v1403
        %s1418 = sld [smem:[#allocation2 + $0x6]]
        %v1419 = vstv %s1418
        %v1420 = vmul.f32 %v1419, %v1407
        %v1421 = vmul.f32 %v1419, %v1408
        %v1422 = vadd.f32 %v1416, %v1420
        %v1423 = vadd.f32 %v1417, %v1421
        %s1424 = sld [smem:[#allocation2 + $0xc]]
        %v1425 = vstv %s1424
        %v1426 = vmul.f32 %v1425, %v1412
        %v1427 = vmul.f32 %v1425, %v1413
        %v1428 = vadd.f32 %v1422, %v1426
        %v1429 = vadd.f32 %v1423, %v1427
        %s1430 = sld [smem:[#allocation7]]
        %v1431 = vstv %s1430
        %v1432 = vadd.f32 %v1428, %v1431
        %v1433 = vadd.f32 %v1429, %v1431
        %v1434 = vmax.f32 %v1432, 0.0
        %v1435 = vmax.f32 %v1433, 0.0
        %s1436 = sld [smem:[#allocation8]]
        %v1437 = vstv %s1436
        %v1438 = vmul.f32 %v1437, %v1434
        %v1439 = vmul.f32 %v1437, %v1435
        %s1440 = sld [smem:[#allocation2 + $0x1]]
        %v1441 = vstv %s1440
        %v1442 = vmul.f32 %v1441, %v1402
        %v1443 = vmul.f32 %v1441, %v1403
        %s1444 = sld [smem:[#allocation2 + $0x7]]
        %v1445 = vstv %s1444
        %v1446 = vmul.f32 %v1445, %v1407
        %v1447 = vmul.f32 %v1445, %v1408
        %v1448 = vadd.f32 %v1442, %v1446
        %v1449 = vadd.f32 %v1443, %v1447
        %s1450 = sld [smem:[#allocation2 + $0xd]]
        %v1451 = vstv %s1450
        %v1452 = vmul.f32 %v1451, %v1412
        %v1453 = vmul.f32 %v1451, %v1413
        %v1454 = vadd.f32 %v1448, %v1452
        %v1455 = vadd.f32 %v1449, %v1453
        %s1456 = sld [smem:[#allocation7 + $0x1]]
        %v1457 = vstv %s1456
        %v1458 = vadd.f32 %v1454, %v1457
        %v1459 = vadd.f32 %v1455, %v1457
        %v1460 = vmax.f32 %v1458, 0.0
        %v1461 = vmax.f32 %v1459, 0.0
        %s1462 = sld [smem:[#allocation8 + $0x1]]
        %v1463 = vstv %s1462
        %v1464 = vmul.f32 %v1463, %v1460
        %v1465 = vmul.f32 %v1463, %v1461
        %v1466 = vadd.f32 %v1438, %v1464
        %v1467 = vadd.f32 %v1439, %v1465
        %s1468 = sld [smem:[#allocation2 + $0x2]]
        %v1469 = vstv %s1468
        %v1470 = vmul.f32 %v1469, %v1402
        %v1471 = vmul.f32 %v1469, %v1403
        %s1472 = sld [smem:[#allocation2 + $0x8]]
        %v1473 = vstv %s1472
        %v1474 = vmul.f32 %v1473, %v1407
        %v1475 = vmul.f32 %v1473, %v1408
        %v1476 = vadd.f32 %v1470, %v1474
        %v1477 = vadd.f32 %v1471, %v1475
        %s1478 = sld [smem:[#allocation2 + $0xe]]
        %v1479 = vstv %s1478
        %v1480 = vmul.f32 %v1479, %v1412
        %v1481 = vmul.f32 %v1479, %v1413
        %v1482 = vadd.f32 %v1476, %v1480
        %v1483 = vadd.f32 %v1477, %v1481
        %s1484 = sld [smem:[#allocation7 + $0x2]]
        %v1485 = vstv %s1484
        %v1486 = vadd.f32 %v1482, %v1485
        %v1487 = vadd.f32 %v1483, %v1485
        %v1488 = vmax.f32 %v1486, 0.0
        %v1489 = vmax.f32 %v1487, 0.0
        %s1490 = sld [smem:[#allocation8 + $0x2]]
        %v1491 = vstv %s1490
        %v1492 = vmul.f32 %v1491, %v1488
        %v1493 = vmul.f32 %v1491, %v1489
        %v1494 = vadd.f32 %v1466, %v1492
        %v1495 = vadd.f32 %v1467, %v1493
        %s1496 = sld [smem:[#allocation2 + $0x3]]
        %v1497 = vstv %s1496
        %v1498 = vmul.f32 %v1497, %v1402
        %v1499 = vmul.f32 %v1497, %v1403
        %s1500 = sld [smem:[#allocation2 + $0x9]]
        %v1501 = vstv %s1500
        %v1502 = vmul.f32 %v1501, %v1407
        %v1503 = vmul.f32 %v1501, %v1408
        %v1504 = vadd.f32 %v1498, %v1502
        %v1505 = vadd.f32 %v1499, %v1503
        %s1506 = sld [smem:[#allocation2 + $0xf]]
        %v1507 = vstv %s1506
        %v1508 = vmul.f32 %v1507, %v1412
        %v1509 = vmul.f32 %v1507, %v1413
        %v1510 = vadd.f32 %v1504, %v1508
        %v1511 = vadd.f32 %v1505, %v1509
        %s1512 = sld [smem:[#allocation7 + $0x3]]
        %v1513 = vstv %s1512
        %v1514 = vadd.f32 %v1510, %v1513
        %v1515 = vadd.f32 %v1511, %v1513
        %v1516 = vmax.f32 %v1514, 0.0
        %v1517 = vmax.f32 %v1515, 0.0
        %s1518 = sld [smem:[#allocation8 + $0x3]]
        %v1519 = vstv %s1518
        %v1520 = vmul.f32 %v1519, %v1516
        %v1521 = vmul.f32 %v1519, %v1517
        %v1522 = vadd.f32 %v1494, %v1520
        %v1523 = vadd.f32 %v1495, %v1521
        %s1524 = sld [smem:[#allocation2 + $0x4]]
        %v1525 = vstv %s1524
        %v1526 = vmul.f32 %v1525, %v1402
        %v1527 = vmul.f32 %v1525, %v1403
        %s1528 = sld [smem:[#allocation2 + $0xa]]
        %v1529 = vstv %s1528
        %v1530 = vmul.f32 %v1529, %v1407
        %v1531 = vmul.f32 %v1529, %v1408
        %v1532 = vadd.f32 %v1526, %v1530
        %v1533 = vadd.f32 %v1527, %v1531
        %s1534 = sld [smem:[#allocation2 + $0x10]]
        %v1535 = vstv %s1534
        %v1536 = vmul.f32 %v1535, %v1412
        %v1537 = vmul.f32 %v1535, %v1413
        %v1538 = vadd.f32 %v1532, %v1536
        %v1539 = vadd.f32 %v1533, %v1537
        %s1540 = sld [smem:[#allocation7 + $0x4]]
        %v1541 = vstv %s1540
        %v1542 = vadd.f32 %v1538, %v1541
        %v1543 = vadd.f32 %v1539, %v1541
        %v1544 = vmax.f32 %v1542, 0.0
        %v1545 = vmax.f32 %v1543, 0.0
        %s1546 = sld [smem:[#allocation8 + $0x4]]
        %v1547 = vstv %s1546
        %v1548 = vmul.f32 %v1547, %v1544
        %v1549 = vmul.f32 %v1547, %v1545
        %v1550 = vadd.f32 %v1522, %v1548
        %v1551 = vadd.f32 %v1523, %v1549
        %s1552 = sld [smem:[#allocation2 + $0x5]]
        %v1553 = vstv %s1552
        %v1554 = vmul.f32 %v1553, %v1402
        %v1555 = vmul.f32 %v1553, %v1403
        %s1556 = sld [smem:[#allocation2 + $0xb]]
        %v1557 = vstv %s1556
        %v1558 = vmul.f32 %v1557, %v1407
        %v1559 = vmul.f32 %v1557, %v1408
        %v1560 = vadd.f32 %v1554, %v1558
        %v1561 = vadd.f32 %v1555, %v1559
        %s1562 = sld [smem:[#allocation2 + $0x11]]
        %v1563 = vstv %s1562
        %v1564 = vmul.f32 %v1563, %v1412
        %v1565 = vmul.f32 %v1563, %v1413
        %v1566 = vadd.f32 %v1560, %v1564
        %v1567 = vadd.f32 %v1561, %v1565
        %s1568 = sld [smem:[#allocation7 + $0x5]]
        %v1569 = vstv %s1568
        %v1570 = vadd.f32 %v1566, %v1569
        %v1571 = vadd.f32 %v1567, %v1569
        %v1572 = vmax.f32 %v1570, 0.0
        %v1573 = vmax.f32 %v1571, 0.0
        %s1574 = sld [smem:[#allocation8 + $0x5]]
        %v1575 = vstv %s1574
        %v1576 = vmul.f32 %v1575, %v1572
        %v1577 = vmul.f32 %v1575, %v1573
        %v1578 = vadd.f32 %v1550, %v1576
        %v1579 = vadd.f32 %v1551, %v1577
        %v1582 = vcombine.high %v1578, %v1578
        %v1583 = vcombine.high %v1579, %v1579
        %v1586 = vsel %vm458, %v1578, -inf
        %v1587 = vrot.slane %v1586, 4
        %v1588 = vmax.f32 %v1586, %v1587
        %v1589 = vrot.slane %v1588, 2
        %v1590 = vmax.f32 %v1588, %v1589
        %v1591 = vrot.slane %v1590, 1
        %v1592 = vmax.f32 %v1590, %v1591
        %v1593 = vsel %vm458, %v1582, -inf
        %v1594 = vrot.slane %v1593, 4
        %v1595 = vmax.f32 %v1593, %v1594
        %v1596 = vrot.slane %v1595, 2
        %v1597 = vmax.f32 %v1595, %v1596
        %v1598 = vrot.slane %v1597, 1
        %v1599 = vmax.f32 %v1597, %v1598
        %v1600 = vsel %vm458, %v1579, -inf
        %v1601 = vrot.slane %v1600, 4
        %v1602 = vmax.f32 %v1600, %v1601
        %v1603 = vrot.slane %v1602, 2
        %v1604 = vmax.f32 %v1602, %v1603
        %v1605 = vrot.slane %v1604, 1
        %v1606 = vmax.f32 %v1604, %v1605
        %v1607 = vsel %vm458, %v1583, -inf
        %v1608 = vrot.slane %v1607, 4
        %v1609 = vmax.f32 %v1607, %v1608
        %v1610 = vrot.slane %v1609, 2
        %v1611 = vmax.f32 %v1609, %v1610
        %v1612 = vrot.slane %v1611, 1
        %v1613 = vmax.f32 %v1611, %v1612
        %v1618 = vcombine.low %v1592, %v1599
        %v1619 = vcombine.low %v1606, %v1613
        %v1622 = vsub.f32 %v1578, %v1618
        %v1623 = vsub.f32 %v1579, %v1619
        %v1624 = vmul.f32 %v1622, 1.442695
        %v1625 = vpow.pop %v1624
        %v1626 = vmul.f32 %v1623, 1.442695
        %v1627 = vpow.pop %v1626
        %v1630 = vcombine.high %v1625, %v1625
        %v1631 = vcombine.high %v1627, %v1627
        %v1634 = vsel %vm458, %v1625, 0.0
        %v1635 = vrot.slane %v1634, 4
        %v1636 = vadd.f32 %v1634, %v1635
        %v1637 = vrot.slane %v1636, 2
        %v1638 = vadd.f32 %v1636, %v1637
        %v1639 = vrot.slane %v1638, 1
        %v1640 = vadd.f32 %v1638, %v1639
        %v1641 = vsel %vm458, %v1630, 0.0
        %v1642 = vrot.slane %v1641, 4
        %v1643 = vadd.f32 %v1641, %v1642
        %v1644 = vrot.slane %v1643, 2
        %v1645 = vadd.f32 %v1643, %v1644
        %v1646 = vrot.slane %v1645, 1
        %v1647 = vadd.f32 %v1645, %v1646
        %v1648 = vsel %vm458, %v1627, 0.0
        %v1649 = vrot.slane %v1648, 4
        %v1650 = vadd.f32 %v1648, %v1649
        %v1651 = vrot.slane %v1650, 2
        %v1652 = vadd.f32 %v1650, %v1651
        %v1653 = vrot.slane %v1652, 1
        %v1654 = vadd.f32 %v1652, %v1653
        %v1655 = vsel %vm458, %v1631, 0.0
        %v1656 = vrot.slane %v1655, 4
        %v1657 = vadd.f32 %v1655, %v1656
        %v1658 = vrot.slane %v1657, 2
        %v1659 = vadd.f32 %v1657, %v1658
        %v1660 = vrot.slane %v1659, 1
        %v1661 = vadd.f32 %v1659, %v1660
        %v1662 = vlog2.pop %v1640
        %v1663 = vmul.f32 %v1662, 0.6931472
        %v1664 = vlog2.pop %v1647
        %v1665 = vmul.f32 %v1664, 0.6931472
        %v1666 = vlog2.pop %v1654
        %v1667 = vmul.f32 %v1666, 0.6931472
        %v1668 = vlog2.pop %v1661
        %v1669 = vmul.f32 %v1668, 0.6931472
        %v1674 = vcombine.low %v1663, %v1665
        %v1675 = vcombine.low %v1667, %v1669
        %v1678 = vsub.f32 %v1622, %v1674
        %v1679 = vsub.f32 %v1623, %v1675
        %s1680 = scalar_lea.vmem %s271, 64 [#allocation11]
        %1681 = vst [vmem:[%s1680] sm:$0xff] %v1678
        %1682 = vst [vmem:[%s1680 + $0x8] sm:$0xff] %v1679
        %s1683 = scalar_lea.vmem %s246, 80 [#allocation10]
        %v1684 = vld [vmem:[%s1683] sm:$0xff]
        %v1685 = vld [vmem:[%s1683 + $0x8] sm:$0xff]
        %s1686 = sadd.s32 20, 32
        %s1687 = smul.addr %s1686, 4
        %s1688 = scalar_lea.vmem %s246, %s1687 [#allocation10]
        %v1689 = vld [vmem:[%s1688] sm:$0xff]
        %v1690 = vld [vmem:[%s1688 + $0x8] sm:$0xff]
        %s1691 = sadd.s32 20, 64
        %s1692 = smul.addr %s1691, 4
        %s1693 = scalar_lea.vmem %s246, %s1692 [#allocation10]
        %v1694 = vld [vmem:[%s1693] sm:$0xff]
        %v1695 = vld [vmem:[%s1693 + $0x8] sm:$0xff]
        %s1696 = sld [smem:[#allocation2]]
        %v1697 = vstv %s1696
        %v1698 = vmul.f32 %v1697, %v1684
        %v1699 = vmul.f32 %v1697, %v1685
        %s1700 = sld [smem:[#allocation2 + $0x6]]
        %v1701 = vstv %s1700
        %v1702 = vmul.f32 %v1701, %v1689
        %v1703 = vmul.f32 %v1701, %v1690
        %v1704 = vadd.f32 %v1698, %v1702
        %v1705 = vadd.f32 %v1699, %v1703
        %s1706 = sld [smem:[#allocation2 + $0xc]]
        %v1707 = vstv %s1706
        %v1708 = vmul.f32 %v1707, %v1694
        %v1709 = vmul.f32 %v1707, %v1695
        %v1710 = vadd.f32 %v1704, %v1708
        %v1711 = vadd.f32 %v1705, %v1709
        %s1712 = sld [smem:[#allocation7]]
        %v1713 = vstv %s1712
        %v1714 = vadd.f32 %v1710, %v1713
        %v1715 = vadd.f32 %v1711, %v1713
        %v1716 = vmax.f32 %v1714, 0.0
        %v1717 = vmax.f32 %v1715, 0.0
        %s1718 = sld [smem:[#allocation8]]
        %v1719 = vstv %s1718
        %v1720 = vmul.f32 %v1719, %v1716
        %v1721 = vmul.f32 %v1719, %v1717
        %s1722 = sld [smem:[#allocation2 + $0x1]]
        %v1723 = vstv %s1722
        %v1724 = vmul.f32 %v1723, %v1684
        %v1725 = vmul.f32 %v1723, %v1685
        %s1726 = sld [smem:[#allocation2 + $0x7]]
        %v1727 = vstv %s1726
        %v1728 = vmul.f32 %v1727, %v1689
        %v1729 = vmul.f32 %v1727, %v1690
        %v1730 = vadd.f32 %v1724, %v1728
        %v1731 = vadd.f32 %v1725, %v1729
        %s1732 = sld [smem:[#allocation2 + $0xd]]
        %v1733 = vstv %s1732
        %v1734 = vmul.f32 %v1733, %v1694
        %v1735 = vmul.f32 %v1733, %v1695
        %v1736 = vadd.f32 %v1730, %v1734
        %v1737 = vadd.f32 %v1731, %v1735
        %s1738 = sld [smem:[#allocation7 + $0x1]]
        %v1739 = vstv %s1738
        %v1740 = vadd.f32 %v1736, %v1739
        %v1741 = vadd.f32 %v1737, %v1739
        %v1742 = vmax.f32 %v1740, 0.0
        %v1743 = vmax.f32 %v1741, 0.0
        %s1744 = sld [smem:[#allocation8 + $0x1]]
        %v1745 = vstv %s1744
        %v1746 = vmul.f32 %v1745, %v1742
        %v1747 = vmul.f32 %v1745, %v1743
        %v1748 = vadd.f32 %v1720, %v1746
        %v1749 = vadd.f32 %v1721, %v1747
        %s1750 = sld [smem:[#allocation2 + $0x2]]
        %v1751 = vstv %s1750
        %v1752 = vmul.f32 %v1751, %v1684
        %v1753 = vmul.f32 %v1751, %v1685
        %s1754 = sld [smem:[#allocation2 + $0x8]]
        %v1755 = vstv %s1754
        %v1756 = vmul.f32 %v1755, %v1689
        %v1757 = vmul.f32 %v1755, %v1690
        %v1758 = vadd.f32 %v1752, %v1756
        %v1759 = vadd.f32 %v1753, %v1757
        %s1760 = sld [smem:[#allocation2 + $0xe]]
        %v1761 = vstv %s1760
        %v1762 = vmul.f32 %v1761, %v1694
        %v1763 = vmul.f32 %v1761, %v1695
        %v1764 = vadd.f32 %v1758, %v1762
        %v1765 = vadd.f32 %v1759, %v1763
        %s1766 = sld [smem:[#allocation7 + $0x2]]
        %v1767 = vstv %s1766
        %v1768 = vadd.f32 %v1764, %v1767
        %v1769 = vadd.f32 %v1765, %v1767
        %v1770 = vmax.f32 %v1768, 0.0
        %v1771 = vmax.f32 %v1769, 0.0
        %s1772 = sld [smem:[#allocation8 + $0x2]]
        %v1773 = vstv %s1772
        %v1774 = vmul.f32 %v1773, %v1770
        %v1775 = vmul.f32 %v1773, %v1771
        %v1776 = vadd.f32 %v1748, %v1774
        %v1777 = vadd.f32 %v1749, %v1775
        %s1778 = sld [smem:[#allocation2 + $0x3]]
        %v1779 = vstv %s1778
        %v1780 = vmul.f32 %v1779, %v1684
        %v1781 = vmul.f32 %v1779, %v1685
        %s1782 = sld [smem:[#allocation2 + $0x9]]
        %v1783 = vstv %s1782
        %v1784 = vmul.f32 %v1783, %v1689
        %v1785 = vmul.f32 %v1783, %v1690
        %v1786 = vadd.f32 %v1780, %v1784
        %v1787 = vadd.f32 %v1781, %v1785
        %s1788 = sld [smem:[#allocation2 + $0xf]]
        %v1789 = vstv %s1788
        %v1790 = vmul.f32 %v1789, %v1694
        %v1791 = vmul.f32 %v1789, %v1695
        %v1792 = vadd.f32 %v1786, %v1790
        %v1793 = vadd.f32 %v1787, %v1791
        %s1794 = sld [smem:[#allocation7 + $0x3]]
        %v1795 = vstv %s1794
        %v1796 = vadd.f32 %v1792, %v1795
        %v1797 = vadd.f32 %v1793, %v1795
        %v1798 = vmax.f32 %v1796, 0.0
        %v1799 = vmax.f32 %v1797, 0.0
        %s1800 = sld [smem:[#allocation8 + $0x3]]
        %v1801 = vstv %s1800
        %v1802 = vmul.f32 %v1801, %v1798
        %v1803 = vmul.f32 %v1801, %v1799
        %v1804 = vadd.f32 %v1776, %v1802
        %v1805 = vadd.f32 %v1777, %v1803
        %s1806 = sld [smem:[#allocation2 + $0x4]]
        %v1807 = vstv %s1806
        %v1808 = vmul.f32 %v1807, %v1684
        %v1809 = vmul.f32 %v1807, %v1685
        %s1810 = sld [smem:[#allocation2 + $0xa]]
        %v1811 = vstv %s1810
        %v1812 = vmul.f32 %v1811, %v1689
        %v1813 = vmul.f32 %v1811, %v1690
        %v1814 = vadd.f32 %v1808, %v1812
        %v1815 = vadd.f32 %v1809, %v1813
        %s1816 = sld [smem:[#allocation2 + $0x10]]
        %v1817 = vstv %s1816
        %v1818 = vmul.f32 %v1817, %v1694
        %v1819 = vmul.f32 %v1817, %v1695
        %v1820 = vadd.f32 %v1814, %v1818
        %v1821 = vadd.f32 %v1815, %v1819
        %s1822 = sld [smem:[#allocation7 + $0x4]]
        %v1823 = vstv %s1822
        %v1824 = vadd.f32 %v1820, %v1823
        %v1825 = vadd.f32 %v1821, %v1823
        %v1826 = vmax.f32 %v1824, 0.0
        %v1827 = vmax.f32 %v1825, 0.0
        %s1828 = sld [smem:[#allocation8 + $0x4]]
        %v1829 = vstv %s1828
        %v1830 = vmul.f32 %v1829, %v1826
        %v1831 = vmul.f32 %v1829, %v1827
        %v1832 = vadd.f32 %v1804, %v1830
        %v1833 = vadd.f32 %v1805, %v1831
        %s1834 = sld [smem:[#allocation2 + $0x5]]
        %v1835 = vstv %s1834
        %v1836 = vmul.f32 %v1835, %v1684
        %v1837 = vmul.f32 %v1835, %v1685
        %s1838 = sld [smem:[#allocation2 + $0xb]]
        %v1839 = vstv %s1838
        %v1840 = vmul.f32 %v1839, %v1689
        %v1841 = vmul.f32 %v1839, %v1690
        %v1842 = vadd.f32 %v1836, %v1840
        %v1843 = vadd.f32 %v1837, %v1841
        %s1844 = sld [smem:[#allocation2 + $0x11]]
        %v1845 = vstv %s1844
        %v1846 = vmul.f32 %v1845, %v1694
        %v1847 = vmul.f32 %v1845, %v1695
        %v1848 = vadd.f32 %v1842, %v1846
        %v1849 = vadd.f32 %v1843, %v1847
        %s1850 = sld [smem:[#allocation7 + $0x5]]
        %v1851 = vstv %s1850
        %v1852 = vadd.f32 %v1848, %v1851
        %v1853 = vadd.f32 %v1849, %v1851
        %v1854 = vmax.f32 %v1852, 0.0
        %v1855 = vmax.f32 %v1853, 0.0
        %s1856 = sld [smem:[#allocation8 + $0x5]]
        %v1857 = vstv %s1856
        %v1858 = vmul.f32 %v1857, %v1854
        %v1859 = vmul.f32 %v1857, %v1855
        %v1860 = vadd.f32 %v1832, %v1858
        %v1861 = vadd.f32 %v1833, %v1859
        %v1864 = vcombine.high %v1860, %v1860
        %v1865 = vcombine.high %v1861, %v1861
        %v1868 = vsel %vm458, %v1860, -inf
        %v1869 = vrot.slane %v1868, 4
        %v1870 = vmax.f32 %v1868, %v1869
        %v1871 = vrot.slane %v1870, 2
        %v1872 = vmax.f32 %v1870, %v1871
        %v1873 = vrot.slane %v1872, 1
        %v1874 = vmax.f32 %v1872, %v1873
        %v1875 = vsel %vm458, %v1864, -inf
        %v1876 = vrot.slane %v1875, 4
        %v1877 = vmax.f32 %v1875, %v1876
        %v1878 = vrot.slane %v1877, 2
        %v1879 = vmax.f32 %v1877, %v1878
        %v1880 = vrot.slane %v1879, 1
        %v1881 = vmax.f32 %v1879, %v1880
        %v1882 = vsel %vm458, %v1861, -inf
        %v1883 = vrot.slane %v1882, 4
        %v1884 = vmax.f32 %v1882, %v1883
        %v1885 = vrot.slane %v1884, 2
        %v1886 = vmax.f32 %v1884, %v1885
        %v1887 = vrot.slane %v1886, 1
        %v1888 = vmax.f32 %v1886, %v1887
        %v1889 = vsel %vm458, %v1865, -inf
        %v1890 = vrot.slane %v1889, 4
        %v1891 = vmax.f32 %v1889, %v1890
        %v1892 = vrot.slane %v1891, 2
        %v1893 = vmax.f32 %v1891, %v1892
        %v1894 = vrot.slane %v1893, 1
        %v1895 = vmax.f32 %v1893, %v1894
        %v1900 = vcombine.low %v1874, %v1881
        %v1901 = vcombine.low %v1888, %v1895
        %v1904 = vsub.f32 %v1860, %v1900
        %v1905 = vsub.f32 %v1861, %v1901
        %v1906 = vmul.f32 %v1904, 1.442695
        %v1907 = vpow.pop %v1906
        %v1908 = vmul.f32 %v1905, 1.442695
        %v1909 = vpow.pop %v1908
        %v1912 = vcombine.high %v1907, %v1907
        %v1913 = vcombine.high %v1909, %v1909
        %v1916 = vsel %vm458, %v1907, 0.0
        %v1917 = vrot.slane %v1916, 4
        %v1918 = vadd.f32 %v1916, %v1917
        %v1919 = vrot.slane %v1918, 2
        %v1920 = vadd.f32 %v1918, %v1919
        %v1921 = vrot.slane %v1920, 1
        %v1922 = vadd.f32 %v1920, %v1921
        %v1923 = vsel %vm458, %v1912, 0.0
        %v1924 = vrot.slane %v1923, 4
        %v1925 = vadd.f32 %v1923, %v1924
        %v1926 = vrot.slane %v1925, 2
        %v1927 = vadd.f32 %v1925, %v1926
        %v1928 = vrot.slane %v1927, 1
        %v1929 = vadd.f32 %v1927, %v1928
        %v1930 = vsel %vm458, %v1909, 0.0
        %v1931 = vrot.slane %v1930, 4
        %v1932 = vadd.f32 %v1930, %v1931
        %v1933 = vrot.slane %v1932, 2
        %v1934 = vadd.f32 %v1932, %v1933
        %v1935 = vrot.slane %v1934, 1
        %v1936 = vadd.f32 %v1934, %v1935
        %v1937 = vsel %vm458, %v1913, 0.0
        %v1938 = vrot.slane %v1937, 4
        %v1939 = vadd.f32 %v1937, %v1938
        %v1940 = vrot.slane %v1939, 2
        %v1941 = vadd.f32 %v1939, %v1940
        %v1942 = vrot.slane %v1941, 1
        %v1943 = vadd.f32 %v1941, %v1942
        %v1944 = vlog2.pop %v1922
        %v1945 = vmul.f32 %v1944, 0.6931472
        %v1946 = vlog2.pop %v1929
        %v1947 = vmul.f32 %v1946, 0.6931472
        %v1948 = vlog2.pop %v1936
        %v1949 = vmul.f32 %v1948, 0.6931472
        %v1950 = vlog2.pop %v1943
        %v1951 = vmul.f32 %v1950, 0.6931472
        %v1956 = vcombine.low %v1945, %v1947
        %v1957 = vcombine.low %v1949, %v1951
        %v1960 = vsub.f32 %v1904, %v1956
        %v1961 = vsub.f32 %v1905, %v1957
        %s1962 = scalar_lea.vmem %s271, 80 [#allocation11]
        %1963 = vst [vmem:[%s1962] sm:$0xff] %v1960
        %1964 = vst [vmem:[%s1962 + $0x8] sm:$0xff] %v1961
        %s1965 = scalar_lea.vmem %s246, 96 [#allocation10]
        %v1966 = vld [vmem:[%s1965] sm:$0xff]
        %v1967 = vld [vmem:[%s1965 + $0x8] sm:$0xff]
        %s1968 = sadd.s32 24, 32
        %s1969 = smul.addr %s1968, 4
        %s1970 = scalar_lea.vmem %s246, %s1969 [#allocation10]
        %v1971 = vld [vmem:[%s1970] sm:$0xff]
        %v1972 = vld [vmem:[%s1970 + $0x8] sm:$0xff]
        %s1973 = sadd.s32 24, 64
        %s1974 = smul.addr %s1973, 4
        %s1975 = scalar_lea.vmem %s246, %s1974 [#allocation10]
        %v1976 = vld [vmem:[%s1975] sm:$0xff]
        %v1977 = vld [vmem:[%s1975 + $0x8] sm:$0xff]
        %s1978 = sld [smem:[#allocation2]]
        %v1979 = vstv %s1978
        %v1980 = vmul.f32 %v1979, %v1966
        %v1981 = vmul.f32 %v1979, %v1967
        %s1982 = sld [smem:[#allocation2 + $0x6]]
        %v1983 = vstv %s1982
        %v1984 = vmul.f32 %v1983, %v1971
        %v1985 = vmul.f32 %v1983, %v1972
        %v1986 = vadd.f32 %v1980, %v1984
        %v1987 = vadd.f32 %v1981, %v1985
        %s1988 = sld [smem:[#allocation2 + $0xc]]
        %v1989 = vstv %s1988
        %v1990 = vmul.f32 %v1989, %v1976
        %v1991 = vmul.f32 %v1989, %v1977
        %v1992 = vadd.f32 %v1986, %v1990
        %v1993 = vadd.f32 %v1987, %v1991
        %s1994 = sld [smem:[#allocation7]]
        %v1995 = vstv %s1994
        %v1996 = vadd.f32 %v1992, %v1995
        %v1997 = vadd.f32 %v1993, %v1995
        %v1998 = vmax.f32 %v1996, 0.0
        %v1999 = vmax.f32 %v1997, 0.0
        %s2000 = sld [smem:[#allocation8]]
        %v2001 = vstv %s2000
        %v2002 = vmul.f32 %v2001, %v1998
        %v2003 = vmul.f32 %v2001, %v1999
        %s2004 = sld [smem:[#allocation2 + $0x1]]
        %v2005 = vstv %s2004
        %v2006 = vmul.f32 %v2005, %v1966
        %v2007 = vmul.f32 %v2005, %v1967
        %s2008 = sld [smem:[#allocation2 + $0x7]]
        %v2009 = vstv %s2008
        %v2010 = vmul.f32 %v2009, %v1971
        %v2011 = vmul.f32 %v2009, %v1972
        %v2012 = vadd.f32 %v2006, %v2010
        %v2013 = vadd.f32 %v2007, %v2011
        %s2014 = sld [smem:[#allocation2 + $0xd]]
        %v2015 = vstv %s2014
        %v2016 = vmul.f32 %v2015, %v1976
        %v2017 = vmul.f32 %v2015, %v1977
        %v2018 = vadd.f32 %v2012, %v2016
        %v2019 = vadd.f32 %v2013, %v2017
        %s2020 = sld [smem:[#allocation7 + $0x1]]
        %v2021 = vstv %s2020
        %v2022 = vadd.f32 %v2018, %v2021
        %v2023 = vadd.f32 %v2019, %v2021
        %v2024 = vmax.f32 %v2022, 0.0
        %v2025 = vmax.f32 %v2023, 0.0
        %s2026 = sld [smem:[#allocation8 + $0x1]]
        %v2027 = vstv %s2026
        %v2028 = vmul.f32 %v2027, %v2024
        %v2029 = vmul.f32 %v2027, %v2025
        %v2030 = vadd.f32 %v2002, %v2028
        %v2031 = vadd.f32 %v2003, %v2029
        %s2032 = sld [smem:[#allocation2 + $0x2]]
        %v2033 = vstv %s2032
        %v2034 = vmul.f32 %v2033, %v1966
        %v2035 = vmul.f32 %v2033, %v1967
        %s2036 = sld [smem:[#allocation2 + $0x8]]
        %v2037 = vstv %s2036
        %v2038 = vmul.f32 %v2037, %v1971
        %v2039 = vmul.f32 %v2037, %v1972
        %v2040 = vadd.f32 %v2034, %v2038
        %v2041 = vadd.f32 %v2035, %v2039
        %s2042 = sld [smem:[#allocation2 + $0xe]]
        %v2043 = vstv %s2042
        %v2044 = vmul.f32 %v2043, %v1976
        %v2045 = vmul.f32 %v2043, %v1977
        %v2046 = vadd.f32 %v2040, %v2044
        %v2047 = vadd.f32 %v2041, %v2045
        %s2048 = sld [smem:[#allocation7 + $0x2]]
        %v2049 = vstv %s2048
        %v2050 = vadd.f32 %v2046, %v2049
        %v2051 = vadd.f32 %v2047, %v2049
        %v2052 = vmax.f32 %v2050, 0.0
        %v2053 = vmax.f32 %v2051, 0.0
        %s2054 = sld [smem:[#allocation8 + $0x2]]
        %v2055 = vstv %s2054
        %v2056 = vmul.f32 %v2055, %v2052
        %v2057 = vmul.f32 %v2055, %v2053
        %v2058 = vadd.f32 %v2030, %v2056
        %v2059 = vadd.f32 %v2031, %v2057
        %s2060 = sld [smem:[#allocation2 + $0x3]]
        %v2061 = vstv %s2060
        %v2062 = vmul.f32 %v2061, %v1966
        %v2063 = vmul.f32 %v2061, %v1967
        %s2064 = sld [smem:[#allocation2 + $0x9]]
        %v2065 = vstv %s2064
        %v2066 = vmul.f32 %v2065, %v1971
        %v2067 = vmul.f32 %v2065, %v1972
        %v2068 = vadd.f32 %v2062, %v2066
        %v2069 = vadd.f32 %v2063, %v2067
        %s2070 = sld [smem:[#allocation2 + $0xf]]
        %v2071 = vstv %s2070
        %v2072 = vmul.f32 %v2071, %v1976
        %v2073 = vmul.f32 %v2071, %v1977
        %v2074 = vadd.f32 %v2068, %v2072
        %v2075 = vadd.f32 %v2069, %v2073
        %s2076 = sld [smem:[#allocation7 + $0x3]]
        %v2077 = vstv %s2076
        %v2078 = vadd.f32 %v2074, %v2077
        %v2079 = vadd.f32 %v2075, %v2077
        %v2080 = vmax.f32 %v2078, 0.0
        %v2081 = vmax.f32 %v2079, 0.0
        %s2082 = sld [smem:[#allocation8 + $0x3]]
        %v2083 = vstv %s2082
        %v2084 = vmul.f32 %v2083, %v2080
        %v2085 = vmul.f32 %v2083, %v2081
        %v2086 = vadd.f32 %v2058, %v2084
        %v2087 = vadd.f32 %v2059, %v2085
        %s2088 = sld [smem:[#allocation2 + $0x4]]
        %v2089 = vstv %s2088
        %v2090 = vmul.f32 %v2089, %v1966
        %v2091 = vmul.f32 %v2089, %v1967
        %s2092 = sld [smem:[#allocation2 + $0xa]]
        %v2093 = vstv %s2092
        %v2094 = vmul.f32 %v2093, %v1971
        %v2095 = vmul.f32 %v2093, %v1972
        %v2096 = vadd.f32 %v2090, %v2094
        %v2097 = vadd.f32 %v2091, %v2095
        %s2098 = sld [smem:[#allocation2 + $0x10]]
        %v2099 = vstv %s2098
        %v2100 = vmul.f32 %v2099, %v1976
        %v2101 = vmul.f32 %v2099, %v1977
        %v2102 = vadd.f32 %v2096, %v2100
        %v2103 = vadd.f32 %v2097, %v2101
        %s2104 = sld [smem:[#allocation7 + $0x4]]
        %v2105 = vstv %s2104
        %v2106 = vadd.f32 %v2102, %v2105
        %v2107 = vadd.f32 %v2103, %v2105
        %v2108 = vmax.f32 %v2106, 0.0
        %v2109 = vmax.f32 %v2107, 0.0
        %s2110 = sld [smem:[#allocation8 + $0x4]]
        %v2111 = vstv %s2110
        %v2112 = vmul.f32 %v2111, %v2108
        %v2113 = vmul.f32 %v2111, %v2109
        %v2114 = vadd.f32 %v2086, %v2112
        %v2115 = vadd.f32 %v2087, %v2113
        %s2116 = sld [smem:[#allocation2 + $0x5]]
        %v2117 = vstv %s2116
        %v2118 = vmul.f32 %v2117, %v1966
        %v2119 = vmul.f32 %v2117, %v1967
        %s2120 = sld [smem:[#allocation2 + $0xb]]
        %v2121 = vstv %s2120
        %v2122 = vmul.f32 %v2121, %v1971
        %v2123 = vmul.f32 %v2121, %v1972
        %v2124 = vadd.f32 %v2118, %v2122
        %v2125 = vadd.f32 %v2119, %v2123
        %s2126 = sld [smem:[#allocation2 + $0x11]]
        %v2127 = vstv %s2126
        %v2128 = vmul.f32 %v2127, %v1976
        %v2129 = vmul.f32 %v2127, %v1977
        %v2130 = vadd.f32 %v2124, %v2128
        %v2131 = vadd.f32 %v2125, %v2129
        %s2132 = sld [smem:[#allocation7 + $0x5]]
        %v2133 = vstv %s2132
        %v2134 = vadd.f32 %v2130, %v2133
        %v2135 = vadd.f32 %v2131, %v2133
        %v2136 = vmax.f32 %v2134, 0.0
        %v2137 = vmax.f32 %v2135, 0.0
        %s2138 = sld [smem:[#allocation8 + $0x5]]
        %v2139 = vstv %s2138
        %v2140 = vmul.f32 %v2139, %v2136
        %v2141 = vmul.f32 %v2139, %v2137
        %v2142 = vadd.f32 %v2114, %v2140
        %v2143 = vadd.f32 %v2115, %v2141
        %v2146 = vcombine.high %v2142, %v2142
        %v2147 = vcombine.high %v2143, %v2143
        %v2150 = vsel %vm458, %v2142, -inf
        %v2151 = vrot.slane %v2150, 4
        %v2152 = vmax.f32 %v2150, %v2151
        %v2153 = vrot.slane %v2152, 2
        %v2154 = vmax.f32 %v2152, %v2153
        %v2155 = vrot.slane %v2154, 1
        %v2156 = vmax.f32 %v2154, %v2155
        %v2157 = vsel %vm458, %v2146, -inf
        %v2158 = vrot.slane %v2157, 4
        %v2159 = vmax.f32 %v2157, %v2158
        %v2160 = vrot.slane %v2159, 2
        %v2161 = vmax.f32 %v2159, %v2160
        %v2162 = vrot.slane %v2161, 1
        %v2163 = vmax.f32 %v2161, %v2162
        %v2164 = vsel %vm458, %v2143, -inf
        %v2165 = vrot.slane %v2164, 4
        %v2166 = vmax.f32 %v2164, %v2165
        %v2167 = vrot.slane %v2166, 2
        %v2168 = vmax.f32 %v2166, %v2167
        %v2169 = vrot.slane %v2168, 1
        %v2170 = vmax.f32 %v2168, %v2169
        %v2171 = vsel %vm458, %v2147, -inf
        %v2172 = vrot.slane %v2171, 4
        %v2173 = vmax.f32 %v2171, %v2172
        %v2174 = vrot.slane %v2173, 2
        %v2175 = vmax.f32 %v2173, %v2174
        %v2176 = vrot.slane %v2175, 1
        %v2177 = vmax.f32 %v2175, %v2176
        %v2182 = vcombine.low %v2156, %v2163
        %v2183 = vcombine.low %v2170, %v2177
        %v2186 = vsub.f32 %v2142, %v2182
        %v2187 = vsub.f32 %v2143, %v2183
        %v2188 = vmul.f32 %v2186, 1.442695
        %v2189 = vpow.pop %v2188
        %v2190 = vmul.f32 %v2187, 1.442695
        %v2191 = vpow.pop %v2190
        %v2194 = vcombine.high %v2189, %v2189
        %v2195 = vcombine.high %v2191, %v2191
        %v2198 = vsel %vm458, %v2189, 0.0
        %v2199 = vrot.slane %v2198, 4
        %v2200 = vadd.f32 %v2198, %v2199
        %v2201 = vrot.slane %v2200, 2
        %v2202 = vadd.f32 %v2200, %v2201
        %v2203 = vrot.slane %v2202, 1
        %v2204 = vadd.f32 %v2202, %v2203
        %v2205 = vsel %vm458, %v2194, 0.0
        %v2206 = vrot.slane %v2205, 4
        %v2207 = vadd.f32 %v2205, %v2206
        %v2208 = vrot.slane %v2207, 2
        %v2209 = vadd.f32 %v2207, %v2208
        %v2210 = vrot.slane %v2209, 1
        %v2211 = vadd.f32 %v2209, %v2210
        %v2212 = vsel %vm458, %v2191, 0.0
        %v2213 = vrot.slane %v2212, 4
        %v2214 = vadd.f32 %v2212, %v2213
        %v2215 = vrot.slane %v2214, 2
        %v2216 = vadd.f32 %v2214, %v2215
        %v2217 = vrot.slane %v2216, 1
        %v2218 = vadd.f32 %v2216, %v2217
        %v2219 = vsel %vm458, %v2195, 0.0
        %v2220 = vrot.slane %v2219, 4
        %v2221 = vadd.f32 %v2219, %v2220
        %v2222 = vrot.slane %v2221, 2
        %v2223 = vadd.f32 %v2221, %v2222
        %v2224 = vrot.slane %v2223, 1
        %v2225 = vadd.f32 %v2223, %v2224
        %v2226 = vlog2.pop %v2204
        %v2227 = vmul.f32 %v2226, 0.6931472
        %v2228 = vlog2.pop %v2211
        %v2229 = vmul.f32 %v2228, 0.6931472
        %v2230 = vlog2.pop %v2218
        %v2231 = vmul.f32 %v2230, 0.6931472
        %v2232 = vlog2.pop %v2225
        %v2233 = vmul.f32 %v2232, 0.6931472
        %v2238 = vcombine.low %v2227, %v2229
        %v2239 = vcombine.low %v2231, %v2233
        %v2242 = vsub.f32 %v2186, %v2238
        %v2243 = vsub.f32 %v2187, %v2239
        %s2244 = scalar_lea.vmem %s271, 96 [#allocation11]
        %2245 = vst [vmem:[%s2244] sm:$0xff] %v2242
        %2246 = vst [vmem:[%s2244 + $0x8] sm:$0xff] %v2243
        %s2247 = scalar_lea.vmem %s246, 112 [#allocation10]
        %v2248 = vld [vmem:[%s2247] sm:$0xff]
        %v2249 = vld [vmem:[%s2247 + $0x8] sm:$0xff]
        %s2250 = sadd.s32 28, 32
        %s2251 = smul.addr %s2250, 4
        %s2252 = scalar_lea.vmem %s246, %s2251 [#allocation10]
        %v2253 = vld [vmem:[%s2252] sm:$0xff]
        %v2254 = vld [vmem:[%s2252 + $0x8] sm:$0xff]
        %s2255 = sadd.s32 28, 64
        %s2256 = smul.addr %s2255, 4
        %s2257 = scalar_lea.vmem %s246, %s2256 [#allocation10]
        %v2258 = vld [vmem:[%s2257] sm:$0xff]
        %v2259 = vld [vmem:[%s2257 + $0x8] sm:$0xff]
        %s2260 = sld [smem:[#allocation2]]
        %v2261 = vstv %s2260
        %v2262 = vmul.f32 %v2261, %v2248
        %v2263 = vmul.f32 %v2261, %v2249
        %s2264 = sld [smem:[#allocation2 + $0x6]]
        %v2265 = vstv %s2264
        %v2266 = vmul.f32 %v2265, %v2253
        %v2267 = vmul.f32 %v2265, %v2254
        %v2268 = vadd.f32 %v2262, %v2266
        %v2269 = vadd.f32 %v2263, %v2267
        %s2270 = sld [smem:[#allocation2 + $0xc]]
        %v2271 = vstv %s2270
        %v2272 = vmul.f32 %v2271, %v2258
        %v2273 = vmul.f32 %v2271, %v2259
        %v2274 = vadd.f32 %v2268, %v2272
        %v2275 = vadd.f32 %v2269, %v2273
        %s2276 = sld [smem:[#allocation7]]
        %v2277 = vstv %s2276
        %v2278 = vadd.f32 %v2274, %v2277
        %v2279 = vadd.f32 %v2275, %v2277
        %v2280 = vmax.f32 %v2278, 0.0
        %v2281 = vmax.f32 %v2279, 0.0
        %s2282 = sld [smem:[#allocation8]]
        %v2283 = vstv %s2282
        %v2284 = vmul.f32 %v2283, %v2280
        %v2285 = vmul.f32 %v2283, %v2281
        %s2286 = sld [smem:[#allocation2 + $0x1]]
        %v2287 = vstv %s2286
        %v2288 = vmul.f32 %v2287, %v2248
        %v2289 = vmul.f32 %v2287, %v2249
        %s2290 = sld [smem:[#allocation2 + $0x7]]
        %v2291 = vstv %s2290
        %v2292 = vmul.f32 %v2291, %v2253
        %v2293 = vmul.f32 %v2291, %v2254
        %v2294 = vadd.f32 %v2288, %v2292
        %v2295 = vadd.f32 %v2289, %v2293
        %s2296 = sld [smem:[#allocation2 + $0xd]]
        %v2297 = vstv %s2296
        %v2298 = vmul.f32 %v2297, %v2258
        %v2299 = vmul.f32 %v2297, %v2259
        %v2300 = vadd.f32 %v2294, %v2298
        %v2301 = vadd.f32 %v2295, %v2299
        %s2302 = sld [smem:[#allocation7 + $0x1]]
        %v2303 = vstv %s2302
        %v2304 = vadd.f32 %v2300, %v2303
        %v2305 = vadd.f32 %v2301, %v2303
        %v2306 = vmax.f32 %v2304, 0.0
        %v2307 = vmax.f32 %v2305, 0.0
        %s2308 = sld [smem:[#allocation8 + $0x1]]
        %v2309 = vstv %s2308
        %v2310 = vmul.f32 %v2309, %v2306
        %v2311 = vmul.f32 %v2309, %v2307
        %v2312 = vadd.f32 %v2284, %v2310
        %v2313 = vadd.f32 %v2285, %v2311
        %s2314 = sld [smem:[#allocation2 + $0x2]]
        %v2315 = vstv %s2314
        %v2316 = vmul.f32 %v2315, %v2248
        %v2317 = vmul.f32 %v2315, %v2249
        %s2318 = sld [smem:[#allocation2 + $0x8]]
        %v2319 = vstv %s2318
        %v2320 = vmul.f32 %v2319, %v2253
        %v2321 = vmul.f32 %v2319, %v2254
        %v2322 = vadd.f32 %v2316, %v2320
        %v2323 = vadd.f32 %v2317, %v2321
        %s2324 = sld [smem:[#allocation2 + $0xe]]
        %v2325 = vstv %s2324
        %v2326 = vmul.f32 %v2325, %v2258
        %v2327 = vmul.f32 %v2325, %v2259
        %v2328 = vadd.f32 %v2322, %v2326
        %v2329 = vadd.f32 %v2323, %v2327
        %s2330 = sld [smem:[#allocation7 + $0x2]]
        %v2331 = vstv %s2330
        %v2332 = vadd.f32 %v2328, %v2331
        %v2333 = vadd.f32 %v2329, %v2331
        %v2334 = vmax.f32 %v2332, 0.0
        %v2335 = vmax.f32 %v2333, 0.0
        %s2336 = sld [smem:[#allocation8 + $0x2]]
        %v2337 = vstv %s2336
        %v2338 = vmul.f32 %v2337, %v2334
        %v2339 = vmul.f32 %v2337, %v2335
        %v2340 = vadd.f32 %v2312, %v2338
        %v2341 = vadd.f32 %v2313, %v2339
        %s2342 = sld [smem:[#allocation2 + $0x3]]
        %v2343 = vstv %s2342
        %v2344 = vmul.f32 %v2343, %v2248
        %v2345 = vmul.f32 %v2343, %v2249
        %s2346 = sld [smem:[#allocation2 + $0x9]]
        %v2347 = vstv %s2346
        %v2348 = vmul.f32 %v2347, %v2253
        %v2349 = vmul.f32 %v2347, %v2254
        %v2350 = vadd.f32 %v2344, %v2348
        %v2351 = vadd.f32 %v2345, %v2349
        %s2352 = sld [smem:[#allocation2 + $0xf]]
        %v2353 = vstv %s2352
        %v2354 = vmul.f32 %v2353, %v2258
        %v2355 = vmul.f32 %v2353, %v2259
        %v2356 = vadd.f32 %v2350, %v2354
        %v2357 = vadd.f32 %v2351, %v2355
        %s2358 = sld [smem:[#allocation7 + $0x3]]
        %v2359 = vstv %s2358
        %v2360 = vadd.f32 %v2356, %v2359
        %v2361 = vadd.f32 %v2357, %v2359
        %v2362 = vmax.f32 %v2360, 0.0
        %v2363 = vmax.f32 %v2361, 0.0
        %s2364 = sld [smem:[#allocation8 + $0x3]]
        %v2365 = vstv %s2364
        %v2366 = vmul.f32 %v2365, %v2362
        %v2367 = vmul.f32 %v2365, %v2363
        %v2368 = vadd.f32 %v2340, %v2366
        %v2369 = vadd.f32 %v2341, %v2367
        %s2370 = sld [smem:[#allocation2 + $0x4]]
        %v2371 = vstv %s2370
        %v2372 = vmul.f32 %v2371, %v2248
        %v2373 = vmul.f32 %v2371, %v2249
        %s2374 = sld [smem:[#allocation2 + $0xa]]
        %v2375 = vstv %s2374
        %v2376 = vmul.f32 %v2375, %v2253
        %v2377 = vmul.f32 %v2375, %v2254
        %v2378 = vadd.f32 %v2372, %v2376
        %v2379 = vadd.f32 %v2373, %v2377
        %s2380 = sld [smem:[#allocation2 + $0x10]]
        %v2381 = vstv %s2380
        %v2382 = vmul.f32 %v2381, %v2258
        %v2383 = vmul.f32 %v2381, %v2259
        %v2384 = vadd.f32 %v2378, %v2382
        %v2385 = vadd.f32 %v2379, %v2383
        %s2386 = sld [smem:[#allocation7 + $0x4]]
        %v2387 = vstv %s2386
        %v2388 = vadd.f32 %v2384, %v2387
        %v2389 = vadd.f32 %v2385, %v2387
        %v2390 = vmax.f32 %v2388, 0.0
        %v2391 = vmax.f32 %v2389, 0.0
        %s2392 = sld [smem:[#allocation8 + $0x4]]
        %v2393 = vstv %s2392
        %v2394 = vmul.f32 %v2393, %v2390
        %v2395 = vmul.f32 %v2393, %v2391
        %v2396 = vadd.f32 %v2368, %v2394
        %v2397 = vadd.f32 %v2369, %v2395
        %s2398 = sld [smem:[#allocation2 + $0x5]]
        %v2399 = vstv %s2398
        %v2400 = vmul.f32 %v2399, %v2248
        %v2401 = vmul.f32 %v2399, %v2249
        %s2402 = sld [smem:[#allocation2 + $0xb]]
        %v2403 = vstv %s2402
        %v2404 = vmul.f32 %v2403, %v2253
        %v2405 = vmul.f32 %v2403, %v2254
        %v2406 = vadd.f32 %v2400, %v2404
        %v2407 = vadd.f32 %v2401, %v2405
        %s2408 = sld [smem:[#allocation2 + $0x11]]
        %v2409 = vstv %s2408
        %v2410 = vmul.f32 %v2409, %v2258
        %v2411 = vmul.f32 %v2409, %v2259
        %v2412 = vadd.f32 %v2406, %v2410
        %v2413 = vadd.f32 %v2407, %v2411
        %s2414 = sld [smem:[#allocation7 + $0x5]]
        %v2415 = vstv %s2414
        %v2416 = vadd.f32 %v2412, %v2415
        %v2417 = vadd.f32 %v2413, %v2415
        %v2418 = vmax.f32 %v2416, 0.0
        %v2419 = vmax.f32 %v2417, 0.0
        %s2420 = sld [smem:[#allocation8 + $0x5]]
        %v2421 = vstv %s2420
        %v2422 = vmul.f32 %v2421, %v2418
        %v2423 = vmul.f32 %v2421, %v2419
        %v2424 = vadd.f32 %v2396, %v2422
        %v2425 = vadd.f32 %v2397, %v2423
        %v2428 = vcombine.high %v2424, %v2424
        %v2429 = vcombine.high %v2425, %v2425
        %v2432 = vsel %vm458, %v2424, -inf
        %v2433 = vrot.slane %v2432, 4
        %v2434 = vmax.f32 %v2432, %v2433
        %v2435 = vrot.slane %v2434, 2
        %v2436 = vmax.f32 %v2434, %v2435
        %v2437 = vrot.slane %v2436, 1
        %v2438 = vmax.f32 %v2436, %v2437
        %v2439 = vsel %vm458, %v2428, -inf
        %v2440 = vrot.slane %v2439, 4
        %v2441 = vmax.f32 %v2439, %v2440
        %v2442 = vrot.slane %v2441, 2
        %v2443 = vmax.f32 %v2441, %v2442
        %v2444 = vrot.slane %v2443, 1
        %v2445 = vmax.f32 %v2443, %v2444
        %v2446 = vsel %vm458, %v2425, -inf
        %v2447 = vrot.slane %v2446, 4
        %v2448 = vmax.f32 %v2446, %v2447
        %v2449 = vrot.slane %v2448, 2
        %v2450 = vmax.f32 %v2448, %v2449
        %v2451 = vrot.slane %v2450, 1
        %v2452 = vmax.f32 %v2450, %v2451
        %v2453 = vsel %vm458, %v2429, -inf
        %v2454 = vrot.slane %v2453, 4
        %v2455 = vmax.f32 %v2453, %v2454
        %v2456 = vrot.slane %v2455, 2
        %v2457 = vmax.f32 %v2455, %v2456
        %v2458 = vrot.slane %v2457, 1
        %v2459 = vmax.f32 %v2457, %v2458
        %v2464 = vcombine.low %v2438, %v2445
        %v2465 = vcombine.low %v2452, %v2459
        %v2468 = vsub.f32 %v2424, %v2464
        %v2469 = vsub.f32 %v2425, %v2465
        %v2470 = vmul.f32 %v2468, 1.442695
        %v2471 = vpow.pop %v2470
        %v2472 = vmul.f32 %v2469, 1.442695
        %v2473 = vpow.pop %v2472
        %v2476 = vcombine.high %v2471, %v2471
        %v2477 = vcombine.high %v2473, %v2473
        %v2480 = vsel %vm458, %v2471, 0.0
        %v2481 = vrot.slane %v2480, 4
        %v2482 = vadd.f32 %v2480, %v2481
        %v2483 = vrot.slane %v2482, 2
        %v2484 = vadd.f32 %v2482, %v2483
        %v2485 = vrot.slane %v2484, 1
        %v2486 = vadd.f32 %v2484, %v2485
        %v2487 = vsel %vm458, %v2476, 0.0
        %v2488 = vrot.slane %v2487, 4
        %v2489 = vadd.f32 %v2487, %v2488
        %v2490 = vrot.slane %v2489, 2
        %v2491 = vadd.f32 %v2489, %v2490
        %v2492 = vrot.slane %v2491, 1
        %v2493 = vadd.f32 %v2491, %v2492
        %v2494 = vsel %vm458, %v2473, 0.0
        %v2495 = vrot.slane %v2494, 4
        %v2496 = vadd.f32 %v2494, %v2495
        %v2497 = vrot.slane %v2496, 2
        %v2498 = vadd.f32 %v2496, %v2497
        %v2499 = vrot.slane %v2498, 1
        %v2500 = vadd.f32 %v2498, %v2499
        %v2501 = vsel %vm458, %v2477, 0.0
        %v2502 = vrot.slane %v2501, 4
        %v2503 = vadd.f32 %v2501, %v2502
        %v2504 = vrot.slane %v2503, 2
        %v2505 = vadd.f32 %v2503, %v2504
        %v2506 = vrot.slane %v2505, 1
        %v2507 = vadd.f32 %v2505, %v2506
        %v2508 = vlog2.pop %v2486
        %v2509 = vmul.f32 %v2508, 0.6931472
        %v2510 = vlog2.pop %v2493
        %v2511 = vmul.f32 %v2510, 0.6931472
        %v2512 = vlog2.pop %v2500
        %v2513 = vmul.f32 %v2512, 0.6931472
        %v2514 = vlog2.pop %v2507
        %v2515 = vmul.f32 %v2514, 0.6931472
        %v2520 = vcombine.low %v2509, %v2511
        %v2521 = vcombine.low %v2513, %v2515
        %v2524 = vsub.f32 %v2468, %v2520
        %v2525 = vsub.f32 %v2469, %v2521
        %s2526 = scalar_lea.vmem %s271, 112 [#allocation11]
        %2527 = vst [vmem:[%s2526] sm:$0xff] %v2524
        %2528 = vst [vmem:[%s2526 + $0x8] sm:$0xff] %v2525
        %s2529 = sand.u32 %s137, 1
        %s2530 = scalar_lea.sflag [#allocation4], %s2529
        %s2531 = sand.u32 %s137, 1
        %s2532 = smul.addr %s2531, 128
        %s2533 = scalar_lea.vmem [#allocation11], %s2532
        // Predicated region
        $region53: #{tpu_custom_call.1} parent=35 // pred_check
          %p2534 = pneg %p147
        $region54: #{tpu_custom_call.1} parent=35 // pred_check_branch
          %2536 = sbr.rel (%p2534) target = $region56
        $region55: #{tpu_custom_call.1} parent=35 // pred_region
          %s2537 = smul.u32 32, %s29
          %s2539 = ssub.s32 2048, 2048
          %2540 = vsyncadd %s2530, %s2539
          %s2541 = smul.addr %s28, 32
          %s2542 = sadd.s32 %s2537, %s2541
          %s2543 = smul.addr %s2542, 64
          %s2544 = scalar_lea.hbm %s4, %s2543
          %s2546 = sshll.u32 %s2533, 4
          %s2547 = int_to_ptr.vmem [resolvable:$true] %s2546
          %2549 = dma.vmem_to_hbm [thread:$0]  %s2547, 2048, %s2544, %s2530
        $region56: #{tpu_custom_call.1} parent=35 // pred_fallthru
          _
      $region36: #{tpu_custom_call.1} parent=5 // pred_fallthru
        _
      %p2550 = scmp.le.s32.totalorder 2, %s19
      // Predicated region
      $region57: #{tpu_custom_call.1} parent=5 // pred_check
        %p2551 = pneg %p2550
      $region58: #{tpu_custom_call.1} parent=5 // pred_check_branch
        %2553 = sbr.rel (%p2551) target = $region60
      $region59: #{tpu_custom_call.1} parent=5 // pred_region
        %s2554 = ssub.s32 %s19, 2
        // Predicated region
        $region61: #{tpu_custom_call.1} parent=59 // pred_check
          %p2555 = pneg %p153
        $region62: #{tpu_custom_call.1} parent=59 // pred_check_branch
          %2557 = sbr.rel (%p2555) target = $region64
        $region63: #{tpu_custom_call.1} parent=59 // pred_region
          %s2558 = sand.u32 %s138, 1
          %s2559 = scalar_lea.sflag [#allocation4], %s2558
          %s2560 = sand.u32 %s138, 1
          %s2561 = smul.addr %s2560, 128
          %s2562 = scalar_lea.vmem [#allocation11], %s2561
          %2563 = dma.done %s2559, 2048
        $region64: #{tpu_custom_call.1} parent=59 // pred_fallthru
          _
      $region60: #{tpu_custom_call.1} parent=5 // pred_fallthru
        _
    $region6: #{tpu_custom_call.1} parent=1 // loop_footer
      %s23 = sadd.s32 1, %s19
    $region7: #{tpu_custom_call.1} parent=1 // loop_footer_branch
      %18 = sbr.rel target = $region3
    $region8: #{tpu_custom_call.1} parent=1 // loop_exit
      _
    %2564 = vsyncpa [#allocation3], 1
    %s2565 = scalar_lea.sflag [#allocation3], 1
    %2566 = vsyncpa %s2565, 1
    %2567 = vsyncpa [#allocation4], 1
    %s2568 = scalar_lea.sflag [#allocation4], 1
    %2569 = vsyncpa %s2568, 1
    %2570 = vsyncpa [#allocation5], 1
    %s2571 = scalar_lea.sflag [#allocation5], 1
    %2572 = vsyncpa %s2571, 1
    %2573 = vsyncpa [#allocation6], 1
    %s2574 = scalar_lea.sflag [#allocation6], 1
    %2575 = vsyncpa %s2574, 1
    %2576 = vsyncpa [#allocation9], 1

</llo_original>
